<compile_context>
chip_gen: v7x
topology: tpu7x:2x2x1
jax: 0.10.0
libtpu: 0.0.40
codegen_flags: <defaults>
</compile_context>

<pallas_src>
import functools

import numpy as np

import jax
import jax.numpy as jnp
from jax import lax
from jax.experimental import pallas as pl
from jax.experimental.pallas import tpu as pltpu

LANE = 128                       # lane width / MXU-friendly padding granularity
TM = 256                         # node-row tile (block-sparse row block)
TK = 256                         # neighbor / reduction tile (block-sparse col block)
VMEM_LIMIT = 48 * 1024 * 1024    # <= 64 MiB physical on v7x, fine on v5e/v6e


def _round_up(n, m):
    return ((n + m - 1) // m) * m


def _pad2d(x, rows, cols):
    r, c = x.shape
    return jnp.pad(x, ((0, rows - r), (0, cols - c)))


# --------------------------------------------------------------------------
# Block-sparsity extraction (host side, once): per row tile, the ids of the
# nonzero (tm x tk) column blocks of A_hat, padded to max_blocks with a valid
# (repeated) id so the prefetch DMA stays in bounds; compute is pl.when-skipped.
# --------------------------------------------------------------------------
def build_block_sparsity(a_hat_padded_np, tm, tk):
    n_pad = a_hat_padded_np.shape[0]
    nrt, nct = n_pad // tm, n_pad // tk
    ids_rows, counts = [], []
    for i in range(nrt):
        row = a_hat_padded_np[i * tm:(i + 1) * tm]
        nz = [j for j in range(nct)
              if np.any(row[:, j * tk:(j + 1) * tk] != 0.0)]
        counts.append(len(nz))
        ids_rows.append(nz)
    max_blocks = max(1, max(counts))
    ids = np.zeros((nrt, max_blocks), np.int32)
    for i, nz in enumerate(ids_rows):
        for k in range(max_blocks):
            ids[i, k] = nz[min(k, len(nz) - 1)] if nz else 0
    block_ids = jnp.asarray(ids.reshape(-1))                # flat 1D -> cheap SMEM
    block_cnt = jnp.asarray(np.asarray(counts, np.int32))
    return block_ids, block_cnt


# --------------------------------------------------------------------------
# Kernel 1: feature transform  T = X @ W   (bf16 MXU inputs, f32 accumulate)
# --------------------------------------------------------------------------
def feature_transform_kernel(x_ref, w_ref, o_ref):
    o_ref[...] = jnp.dot(
        x_ref[...], w_ref[...], preferred_element_type=jnp.float32
    ).astype(o_ref.dtype)


def feature_transform(x, w, *, tm):
    n, f = x.shape
    h = w.shape[1]
    flops = 2 * n * f * h
    bytes_accessed = x.size * 2 + w.size * 2 + n * h * 2
    return pl.pallas_call(
        feature_transform_kernel,
        out_shape=jax.ShapeDtypeStruct((n, h), jnp.bfloat16),
        grid_spec=pltpu.PrefetchScalarGridSpec(
            num_scalar_prefetch=0,
            grid=(n // tm,),
            in_specs=[
                pl.BlockSpec((tm, f), lambda i: (i, 0)),   # node-row tile of X
                pl.BlockSpec((f, h), lambda i: (0, 0)),    # whole (small) weight
            ],
            out_specs=pl.BlockSpec((tm, h), lambda i: (i, 0)),
        ),
        compiler_params=pltpu.CompilerParams(
            dimension_semantics=("parallel",),
            vmem_limit_bytes=VMEM_LIMIT,
        ),
        cost_estimate=pl.CostEstimate(
            flops=flops, transcendentals=0, bytes_accessed=bytes_accessed
        ),
    )(x, w)


# --------------------------------------------------------------------------
# Kernel 2 (layer 1, fused): T2 = relu(A_hat @ T1 + b1) @ W2
# Block-sparse over A_hat's column blocks; bias folded into acc init; the
# layer-2 feature transform is fused into the finalize (no HBM trip for H1).
# --------------------------------------------------------------------------
def propagate_relu_w2_kernel(ids_ref, cnt_ref, a_ref, t_ref, b_ref, w2_ref,
                             o_ref, acc_ref):
    i = pl.program_id(0)
    k = pl.program_id(1)

    @pl.when(k == 0)
    def _():
        # bias folded into the accumulator init
        acc_ref[...] = jnp.zeros_like(acc_ref) + b_ref[...].astype(jnp.float32)

    @pl.when(k < cnt_ref[i])          # skip padded (all-zero) column blocks
    def _():
        acc_ref[...] += jnp.dot(
            a_ref[...], t_ref[...], preferred_element_type=jnp.float32
        )

    @pl.when(k == pl.num_programs(1) - 1)
    def _():
        h1 = jnp.maximum(acc_ref[...], 0.0).astype(jnp.bfloat16)
        # TODO(synk): F.dropout(x, training=self.training) is identity in eval
        # mode; training-mode stochastic dropout (pltpu.prng_*) omitted.
        o_ref[...] = jnp.dot(
            h1, w2_ref[...], preferred_element_type=jnp.float32
        ).astype(o_ref.dtype)


def propagate_fused_relu_w2(block_ids, block_cnt, a_hat, t, bias, w2, *, tm, tk):
    n_pad = a_hat.shape[0]
    h = t.shape[1]
    c = w2.shape[1]
    nrt = block_cnt.shape[0]
    nb = block_ids.shape[0] // nrt      # max nonzero column blocks per row tile

    flops = 2 * nrt * nb * tm * tk * h + 2 * n_pad * h * c
    bytes_accessed = (nrt * nb * (tm * tk + tk * h) * 2
                      + bias.size * 2 + w2.size * 2 + n_pad * c * 2)

    return pl.pallas_call(
        propagate_relu_w2_kernel,
        out_shape=jax.ShapeDtypeStruct((n_pad, c), jnp.bfloat16),
        grid_spec=pltpu.PrefetchScalarGridSpec(
            num_scalar_prefetch=2,
            grid=(nrt, nb),
            in_specs=[
                # A_hat tile: data-dependent column block via scalar prefetch
                pl.BlockSpec((tm, tk), lambda i, k, ids, cnt: (i, ids[i * nb + k])),
                # matching row block of the transformed features
                pl.BlockSpec((tk, h), lambda i, k, ids, cnt: (ids[i * nb + k], 0)),
                pl.BlockSpec((1, h), lambda i, k, ids, cnt: (0, 0)),   # bias (resident)
                pl.BlockSpec((h, c), lambda i, k, ids, cnt: (0, 0)),   # W2  (resident)
            ],
            out_specs=pl.BlockSpec((tm, c), lambda i, k, ids, cnt: (i, 0)),
            scratch_shapes=[pltpu.VMEM((tm, h), jnp.float32)],
        ),
        compiler_params=pltpu.CompilerParams(
            dimension_semantics=("parallel", "arbitrary"),
            vmem_limit_bytes=VMEM_LIMIT,
        ),
        cost_estimate=pl.CostEstimate(
            flops=flops, transcendentals=0, bytes_accessed=bytes_accessed
        ),
    )(block_ids, block_cnt, a_hat, t, bias, w2)


# --------------------------------------------------------------------------
# Kernel 3 (layer 2): out = log_softmax(A_hat @ T2 + b2), padded class columns
# masked in f32 before max/sum.
# --------------------------------------------------------------------------
def propagate_logsoftmax_kernel(ids_ref, cnt_ref, a_ref, t_ref, b_ref,
                                o_ref, acc_ref, *, valid_cols):
    i = pl.program_id(0)
    k = pl.program_id(1)

    @pl.when(k == 0)
    def _():
        acc_ref[...] = jnp.zeros_like(acc_ref) + b_ref[...].astype(jnp.float32)

    @pl.when(k < cnt_ref[i])
    def _():
        acc_ref[...] += jnp.dot(
            a_ref[...], t_ref[...], preferred_element_type=jnp.float32
        )

    @pl.when(k == pl.num_programs(1) - 1)
    def _():
        z = acc_ref[...]                                   # f32
        col = lax.broadcasted_iota(jnp.int32, z.shape, 1)
        z = jnp.where(col < valid_cols, z, -1e30)          # mask padded classes (f32-safe)
        m = jnp.max(z, axis=1, keepdims=True)
        shifted = z - m
        lse = jnp.log(jnp.sum(jnp.exp(shifted), axis=1, keepdims=True))
        o_ref[...] = (shifted - lse).astype(o_ref.dtype)


def propagate_logsoftmax(block_ids, block_cnt, a_hat, t, bias, *, valid_cols, tm, tk):
    n_pad = a_hat.shape[0]
    c = t.shape[1]
    nrt = block_cnt.shape[0]
    nb = block_ids.shape[0] // nrt

    flops = 2 * nrt * nb * tm * tk * c
    bytes_accessed = (nrt * nb * (tm * tk + tk * c) * 2
                      + bias.size * 2 + n_pad * c * 4)
    kernel = functools.partial(propagate_logsoftmax_kernel, valid_cols=valid_cols)

    return pl.pallas_call(
        kernel,
        out_shape=jax.ShapeDtypeStruct((n_pad, c), jnp.float32),
        grid_spec=pltpu.PrefetchScalarGridSpec(
            num_scalar_prefetch=2,
            grid=(nrt, nb),
            in_specs=[
                pl.BlockSpec((tm, tk), lambda i, k, ids, cnt: (i, ids[i * nb + k])),
                pl.BlockSpec((tk, c), lambda i, k, ids, cnt: (ids[i * nb + k], 0)),
                pl.BlockSpec((1, c), lambda i, k, ids, cnt: (0, 0)),
            ],
            out_specs=pl.BlockSpec((tm, c), lambda i, k, ids, cnt: (i, 0)),
            scratch_shapes=[pltpu.VMEM((tm, c), jnp.float32)],
        ),
        compiler_params=pltpu.CompilerParams(
            dimension_semantics=("parallel", "arbitrary"),
            vmem_limit_bytes=VMEM_LIMIT,
        ),
        cost_estimate=pl.CostEstimate(
            flops=flops, transcendentals=n_pad * c, bytes_accessed=bytes_accessed
        ),
    )(block_ids, block_cnt, a_hat, t, bias)


# --------------------------------------------------------------------------
# Full forward:  log_softmax(A @ relu(A @ X @ W1 + b1) @ W2 + b2)
# --------------------------------------------------------------------------
@functools.partial(jax.jit, static_argnames=("num_classes", "tm", "tk"))
def _gcn_forward_padded(block_ids, block_cnt, a_p, x_p, w1_p, b1_p, w2_p, b2_p,
                        *, num_classes, tm, tk):
    t1 = feature_transform(x_p, w1_p, tm=tm)                           # X @ W1
    t2 = propagate_fused_relu_w2(block_ids, block_cnt, a_p, t1, b1_p, w2_p,
                                 tm=tm, tk=tk)                          # relu(A@T1+b1) @ W2
    out = propagate_logsoftmax(block_ids, block_cnt, a_p, t2, b2_p,
                               valid_cols=num_classes, tm=tm, tk=tk)    # logsm(A@T2+b2)
    return out


def gcn_forward(a_hat, x, w1, b1, w2, b2, *, tm=TM, tk=TK):
    assert tm == tk, "block-sparse A uses square (tm x tk) blocks here"
    n, f_in = x.shape
    hidden = w1.shape[1]
    num_classes = w2.shape[1]

    # Node dim padded from the *actual* tm in use; even number of row tiles so
    # v7x's two TensorCores get balanced work (near-neutral on v5e/v6e).
    n_pad = _round_up(n, tm)
    if (n_pad // tm) % 2:
        n_pad += tm
    f_pad = _round_up(f_in, LANE)          # lane-aligned contraction dim
    h_pad = _round_up(hidden, LANE)
    c_pad = _round_up(num_classes, LANE)

    # Host-side padding + block-sparsity extraction (once; a_hat is concrete).
    a_np = np.zeros((n_pad, n_pad), np.float32)
    a_np[:n, :n] = np.asarray(a_hat, np.float32)
    block_ids, block_cnt = build_block_sparsity(a_np, tm, tk)

    # bf16 MXU inputs + lane-dense (128-padded) feature/hidden/class dims.
    a_p = jnp.asarray(a_np).astype(jnp.bfloat16)
    x_p = _pad2d(jnp.asarray(x, jnp.float32), n_pad, f_pad).astype(jnp.bfloat16)
    w1_p = _pad2d(w1, f_pad, h_pad).astype(jnp.bfloat16)
    b1_p = _pad2d(b1, 1, h_pad).astype(jnp.bfloat16)
    w2_p = _pad2d(w2, h_pad, c_pad).astype(jnp.bfloat16)
    b2_p = _pad2d(b2, 1, c_pad).astype(jnp.bfloat16)

    out = _gcn_forward_padded(block_ids, block_cnt, a_p, x_p, w1_p, b1_p, w2_p,
                              b2_p, num_classes=num_classes, tm=tm, tk=tk)
    return out[:n, :num_classes]


def build_normalized_adjacency(edge_index, edge_weight, num_nodes):
    """Dense D^{-1/2} (A + I) D^{-1/2}, matching GCNConv(normalize=True)."""
    src, dst = edge_index
    a = jnp.zeros((num_nodes, num_nodes), jnp.float32)
    a = a.at[dst, src].add(edge_weight)                    # messages src -> dst
    a = a + jnp.eye(num_nodes, dtype=jnp.float32)          # self loops
    deg = jnp.sum(a, axis=1)
    d_inv_sqrt = jnp.where(deg > 0, 1.0 / jnp.sqrt(deg), 0.0)
    return d_inv_sqrt[:, None] * a * d_inv_sqrt[None, :]


def gcn_reference(a_hat, x, w1, b1, w2, b2):
    """Pure-JAX f32 reference of the same forward pass."""
    h = jnp.maximum(a_hat @ (x @ w1) + b1, 0.0)
    z = a_hat @ (h @ w2) + b2
    return jax.nn.log_softmax(z, axis=1)


if __name__ == "__main__":
    # Small synthetic "Planetoid-like" problem (ring graph + a hub node so the
    # 256x256 block structure is genuinely sparse and variable per row tile).
    N = 1024         # num nodes
    F_IN = 64        # dataset.num_features (small stand-in)
    HIDDEN = 16      # conv1 out_channels
    C = 7            # dataset.num_classes (Cora-like)

    key = jax.random.PRNGKey(0)
    kx, kw1, kw2 = jax.random.split(key, 3)

    # Node features (row-normalized, like T.NormalizeFeatures()).
    x = jax.random.uniform(kx, (N, F_IN), jnp.float32)
    x = x / jnp.clip(jnp.sum(x, axis=1, keepdims=True), 1e-12)

    # Deterministic ring graph + hub edges from node 0 (all bidirectional).
    idx = jnp.arange(N)
    ring_src = jnp.concatenate([idx, (idx + 1) % N])
    ring_dst = jnp.concatenate([(idx + 1) % N, idx])
    hubs = jnp.array([100, 300, 500, 700, 900], jnp.int32)
    src = jnp.concatenate([ring_src, jnp.zeros_like(hubs), hubs])
    dst = jnp.concatenate([ring_dst, hubs, jnp.zeros_like(hubs)])
    edge_index = jnp.stack([src, dst])
    edge_weight = jnp.ones((edge_index.shape[1],), jnp.float32)

    a_hat = build_normalized_adjacency(edge_index, edge_weight, N)

    # Deterministic glorot-style parameter init (GCNConv weight: (in, out)).
    def glorot(k, shape):
        limit = jnp.sqrt(6.0 / (shape[0] + shape[1]))
        return jax.random.uniform(k, shape, jnp.float32, -limit, limit)

    w1 = glorot(kw1, (F_IN, HIDDEN))
    b1 = jnp.zeros((1, HIDDEN), jnp.float32)
    w2 = glorot(kw2, (HIDDEN, C))
    b2 = jnp.zeros((1, C), jnp.float32)

    out = gcn_forward(a_hat, x, w1, b1, w2, b2)
    out = jax.block_until_ready(out)

    # Correctness: compare against f32 pure-JAX reference (bf16 MXU inputs ->
    # small, documented deviation) and check log_softmax row normalization.
    ref = gcn_reference(a_hat, x, w1, b1, w2, b2)
    row_sums = jnp.sum(jnp.exp(out), axis=1)

    assert out.shape == (N, C)
    assert bool(jnp.all(jnp.isfinite(out)))
    assert bool(jnp.all(jnp.abs(row_sums - 1.0) < 1e-3))
    assert float(jnp.max(jnp.abs(out - ref))) < 2e-2

    print("KERNEL_OK")
</pallas_src>

<mosaic_0001>
module attributes {stable_mosaic.version = 11 : i64} {
  func.func @propagate_logsoftmax_kernel(%arg0: i32, %arg1: i32, %arg2: memref<16xi32, #tpu.memory_space<smem>>, %arg3: memref<4xi32, #tpu.memory_space<smem>>, %arg4: memref<256x256xbf16, #tpu.memory_space<vmem>>, %arg5: memref<256x128xbf16, #tpu.memory_space<vmem>>, %arg6: memref<1x128xbf16, #tpu.memory_space<vmem>>, %arg7: memref<256x128xf32, #tpu.memory_space<vmem>>, %arg8: memref<256x128xf32, #tpu.memory_space<vmem>>) attributes {dimension_semantics = [#tpu.dimension_semantics<parallel>, #tpu.dimension_semantics<arbitrary>], iteration_bounds = array<i64: 4, 4>, scalar_prefetch = 2 : i64, scratch_operands = 1 : i64, tpu.core_type = #tpu.core_type<tc>, window_params = [{transform_indices = @transform_0, window_bounds = array<i64: 256, 256>}, {transform_indices = @transform_1, window_bounds = array<i64: 256, 128>}, {pipeline_mode = #tpu.pipeline_mode<synchronous>, transform_indices = @transform_2, window_bounds = array<i64: 1, 128>}, {transform_indices = @transform_3, window_bounds = array<i64: 256, 128>}]} {
    %c0_i32 = arith.constant 0 : i32
    %0 = arith.cmpi eq, %arg1, %c0_i32 : i32
    %1 = arith.extui %0 : i1 to i32
    %c0_i32_0 = arith.constant 0 : i32
    %2 = arith.cmpi ne, %1, %c0_i32_0 : i32
    scf.if %2 {
      %cst = arith.constant 0.000000e+00 : f32
      %11 = vector.broadcast %cst : f32 to vector<256x128xf32>
      %c0 = arith.constant 0 : index
      %c0_3 = arith.constant 0 : index
      %12 = vector.load %arg6[%c0, %c0_3] : memref<1x128xbf16, #tpu.memory_space<vmem>>, vector<1x128xbf16>
      %13 = arith.extf %12 : vector<1x128xbf16> to vector<1x128xf32>
      %14 = vector.broadcast %13 : vector<1x128xf32> to vector<256x128xf32>
      %15 = arith.addf %11, %14 : vector<256x128xf32>
      %c0_4 = arith.constant 0 : index
      %c0_5 = arith.constant 0 : index
      %16 = vector.load %arg8[%c0_4, %c0_5] : memref<256x128xf32, #tpu.memory_space<vmem>>, vector<256x128xf32>
      tpu.vector_store %arg8[%c0_4, %c0_5], %15 {strides = array<i32>} : memref<256x128xf32, #tpu.memory_space<vmem>>, vector<256x128xf32>,
    } else {
    }
    %3 = arith.index_cast %arg0 : i32 to index
    %4 = memref.load %arg3[%3] : memref<4xi32, #tpu.memory_space<smem>>
    %5 = arith.cmpi slt, %arg1, %4 : i32
    %6 = arith.extui %5 : i1 to i32
    %c0_i32_1 = arith.constant 0 : i32
    %7 = arith.cmpi ne, %6, %c0_i32_1 : i32
    scf.if %7 {
      %c0 = arith.constant 0 : index
      %c0_3 = arith.constant 0 : index
      %11 = vector.load %arg8[%c0, %c0_3] : memref<256x128xf32, #tpu.memory_space<vmem>>, vector<256x128xf32>
      %c0_4 = arith.constant 0 : index
      %c0_5 = arith.constant 0 : index
      %12 = vector.load %arg4[%c0_4, %c0_5] : memref<256x256xbf16, #tpu.memory_space<vmem>>, vector<256x256xbf16>
      %c0_6 = arith.constant 0 : index
      %c0_7 = arith.constant 0 : index
      %13 = vector.load %arg5[%c0_6, %c0_7] : memref<256x128xbf16, #tpu.memory_space<vmem>>, vector<256x128xbf16>
      %cst = arith.constant dense<0.000000e+00> : vector<256x128xf32>
      %14 = tpu.matmul %12, %13, %cst {dimension_numbers = #tpu.dot_dimension_numbers<[1], [0], [0], [1], [0, 0, 1, 1], [], []>} : vector<256x256xbf16>, vector<256x128xbf16>, vector<256x128xf32> -> vector<256x128xf32>
      %15 = arith.addf %11, %14 : vector<256x128xf32>
      %c0_8 = arith.constant 0 : index
      %c0_9 = arith.constant 0 : index
      %16 = vector.load %arg8[%c0_8, %c0_9] : memref<256x128xf32, #tpu.memory_space<vmem>>, vector<256x128xf32>
      tpu.vector_store %arg8[%c0_8, %c0_9], %15 {strides = array<i32>} : memref<256x128xf32, #tpu.memory_space<vmem>>, vector<256x128xf32>,
    } else {
    }
    %c3_i32 = arith.constant 3 : i32
    %8 = arith.cmpi eq, %arg1, %c3_i32 : i32
    %9 = arith.extui %8 : i1 to i32
    %c0_i32_2 = arith.constant 0 : i32
    %10 = arith.cmpi ne, %9, %c0_i32_2 : i32
    scf.if %10 {
      %c0 = arith.constant 0 : index
      %c0_3 = arith.constant 0 : index
      %11 = vector.load %arg8[%c0, %c0_3] : memref<256x128xf32, #tpu.memory_space<vmem>>, vector<256x128xf32>
      %12 = tpu.iota {dimensions = array<i32: 1>} : vector<256x128xi32>
      %c7_i32 = arith.constant 7 : i32
      %13 = vector.broadcast %c7_i32 : i32 to vector<256x128xi32>
      %14 = arith.cmpi slt, %12, %13 : vector<256x128xi32>
      %cst = arith.constant -1.000000e+30 : f32
      %15 = vector.broadcast %cst : f32 to vector<256x128xf32>
      %16 = arith.select %14, %11, %15 : vector<256x128xi1>, vector<256x128xf32>
      %cst_4 = arith.constant dense<0xFF800000> : vector<256xf32>
      %17 = vector.multi_reduction <maximumf>, %16, %cst_4 [1] : vector<256x128xf32> to vector<256xf32>
      %18 = vector.shape_cast %17 : vector<256xf32> to vector<256x1xf32>
      %19 = vector.broadcast %18 : vector<256x1xf32> to vector<256x128xf32>
      %20 = arith.subf %16, %19 : vector<256x128xf32>
      %21 = math.exp %20 : vector<256x128xf32>
      %cst_5 = arith.constant dense<0.000000e+00> : vector<256xf32>
      %22 = vector.multi_reduction <add>, %21, %cst_5 [1] : vector<256x128xf32> to vector<256xf32>
      %23 = vector.shape_cast %22 : vector<256xf32> to vector<256x1xf32>
      %24 = math.log %23 : vector<256x1xf32>
      %25 = vector.broadcast %24 : vector<256x1xf32> to vector<256x128xf32>
      %26 = arith.subf %20, %25 : vector<256x128xf32>
      %c0_6 = arith.constant 0 : index
      %c0_7 = arith.constant 0 : index
      %27 = vector.load %arg7[%c0_6, %c0_7] : memref<256x128xf32, #tpu.memory_space<vmem>>, vector<256x128xf32>
      tpu.vector_store %arg7[%c0_6, %c0_7], %26 {strides = array<i32>} : memref<256x128xf32, #tpu.memory_space<vmem>>, vector<256x128xf32>,
    } else {
    }
    return
  }
  func.func @transform_0(%arg0: i32, %arg1: i32, %arg2: memref<16xi32, #tpu.memory_space<smem>>, %arg3: memref<4xi32, #tpu.memory_space<smem>>) -> (i32, i32) {
    %c4_i32 = arith.constant 4 : i32
    %0 = arith.muli %arg0, %c4_i32 : i32
    %1 = arith.addi %0, %arg1 : i32
    %2 = arith.index_cast %1 : i32 to index
    %3 = memref.load %arg2[%2] : memref<16xi32, #tpu.memory_space<smem>>
    %c0_i32 = arith.constant 0 : i32
    return %arg0, %3 : i32, i32
  }
  func.func @transform_1(%arg0: i32, %arg1: i32, %arg2: memref<16xi32, #tpu.memory_space<smem>>, %arg3: memref<4xi32, #tpu.memory_space<smem>>) -> (i32, i32) {
    %c4_i32 = arith.constant 4 : i32
    %0 = arith.muli %arg0, %c4_i32 : i32
    %1 = arith.addi %0, %arg1 : i32
    %2 = arith.index_cast %1 : i32 to index
    %3 = memref.load %arg2[%2] : memref<16xi32, #tpu.memory_space<smem>>
    %c0_i32 = arith.constant 0 : i32
    %c0_i32_0 = arith.constant 0 : i32
    return %3, %c0_i32 : i32, i32
  }
  func.func @transform_2(%arg0: i32, %arg1: i32, %arg2: memref<16xi32, #tpu.memory_space<smem>>, %arg3: memref<4xi32, #tpu.memory_space<smem>>) -> (i32, i32) {
    %c0_i32 = arith.constant 0 : i32
    %c0_i32_0 = arith.constant 0 : i32
    %c0_i32_1 = arith.constant 0 : i32
    return %c0_i32, %c0_i32_0 : i32, i32
  }
  func.func @transform_3(%arg0: i32, %arg1: i32, %arg2: memref<16xi32, #tpu.memory_space<smem>>, %arg3: memref<4xi32, #tpu.memory_space<smem>>) -> (i32, i32) {
    %c0_i32 = arith.constant 0 : i32
    %c0_i32_0 = arith.constant 0 : i32
    return %arg0, %c0_i32 : i32, i32
  }
}

module attributes {stable_mosaic.version = 11 : i64} {
  func.func @feature_transform_kernel(%arg0: i32, %arg1: memref<256x128xbf16, #tpu.memory_space<vmem>>, %arg2: memref<128x128xbf16, #tpu.memory_space<vmem>>, %arg3: memref<256x128xbf16, #tpu.memory_space<vmem>>) attributes {dimension_semantics = [#tpu.dimension_semantics<parallel>], iteration_bounds = array<i64: 4>, scalar_prefetch = 0 : i64, scratch_operands = 0 : i64, tpu.core_type = #tpu.core_type<tc>, window_params = [{transform_indices = @transform_0, window_bounds = array<i64: 256, 128>}, {pipeline_mode = #tpu.pipeline_mode<synchronous>, transform_indices = @transform_1, window_bounds = array<i64: 128, 128>}, {transform_indices = @transform_2, window_bounds = array<i64: 256, 128>}]} {
    %c0 = arith.constant 0 : index
    %c0_0 = arith.constant 0 : index
    %0 = vector.load %arg1[%c0, %c0_0] : memref<256x128xbf16, #tpu.memory_space<vmem>>, vector<256x128xbf16>
    %c0_1 = arith.constant 0 : index
    %c0_2 = arith.constant 0 : index
    %1 = vector.load %arg2[%c0_1, %c0_2] : memref<128x128xbf16, #tpu.memory_space<vmem>>, vector<128x128xbf16>
    %cst = arith.constant dense<0.000000e+00> : vector<256x128xf32>
    %2 = tpu.matmul %0, %1, %cst {dimension_numbers = #tpu.dot_dimension_numbers<[1], [0], [0], [1], [0, 0, 1, 1], [], []>} : vector<256x128xbf16>, vector<128x128xbf16>, vector<256x128xf32> -> vector<256x128xf32>
    %3 = arith.truncf %2 : vector<256x128xf32> to vector<256x128xbf16>
    %c0_3 = arith.constant 0 : index
    %c0_4 = arith.constant 0 : index
    %4 = vector.load %arg3[%c0_3, %c0_4] : memref<256x128xbf16, #tpu.memory_space<vmem>>, vector<256x128xbf16>
    tpu.vector_store %arg3[%c0_3, %c0_4], %3 {strides = array<i32>} : memref<256x128xbf16, #tpu.memory_space<vmem>>, vector<256x128xbf16>,
    return
  }
  func.func @transform_0(%arg0: i32) -> (i32, i32) {
    %c0_i32 = arith.constant 0 : i32
    %c0_i32_0 = arith.constant 0 : i32
    return %arg0, %c0_i32 : i32, i32
  }
  func.func @transform_1(%arg0: i32) -> (i32, i32) {
    %c0_i32 = arith.constant 0 : i32
    %c0_i32_0 = arith.constant 0 : i32
    %c0_i32_1 = arith.constant 0 : i32
    return %c0_i32, %c0_i32_0 : i32, i32
  }
  func.func @transform_2(%arg0: i32) -> (i32, i32) {
    %c0_i32 = arith.constant 0 : i32
    %c0_i32_0 = arith.constant 0 : i32
    return %arg0, %c0_i32 : i32, i32
  }
}

module attributes {stable_mosaic.version = 11 : i64} {
  func.func @propagate_relu_w2_kernel(%arg0: i32, %arg1: i32, %arg2: memref<16xi32, #tpu.memory_space<smem>>, %arg3: memref<4xi32, #tpu.memory_space<smem>>, %arg4: memref<256x256xbf16, #tpu.memory_space<vmem>>, %arg5: memref<256x128xbf16, #tpu.memory_space<vmem>>, %arg6: memref<1x128xbf16, #tpu.memory_space<vmem>>, %arg7: memref<128x128xbf16, #tpu.memory_space<vmem>>, %arg8: memref<256x128xbf16, #tpu.memory_space<vmem>>, %arg9: memref<256x128xf32, #tpu.memory_space<vmem>>) attributes {dimension_semantics = [#tpu.dimension_semantics<parallel>, #tpu.dimension_semantics<arbitrary>], iteration_bounds = array<i64: 4, 4>, scalar_prefetch = 2 : i64, scratch_operands = 1 : i64, tpu.core_type = #tpu.core_type<tc>, window_params = [{transform_indices = @transform_0, window_bounds = array<i64: 256, 256>}, {transform_indices = @transform_1, window_bounds = array<i64: 256, 128>}, {pipeline_mode = #tpu.pipeline_mode<synchronous>, transform_indices = @transform_2, window_bounds = array<i64: 1, 128>}, {pipeline_mode = #tpu.pipeline_mode<synchronous>, transform_indices = @transform_3, window_bounds = array<i64: 128, 128>}, {transform_indices = @transform_4, window_bounds = array<i64: 256, 128>}]} {
    %c0_i32 = arith.constant 0 : i32
    %0 = arith.cmpi eq, %arg1, %c0_i32 : i32
    %1 = arith.extui %0 : i1 to i32
    %c0_i32_0 = arith.constant 0 : i32
    %2 = arith.cmpi ne, %1, %c0_i32_0 : i32
    scf.if %2 {
      %cst = arith.constant 0.000000e+00 : f32
      %11 = vector.broadcast %cst : f32 to vector<256x128xf32>
      %c0 = arith.constant 0 : index
      %c0_3 = arith.constant 0 : index
      %12 = vector.load %arg6[%c0, %c0_3] : memref<1x128xbf16, #tpu.memory_space<vmem>>, vector<1x128xbf16>
      %13 = arith.extf %12 : vector<1x128xbf16> to vector<1x128xf32>
      %14 = vector.broadcast %13 : vector<1x128xf32> to vector<256x128xf32>
      %15 = arith.addf %11, %14 : vector<256x128xf32>
      %c0_4 = arith.constant 0 : index
      %c0_5 = arith.constant 0 : index
      %16 = vector.load %arg9[%c0_4, %c0_5] : memref<256x128xf32, #tpu.memory_space<vmem>>, vector<256x128xf32>
      tpu.vector_store %arg9[%c0_4, %c0_5], %15 {strides = array<i32>} : memref<256x128xf32, #tpu.memory_space<vmem>>, vector<256x128xf32>,
    } else {
    }
    %3 = arith.index_cast %arg0 : i32 to index
    %4 = memref.load %arg3[%3] : memref<4xi32, #tpu.memory_space<smem>>
    %5 = arith.cmpi slt, %arg1, %4 : i32
    %6 = arith.extui %5 : i1 to i32
    %c0_i32_1 = arith.constant 0 : i32
    %7 = arith.cmpi ne, %6, %c0_i32_1 : i32
    scf.if %7 {
      %c0 = arith.constant 0 : index
      %c0_3 = arith.constant 0 : index
      %11 = vector.load %arg9[%c0, %c0_3] : memref<256x128xf32, #tpu.memory_space<vmem>>, vector<256x128xf32>
      %c0_4 = arith.constant 0 : index
      %c0_5 = arith.constant 0 : index
      %12 = vector.load %arg4[%c0_4, %c0_5] : memref<256x256xbf16, #tpu.memory_space<vmem>>, vector<256x256xbf16>
      %c0_6 = arith.constant 0 : index
      %c0_7 = arith.constant 0 : index
      %13 = vector.load %arg5[%c0_6, %c0_7] : memref<256x128xbf16, #tpu.memory_space<vmem>>, vector<256x128xbf16>
      %cst = arith.constant dense<0.000000e+00> : vector<256x128xf32>
      %14 = tpu.matmul %12, %13, %cst {dimension_numbers = #tpu.dot_dimension_numbers<[1], [0], [0], [1], [0, 0, 1, 1], [], []>} : vector<256x256xbf16>, vector<256x128xbf16>, vector<256x128xf32> -> vector<256x128xf32>
      %15 = arith.addf %11, %14 : vector<256x128xf32>
      %c0_8 = arith.constant 0 : index
      %c0_9 = arith.constant 0 : index
      %16 = vector.load %arg9[%c0_8, %c0_9] : memref<256x128xf32, #tpu.memory_space<vmem>>, vector<256x128xf32>
      tpu.vector_store %arg9[%c0_8, %c0_9], %15 {strides = array<i32>} : memref<256x128xf32, #tpu.memory_space<vmem>>, vector<256x128xf32>,
    } else {
    }
    %c3_i32 = arith.constant 3 : i32
    %8 = arith.cmpi eq, %arg1, %c3_i32 : i32
    %9 = arith.extui %8 : i1 to i32
    %c0_i32_2 = arith.constant 0 : i32
    %10 = arith.cmpi ne, %9, %c0_i32_2 : i32
    scf.if %10 {
      %c0 = arith.constant 0 : index
      %c0_3 = arith.constant 0 : index
      %11 = vector.load %arg9[%c0, %c0_3] : memref<256x128xf32, #tpu.memory_space<vmem>>, vector<256x128xf32>
      %cst = arith.constant 0.000000e+00 : f32
      %12 = vector.broadcast %cst : f32 to vector<256x128xf32>
      %13 = arith.maximumf %11, %12 : vector<256x128xf32>
      %14 = arith.truncf %13 : vector<256x128xf32> to vector<256x128xbf16>
      %c0_4 = arith.constant 0 : index
      %c0_5 = arith.constant 0 : index
      %15 = vector.load %arg7[%c0_4, %c0_5] : memref<128x128xbf16, #tpu.memory_space<vmem>>, vector<128x128xbf16>
      %cst_6 = arith.constant dense<0.000000e+00> : vector<256x128xf32>
      %16 = tpu.matmul %14, %15, %cst_6 {dimension_numbers = #tpu.dot_dimension_numbers<[1], [0], [0], [1], [0, 0, 1, 1], [], []>} : vector<256x128xbf16>, vector<128x128xbf16>, vector<256x128xf32> -> vector<256x128xf32>
      %17 = arith.truncf %16 : vector<256x128xf32> to vector<256x128xbf16>
      %c0_7 = arith.constant 0 : index
      %c0_8 = arith.constant 0 : index
      %18 = vector.load %arg8[%c0_7, %c0_8] : memref<256x128xbf16, #tpu.memory_space<vmem>>, vector<256x128xbf16>
      tpu.vector_store %arg8[%c0_7, %c0_8], %17 {strides = array<i32>} : memref<256x128xbf16, #tpu.memory_space<vmem>>, vector<256x128xbf16>,
    } else {
    }
    return
  }
  func.func @transform_0(%arg0: i32, %arg1: i32, %arg2: memref<16xi32, #tpu.memory_space<smem>>, %arg3: memref<4xi32, #tpu.memory_space<smem>>) -> (i32, i32) {
    %c4_i32 = arith.constant 4 : i32
    %0 = arith.muli %arg0, %c4_i32 : i32
    %1 = arith.addi %0, %arg1 : i32
    %2 = arith.index_cast %1 : i32 to index
    %3 = memref.load %arg2[%2] : memref<16xi32, #tpu.memory_space<smem>>
    %c0_i32 = arith.constant 0 : i32
    return %arg0, %3 : i32, i32
  }
  func.func @transform_1(%arg0: i32, %arg1: i32, %arg2: memref<16xi32, #tpu.memory_space<smem>>, %arg3: memref<4xi32, #tpu.memory_space<smem>>) -> (i32, i32) {
    %c4_i32 = arith.constant 4 : i32
    %0 = arith.muli %arg0, %c4_i32 : i32
    %1 = arith.addi %0, %arg1 : i32
    %2 = arith.index_cast %1 : i32 to index
    %3 = memref.load %arg2[%2] : memref<16xi32, #tpu.memory_space<smem>>
    %c0_i32 = arith.constant 0 : i32
    %c0_i32_0 = arith.constant 0 : i32
    return %3, %c0_i32 : i32, i32
  }
  func.func @transform_2(%arg0: i32, %arg1: i32, %arg2: memref<16xi32, #tpu.memory_space<smem>>, %arg3: memref<4xi32, #tpu.memory_space<smem>>) -> (i32, i32) {
    %c0_i32 = arith.constant 0 : i32
    %c0_i32_0 = arith.constant 0 : i32
    %c0_i32_1 = arith.constant 0 : i32
    return %c0_i32, %c0_i32_0 : i32, i32
  }
  func.func @transform_3(%arg0: i32, %arg1: i32, %arg2: memref<16xi32, #tpu.memory_space<smem>>, %arg3: memref<4xi32, #tpu.memory_space<smem>>) -> (i32, i32) {
    %c0_i32 = arith.constant 0 : i32
    %c0_i32_0 = arith.constant 0 : i32
    %c0_i32_1 = arith.constant 0 : i32
    return %c0_i32, %c0_i32_0 : i32, i32
  }
  func.func @transform_4(%arg0: i32, %arg1: i32, %arg2: memref<16xi32, #tpu.memory_space<smem>>, %arg3: memref<4xi32, #tpu.memory_space<smem>>) -> (i32, i32) {
    %c0_i32 = arith.constant 0 : i32
    %c0_i32_0 = arith.constant 0 : i32
    return %arg0, %c0_i32 : i32, i32
  }
}

</mosaic_0001>

<llo_original>
// kernel: _gcn_forward_padded.3
$region0: #{_gcn_forward_padded.3}
  #allocation0 [shape = 'u32[]', space=smem, size = 0x4, offset = 0x4, fixed_abs, tag = 'smem constant byte address 0x4 - core index']
  #allocation1 [shape = 'u32[144,128]{1,0:T(1,128)}', space=vmem, size = 0x12000, scoped, tag = 'internal scratch']
  %s0 = inlined_call_operand.hbm [shape: bf16[1024,128], index: 0, kind: input, shape index: {}]
  %s1 = inlined_call_operand.hbm [shape: bf16[128,128], index: 1, kind: input, shape index: {}]
  %s2 = inlined_call_operand.vmem [shape: bf16[1024,128], index: 2, kind: output, shape index: {}]
  %s3 = sld [smem:[#allocation0]]
  $region49: #{_gcn_forward_padded.3} parent=0
    _
  %s5 = ssub.s32 1, %s3
  %s6 = scalar_select 0, %s5, %s3
  $region1: #{_gcn_forward_padded.3} parent=0
    #allocation2 [shape = 'u8[131072]{0}', space=vmem, size = 0x20000, scoped, tag = 'input window, operand 0']
    #allocation3 [shape = 's32[2]{0}', space=sflag, size = 0x8, scoped, tag = 'scoped memory for _gcn_forward_padded.3']
    #allocation4 [shape = 'u8[32768]{0}', space=vmem, size = 0x8000, scoped, tag = 'input window, operand 1, single buffered']
    #allocation5 [shape = 's32[1]{0}', space=sflag, size = 0x4, scoped, tag = 'scoped memory for _gcn_forward_padded.3']
    %7 = vsyncpa [#allocation3], 0
    %s8 = scalar_lea.sflag [#allocation3], 1
    %9 = vsyncpa %s8, 0
    %10 = vsyncpa [#allocation5], 0
    loop: start=0, step=1, limit=6
    $region2: #{_gcn_forward_padded.3} parent=1 // loop_pre_header
      _
    $region3: #{_gcn_forward_padded.3} parent=1 // loop_header
      %s12 = sphi 0, %s16
      %p13 = scmp.ge.s32.totalorder %s12, 6
      %s22 = sphi 0, %s24
      %s25 = sphi 0, %s22
      %s26 = sphi 0, %s25
      %s42 = sphi 0, %s26
      %s46 = sphi 0, %s46
      %s48 = sphi 0, %s46
      %s49 = sphi 0, %s48
      %s63 = sphi 0, %s49
      %s69 = sphi 0, %s71
      %s72 = sphi 0, %s69
      %s73 = sphi 0, %s72
      %s89 = sphi 0, %s73
    $region4: #{_gcn_forward_padded.3} parent=1 // loop_header_branch
      %15 = sbr.rel (%p13) target = $region8
    $region5: #{_gcn_forward_padded.3} parent=1 // loop_body
      %s17 = ssub.s32 %s12, 1
      %s18 = ssub.s32 %s12, 2
      %s19 = sadd.s32 %s12, 1
      %s20 = ssub.s32 %s12, %s19
      %p21 = scmp.eq.s32.totalorder %s20, 0
      %s23 = sadd.s32 %s22, 1
      %s24 = scalar_select %p21, %s22, %s23
      %p27 = pneg %p21
      %p28 = scmp.eq.s32.totalorder %s12, 3
      %p29 = por %p27, %p28
      %p30 = scmp.ne.s32.totalorder %s22, %s25
      %p31 = scmp.eq.s32.totalorder %s12, 0
      %p32 = por %p30, %p31
      %p33 = scmp.ne.s32.totalorder %s22, %s25
      %p34 = scmp.eq.s32.totalorder %s17, 3
      %p35 = por %p33, %p34
      %p36 = scmp.ne.s32.totalorder %s25, %s26
      %p37 = scmp.eq.s32.totalorder %s17, 0
      %p38 = por %p36, %p37
      %p39 = scmp.ne.s32.totalorder %s25, %s26
      %p40 = scmp.eq.s32.totalorder %s18, 3
      %p41 = por %p39, %p40
      %p43 = scmp.ne.s32.totalorder %s26, %s42
      %p44 = scmp.eq.s32.totalorder %s18, 0
      %p45 = por %p43, %p44
      %s47 = sadd.s32 %s46, 1
      %p50 = scmp.eq.s32.totalorder %s12, 3
      %p51 = scmp.ne.s32.totalorder %s46, %s48
      %p52 = scmp.eq.s32.totalorder %s12, 0
      %p53 = por %p51, %p52
      %p54 = scmp.ne.s32.totalorder %s46, %s48
      %p55 = scmp.eq.s32.totalorder %s17, 3
      %p56 = por %p54, %p55
      %p57 = scmp.ne.s32.totalorder %s48, %s49
      %p58 = scmp.eq.s32.totalorder %s17, 0
      %p59 = por %p57, %p58
      %p60 = scmp.ne.s32.totalorder %s48, %s49
      %p61 = scmp.eq.s32.totalorder %s18, 3
      %p62 = por %p60, %p61
      %p64 = scmp.ne.s32.totalorder %s49, %s63
      %p65 = scmp.eq.s32.totalorder %s18, 0
      %p66 = por %p64, %p65
      %s67 = ssub.s32 %s12, %s19
      %p68 = scmp.eq.s32.totalorder %s67, 0
      %s70 = sadd.s32 %s69, 1
      %s71 = scalar_select %p68, %s69, %s70
      %p74 = pneg %p68
      %p75 = scmp.eq.s32.totalorder %s12, 3
      %p76 = por %p74, %p75
      %p77 = scmp.ne.s32.totalorder %s69, %s72
      %p78 = scmp.eq.s32.totalorder %s12, 0
      %p79 = por %p77, %p78
      %p80 = scmp.ne.s32.totalorder %s69, %s72
      %p81 = scmp.eq.s32.totalorder %s17, 3
      %p82 = por %p80, %p81
      %p83 = scmp.ne.s32.totalorder %s72, %s73
      %p84 = scmp.eq.s32.totalorder %s17, 0
      %p85 = por %p83, %p84
      %p86 = scmp.ne.s32.totalorder %s72, %s73
      %p87 = scmp.eq.s32.totalorder %s18, 3
      %p88 = por %p86, %p87
      %p90 = scmp.ne.s32.totalorder %s73, %s89
      %p91 = scmp.eq.s32.totalorder %s18, 0
      %p92 = por %p90, %p91
      %p93 = scmp.le.s32.totalorder 1, %s12
      %p94 = scmp.lt.s32.totalorder %s12, 5
      %p95 = pnand %p93, %p94
      %p96 = pneg %p95
      // Predicated region
      $region9: #{_gcn_forward_padded.3} parent=5 // pred_check
        _
      $region10: #{_gcn_forward_padded.3} parent=5 // pred_check_branch
        %98 = sbr.rel (%p95) target = $region12
      $region11: #{_gcn_forward_padded.3} parent=5 // pred_region
        %s99 = ssub.s32 %s12, 1
        // Predicated region
        $region13: #{_gcn_forward_padded.3} parent=11 // pred_check
          %p100 = pneg %p59
        $region14: #{_gcn_forward_padded.3} parent=11 // pred_check_branch
          %102 = sbr.rel (%p100) target = $region16
        $region15: #{_gcn_forward_padded.3} parent=11 // pred_region
          %s104 = ssub.s32 1024, 1024
          %105 = vsyncadd [#allocation5], %s104
          %s106 = sshll.u32 [#allocation4], 4
          %s107 = int_to_ptr.vmem [resolvable:$true] %s106
          %112 = dma.hbm_to_vmem [thread:$0]  %s1, 1024, %s107, [#allocation5], 64, 64, 4
        $region16: #{_gcn_forward_padded.3} parent=11 // pred_fallthru
          _
      $region12: #{_gcn_forward_padded.3} parent=5 // pred_fallthru
        _
      %p113 = scmp.lt.s32.totalorder %s12, 4
      // Predicated region
      $region17: #{_gcn_forward_padded.3} parent=5 // pred_check
        %p114 = pneg %p113
      $region18: #{_gcn_forward_padded.3} parent=5 // pred_check_branch
        %116 = sbr.rel (%p114) target = $region20
      $region19: #{_gcn_forward_padded.3} parent=5 // pred_region
        // Predicated region
        $region21: #{_gcn_forward_padded.3} parent=19 // pred_check
          %p117 = pneg %p32
        $region22: #{_gcn_forward_padded.3} parent=19 // pred_check_branch
          %119 = sbr.rel (%p117) target = $region24
        $region23: #{_gcn_forward_padded.3} parent=19 // pred_region
          %s120 = sand.u32 %s22, 1
          %s121 = scalar_lea.sflag [#allocation3], %s120
          %s122 = sand.u32 %s22, 1
          %s123 = smul.addr %s122, 128
          %s124 = scalar_lea.vmem [#allocation2], %s123
          %s125 = smul.u32 32, %s12
          %s127 = ssub.s32 2048, 2048
          %128 = vsyncadd %s121, %s127
          %s129 = smul.addr %s125, 64
          %s130 = scalar_lea.hbm %s0, %s129
          %s131 = sshll.u32 %s124, 4
          %s132 = int_to_ptr.vmem [resolvable:$true] %s131
          %137 = dma.hbm_to_vmem [thread:$0]  %s130, 2048, %s132, %s121, 64, 64, 4
        $region24: #{_gcn_forward_padded.3} parent=19 // pred_fallthru
          _
      $region20: #{_gcn_forward_padded.3} parent=5 // pred_fallthru
        _
      %p138 = scmp.le.s32.totalorder 1, %s12
      %p139 = scmp.lt.s32.totalorder %s12, 5
      %p140 = pnand %p138, %p139
      %p141 = pneg %p140
      // Predicated region
      $region25: #{_gcn_forward_padded.3} parent=5 // pred_check
        _
      $region26: #{_gcn_forward_padded.3} parent=5 // pred_check_branch
        %143 = sbr.rel (%p140) target = $region28
      $region27: #{_gcn_forward_padded.3} parent=5 // pred_region
        %s144 = ssub.s32 %s12, 1
        %s145 = sand.u32 %s25, 1
        %s146 = scalar_lea.sflag [#allocation3], %s145
        %s147 = sand.u32 %s25, 1
        %s148 = smul.addr %s147, 128
        %s149 = scalar_lea.vmem [#allocation2], %s148
        // Predicated region
        $region29: #{_gcn_forward_padded.3} parent=27 // pred_check
          %p150 = pneg %p38
        $region30: #{_gcn_forward_padded.3} parent=27 // pred_check_branch
          %152 = sbr.rel (%p150) target = $region32
        $region31: #{_gcn_forward_padded.3} parent=27 // pred_region
          %153 = dma.done %s146, 2048
        $region32: #{_gcn_forward_padded.3} parent=27 // pred_fallthru
          _
        // Predicated region
        $region33: #{_gcn_forward_padded.3} parent=27 // pred_check
          %p154 = pneg %p59
        $region34: #{_gcn_forward_padded.3} parent=27 // pred_check_branch
          %156 = sbr.rel (%p154) target = $region36
        $region35: #{_gcn_forward_padded.3} parent=27 // pred_region
          %157 = dma.done [#allocation5], 1024
        $region36: #{_gcn_forward_padded.3} parent=27 // pred_fallthru
          _
        %s158 = sand.u32 %s25, 1
        %s159 = scalar_lea.sflag [#allocation3], %s158
        %s160 = sand.u32 %s25, 1
        %s161 = smul.addr %s160, 128
        %s162 = scalar_lea.vmem [#allocation2], %s161
        %p163 = pneg %p38
        %p164 = pneg %p35
        %p165 = pneg %p59
        %p166 = pneg %p56
        %p167 = pneg %p85
        %p168 = pneg %p82
        %s169 = smul.u32 32, %s17
        %p170 = scmp.lt.s32.totalorder %s169, 127
        %s171 = scalar_select %p170, %s169, 127
        %s172 = smul.addr %s171, 4
        %s173 = scalar_lea.vmem %s2, %s172
        %s174 = smul.u32 32, %s17
        %s175 = smul.u32 32, %s17
        %p176 = scmp.lt.s32.totalorder %s175, 127
        %s177 = scalar_select %p176, %s175, 127
        %s178 = smul.addr %s177, 4
        %s179 = scalar_lea.vmem %s2, %s178
        %s180 = smul.u32 32, %s17
        %v182 = vld [vmem:[%s149] sm:$0xf]
        %v183 = vld [vmem:[%s149 + $0x4] sm:$0xf]
        %v184 = vld [vmem:[%s149 + $0x8] sm:$0xf]
        %v185 = vld [vmem:[%s149 + $0xc] sm:$0xf]
        %v186 = vld [vmem:[%s149 + $0x10] sm:$0xf]
        %v187 = vld [vmem:[%s149 + $0x14] sm:$0xf]
        %v188 = vld [vmem:[%s149 + $0x18] sm:$0xf]
        %v189 = vld [vmem:[%s149 + $0x1c] sm:$0xf]
        %v190 = vld [vmem:[%s149 + $0x20] sm:$0xf]
        %v191 = vld [vmem:[%s149 + $0x24] sm:$0xf]
        %v192 = vld [vmem:[%s149 + $0x28] sm:$0xf]
        %v193 = vld [vmem:[%s149 + $0x2c] sm:$0xf]
        %v194 = vld [vmem:[%s149 + $0x30] sm:$0xf]
        %v195 = vld [vmem:[%s149 + $0x34] sm:$0xf]
        %v196 = vld [vmem:[%s149 + $0x38] sm:$0xf]
        %v197 = vld [vmem:[%s149 + $0x3c] sm:$0xf]
        %v198 = vld [vmem:[%s149 + $0x40] sm:$0xf]
        %v199 = vld [vmem:[%s149 + $0x44] sm:$0xf]
        %v200 = vld [vmem:[%s149 + $0x48] sm:$0xf]
        %v201 = vld [vmem:[%s149 + $0x4c] sm:$0xf]
        %v202 = vld [vmem:[%s149 + $0x50] sm:$0xf]
        %v203 = vld [vmem:[%s149 + $0x54] sm:$0xf]
        %v204 = vld [vmem:[%s149 + $0x58] sm:$0xf]
        %v205 = vld [vmem:[%s149 + $0x5c] sm:$0xf]
        %v206 = vld [vmem:[%s149 + $0x60] sm:$0xf]
        %v207 = vld [vmem:[%s149 + $0x64] sm:$0xf]
        %v208 = vld [vmem:[%s149 + $0x68] sm:$0xf]
        %v209 = vld [vmem:[%s149 + $0x6c] sm:$0xf]
        %v210 = vld [vmem:[%s149 + $0x70] sm:$0xf]
        %v211 = vld [vmem:[%s149 + $0x74] sm:$0xf]
        %v212 = vld [vmem:[%s149 + $0x78] sm:$0xf]
        %v213 = vld [vmem:[%s149 + $0x7c] sm:$0xf]
        %v214 = vld [vmem:[#allocation4] sm:$0xf]
        %v215 = vld [vmem:[#allocation4 + $0x4] sm:$0xf]
        %v216 = vld [vmem:[#allocation4 + $0x8] sm:$0xf]
        %v217 = vld [vmem:[#allocation4 + $0xc] sm:$0xf]
        %v218 = vld [vmem:[#allocation4 + $0x10] sm:$0xf]
        %v219 = vld [vmem:[#allocation4 + $0x14] sm:$0xf]
        %v220 = vld [vmem:[#allocation4 + $0x18] sm:$0xf]
        %v221 = vld [vmem:[#allocation4 + $0x1c] sm:$0xf]
        %v222 = vld [vmem:[#allocation4 + $0x20] sm:$0xf]
        %v223 = vld [vmem:[#allocation4 + $0x24] sm:$0xf]
        %v224 = vld [vmem:[#allocation4 + $0x28] sm:$0xf]
        %v225 = vld [vmem:[#allocation4 + $0x2c] sm:$0xf]
        %v226 = vld [vmem:[#allocation4 + $0x30] sm:$0xf]
        %v227 = vld [vmem:[#allocation4 + $0x34] sm:$0xf]
        %v228 = vld [vmem:[#allocation4 + $0x38] sm:$0xf]
        %v229 = vld [vmem:[#allocation4 + $0x3c] sm:$0xf]
        %v262 = vunpack.c.l.b16 %v182
        %v263 = vunpack.c.l.b16 %v183
        %v264 = vunpack.c.l.b16 %v184
        %v265 = vunpack.c.l.b16 %v185
        %v266 = vunpack.c.l.b16 %v186
        %v267 = vunpack.c.l.b16 %v187
        %v268 = vunpack.c.l.b16 %v188
        %v269 = vunpack.c.l.b16 %v189
        %v270 = vunpack.c.l.b16 %v190
        %v271 = vunpack.c.l.b16 %v191
        %v272 = vunpack.c.l.b16 %v192
        %v273 = vunpack.c.l.b16 %v193
        %v274 = vunpack.c.l.b16 %v194
        %v275 = vunpack.c.l.b16 %v195
        %v276 = vunpack.c.l.b16 %v196
        %v277 = vunpack.c.l.b16 %v197
        %v278 = vunpack.c.l.b16 %v198
        %v279 = vunpack.c.l.b16 %v199
        %v280 = vunpack.c.l.b16 %v200
        %v281 = vunpack.c.l.b16 %v201
        %v282 = vunpack.c.l.b16 %v202
        %v283 = vunpack.c.l.b16 %v203
        %v284 = vunpack.c.l.b16 %v204
        %v285 = vunpack.c.l.b16 %v205
        %v286 = vunpack.c.l.b16 %v206
        %v287 = vunpack.c.l.b16 %v207
        %v288 = vunpack.c.l.b16 %v208
        %v289 = vunpack.c.l.b16 %v209
        %v290 = vunpack.c.l.b16 %v210
        %v291 = vunpack.c.l.b16 %v211
        %v292 = vunpack.c.l.b16 %v212
        %v293 = vunpack.c.l.b16 %v213
        %v294 = vpack.c.b16 %v263, %v262
        %v295 = vpack.c.b16 %v265, %v264
        %v296 = vpack.c.b16 %v267, %v266
        %v297 = vpack.c.b16 %v269, %v268
        %v298 = vpack.c.b16 %v271, %v270
        %v299 = vpack.c.b16 %v273, %v272
        %v300 = vpack.c.b16 %v275, %v274
        %v301 = vpack.c.b16 %v277, %v276
        %v302 = vpack.c.b16 %v279, %v278
        %v303 = vpack.c.b16 %v281, %v280
        %v304 = vpack.c.b16 %v283, %v282
        %v305 = vpack.c.b16 %v285, %v284
        %v306 = vpack.c.b16 %v287, %v286
        %v307 = vpack.c.b16 %v289, %v288
        %v308 = vpack.c.b16 %v291, %v290
        %v309 = vpack.c.b16 %v293, %v292
        %v342 = vunpack.c.l.b16 %v214
        %v343 = vunpack.c.l.b16 %v215
        %v344 = vunpack.c.l.b16 %v216
        %v345 = vunpack.c.l.b16 %v217
        %v346 = vunpack.c.l.b16 %v218
        %v347 = vunpack.c.l.b16 %v219
        %v348 = vunpack.c.l.b16 %v220
        %v349 = vunpack.c.l.b16 %v221
        %v350 = vunpack.c.l.b16 %v222
        %v351 = vunpack.c.l.b16 %v223
        %v352 = vunpack.c.l.b16 %v224
        %v353 = vunpack.c.l.b16 %v225
        %v354 = vunpack.c.l.b16 %v226
        %v355 = vunpack.c.l.b16 %v227
        %v356 = vunpack.c.l.b16 %v228
        %v357 = vunpack.c.l.b16 %v229
        %v358 = vpack.c.b16 %v343, %v342
        %v359 = vpack.c.b16 %v345, %v344
        %v360 = vpack.c.b16 %v347, %v346
        %v361 = vpack.c.b16 %v349, %v348
        %v362 = vpack.c.b16 %v351, %v350
        %v363 = vpack.c.b16 %v353, %v352
        %v364 = vpack.c.b16 %v355, %v354
        %v365 = vpack.c.b16 %v357, %v356
        %374 = vmatprep.subr.bf16.mxu0 0
        %375 = vmatpush1.bf16.msra.mxu0 %v358
        %376 = vmatprep.subr.bf16.mxu0 0
        %377 = vmatpush1.bf16.msra.mxu0 %v359
        %378 = vmatprep.subr.bf16.mxu0 0
        %379 = vmatpush1.bf16.msra.mxu0 %v360
        %380 = vmatprep.subr.bf16.mxu0 0
        %381 = vmatpush1.bf16.msra.mxu0 %v361
        %382 = vmatprep.subr.bf16.mxu0 0
        %383 = vmatpush1.bf16.msra.mxu0 %v362
        %384 = vmatprep.subr.bf16.mxu0 0
        %385 = vmatpush1.bf16.msra.mxu0 %v363
        %386 = vmatprep.subr.bf16.mxu0 0
        %387 = vmatpush1.bf16.msra.mxu0 %v364
        %388 = vmatprep.subr.bf16.mxu0 0
        %389 = vmatpush1.bf16.msra.mxu0 %v365
        %390 = vmatprep.subr.bf16.mxu0 0
        %391 = vmatpush1.bf16.msra.mxu0 0
        %392 = vmatprep.subr.bf16.mxu0 0
        %393 = vmatpush1.bf16.msra.mxu0 0
        %394 = vmatprep.subr.bf16.mxu0 0
        %395 = vmatpush1.bf16.msra.mxu0 0
        %396 = vmatprep.subr.bf16.mxu0 0
        %397 = vmatpush1.bf16.msra.mxu0 0
        %398 = vmatprep.subr.bf16.mxu0 0
        %399 = vmatpush1.bf16.msra.mxu0 0
        %400 = vmatprep.subr.bf16.mxu0 0
        %401 = vmatpush1.bf16.msra.mxu0 0
        %402 = vmatprep.subr.bf16.mxu0 0
        %403 = vmatpush1.bf16.msra.mxu0 0
        %404 = vmatprep.subr.bf16.mxu0 0
        %405 = vmatpush1.bf16.msra.mxu0 0
        %406 = vmatprep.mubr.bf16.mxu0 0
        %407 = vmatmul.mubr.bf16.gmra.mrb[0].mxu0 %v294
        %v408 = vpop.f32.mrb[0].mxu0
        %v409 = vadd.f32 0.0, %v408
        %v410 = vpop.f32.mrb[0].mxu0
        %v411 = vpop.f32.mrb[0].mxu0
        %v412 = vadd.f32 0.0, %v411
        %v413 = vpop.f32.mrb[0].mxu0
        %414 = vmatprep.mubr.bf16.mxu0 0
        %415 = vmatmul.mubr.bf16.gmra.mrb[0].mxu0 %v295
        %v416 = vpop.f32.mrb[0].mxu0
        %v417 = vadd.f32 0.0, %v416
        %v418 = vpop.f32.mrb[0].mxu0
        %v419 = vpop.f32.mrb[0].mxu0
        %v420 = vadd.f32 0.0, %v419
        %v421 = vpop.f32.mrb[0].mxu0
        %422 = vmatprep.mubr.bf16.mxu0 0
        %423 = vmatmul.mubr.bf16.gmra.mrb[0].mxu0 %v296
        %v424 = vpop.f32.mrb[0].mxu0
        %v425 = vadd.f32 0.0, %v424
        %v426 = vpop.f32.mrb[0].mxu0
        %v427 = vpop.f32.mrb[0].mxu0
        %v428 = vadd.f32 0.0, %v427
        %v429 = vpop.f32.mrb[0].mxu0
        %430 = vmatprep.mubr.bf16.mxu0 0
        %431 = vmatmul.mubr.bf16.gmra.mrb[0].mxu0 %v297
        %v432 = vpop.f32.mrb[0].mxu0
        %v433 = vadd.f32 0.0, %v432
        %v434 = vpop.f32.mrb[0].mxu0
        %v435 = vpop.f32.mrb[0].mxu0
        %v436 = vadd.f32 0.0, %v435
        %v437 = vpop.f32.mrb[0].mxu0
        %438 = vmatprep.mubr.bf16.mxu0 0
        %439 = vmatmul.mubr.bf16.gmra.mrb[0].mxu0 %v298
        %v440 = vpop.f32.mrb[0].mxu0
        %v441 = vadd.f32 0.0, %v440
        %v442 = vpop.f32.mrb[0].mxu0
        %v443 = vpop.f32.mrb[0].mxu0
        %v444 = vadd.f32 0.0, %v443
        %v445 = vpop.f32.mrb[0].mxu0
        %446 = vmatprep.mubr.bf16.mxu0 0
        %447 = vmatmul.mubr.bf16.gmra.mrb[0].mxu0 %v299
        %v448 = vpop.f32.mrb[0].mxu0
        %v449 = vadd.f32 0.0, %v448
        %v450 = vpop.f32.mrb[0].mxu0
        %v451 = vpop.f32.mrb[0].mxu0
        %v452 = vadd.f32 0.0, %v451
        %v453 = vpop.f32.mrb[0].mxu0
        %454 = vmatprep.mubr.bf16.mxu0 0
        %455 = vmatmul.mubr.bf16.gmra.mrb[0].mxu0 %v300
        %v456 = vpop.f32.mrb[0].mxu0
        %v457 = vadd.f32 0.0, %v456
        %v458 = vpop.f32.mrb[0].mxu0
        %v459 = vpop.f32.mrb[0].mxu0
        %v460 = vadd.f32 0.0, %v459
        %v461 = vpop.f32.mrb[0].mxu0
        %462 = vmatprep.mubr.bf16.mxu0 0
        %463 = vmatmul.mubr.bf16.gmra.mrb[0].mxu0 %v301
        %v464 = vpop.f32.mrb[0].mxu0
        %v465 = vadd.f32 0.0, %v464
        %v466 = vpop.f32.mrb[0].mxu0
        %v467 = vpop.f32.mrb[0].mxu0
        %v468 = vadd.f32 0.0, %v467
        %v469 = vpop.f32.mrb[0].mxu0
        %470 = vmatprep.mubr.bf16.mxu0 0
        %471 = vmatmul.mubr.bf16.gmra.mrb[0].mxu0 %v302
        %v472 = vpop.f32.mrb[0].mxu0
        %v473 = vadd.f32 0.0, %v472
        %v474 = vpop.f32.mrb[0].mxu0
        %v475 = vpop.f32.mrb[0].mxu0
        %v476 = vadd.f32 0.0, %v475
        %v477 = vpop.f32.mrb[0].mxu0
        %478 = vmatprep.mubr.bf16.mxu0 0
        %479 = vmatmul.mubr.bf16.gmra.mrb[0].mxu0 %v303
        %v480 = vpop.f32.mrb[0].mxu0
        %v481 = vadd.f32 0.0, %v480
        %v482 = vpop.f32.mrb[0].mxu0
        %v483 = vpop.f32.mrb[0].mxu0
        %v484 = vadd.f32 0.0, %v483
        %v485 = vpop.f32.mrb[0].mxu0
        %486 = vmatprep.mubr.bf16.mxu0 0
        %487 = vmatmul.mubr.bf16.gmra.mrb[0].mxu0 %v304
        %v488 = vpop.f32.mrb[0].mxu0
        %v489 = vadd.f32 0.0, %v488
        %v490 = vpop.f32.mrb[0].mxu0
        %v491 = vpop.f32.mrb[0].mxu0
        %v492 = vadd.f32 0.0, %v491
        %v493 = vpop.f32.mrb[0].mxu0
        %494 = vmatprep.mubr.bf16.mxu0 0
        %495 = vmatmul.mubr.bf16.gmra.mrb[0].mxu0 %v305
        %v496 = vpop.f32.mrb[0].mxu0
        %v497 = vadd.f32 0.0, %v496
        %v498 = vpop.f32.mrb[0].mxu0
        %v499 = vpop.f32.mrb[0].mxu0
        %v500 = vadd.f32 0.0, %v499
        %v501 = vpop.f32.mrb[0].mxu0
        %502 = vmatprep.mubr.bf16.mxu0 0
        %503 = vmatmul.mubr.bf16.gmra.mrb[0].mxu0 %v306
        %v504 = vpop.f32.mrb[0].mxu0
        %v505 = vadd.f32 0.0, %v504
        %v506 = vpop.f32.mrb[0].mxu0
        %v507 = vpop.f32.mrb[0].mxu0
        %v508 = vadd.f32 0.0, %v507
        %v509 = vpop.f32.mrb[0].mxu0
        %510 = vmatprep.mubr.bf16.mxu0 0
        %511 = vmatmul.mubr.bf16.gmra.mrb[0].mxu0 %v307
        %v512 = vpop.f32.mrb[0].mxu0
        %v513 = vadd.f32 0.0, %v512
        %v514 = vpop.f32.mrb[0].mxu0
        %v515 = vpop.f32.mrb[0].mxu0
        %v516 = vadd.f32 0.0, %v515
        %v517 = vpop.f32.mrb[0].mxu0
        %518 = vmatprep.mubr.bf16.mxu0 0
        %519 = vmatmul.mubr.bf16.gmra.mrb[0].mxu0 %v308
        %v520 = vpop.f32.mrb[0].mxu0
        %v521 = vadd.f32 0.0, %v520
        %v522 = vpop.f32.mrb[0].mxu0
        %v523 = vpop.f32.mrb[0].mxu0
        %v524 = vadd.f32 0.0, %v523
        %v525 = vpop.f32.mrb[0].mxu0
        %526 = vmatprep.mubr.bf16.mxu0 0
        %527 = vmatmul.mubr.bf16.gmra.mrb[0].mxu0 %v309
        %v528 = vpop.f32.mrb[0].mxu0
        %v529 = vadd.f32 0.0, %v528
        %v530 = vpop.f32.mrb[0].mxu0
        %v531 = vpop.f32.mrb[0].mxu0
        %v532 = vadd.f32 0.0, %v531
        %v533 = vpop.f32.mrb[0].mxu0
        %534 = vdwg.mxu0
        %v535 = vpack.c.bf16 %v412, %v409
        %v536 = vpack.c.bf16 %v420, %v417
        %v537 = vpack.c.bf16 %v428, %v425
        %v538 = vpack.c.bf16 %v436, %v433
        %v539 = vpack.c.bf16 %v444, %v441
        %v540 = vpack.c.bf16 %v452, %v449
        %v541 = vpack.c.bf16 %v460, %v457
        %v542 = vpack.c.bf16 %v468, %v465
        %v543 = vpack.c.bf16 %v476, %v473
        %v544 = vpack.c.bf16 %v484, %v481
        %v545 = vpack.c.bf16 %v492, %v489
        %v546 = vpack.c.bf16 %v500, %v497
        %v547 = vpack.c.bf16 %v508, %v505
        %v548 = vpack.c.bf16 %v516, %v513
        %v549 = vpack.c.bf16 %v524, %v521
        %v550 = vpack.c.bf16 %v532, %v529
        %v567 = vunpack.c.l.b16 %v535
        %v568 = vunpack.c.h.b16 %v535
        %v569 = vunpack.c.l.b16 %v536
        %v570 = vunpack.c.h.b16 %v536
        %v571 = vunpack.c.l.b16 %v537
        %v572 = vunpack.c.h.b16 %v537
        %v573 = vunpack.c.l.b16 %v538
        %v574 = vunpack.c.h.b16 %v538
        %v575 = vunpack.c.l.b16 %v539
        %v576 = vunpack.c.h.b16 %v539
        %v577 = vunpack.c.l.b16 %v540
        %v578 = vunpack.c.h.b16 %v540
        %v579 = vunpack.c.l.b16 %v541
        %v580 = vunpack.c.h.b16 %v541
        %v581 = vunpack.c.l.b16 %v542
        %v582 = vunpack.c.h.b16 %v542
        %v583 = vunpack.c.l.b16 %v543
        %v584 = vunpack.c.h.b16 %v543
        %v585 = vunpack.c.l.b16 %v544
        %v586 = vunpack.c.h.b16 %v544
        %v587 = vunpack.c.l.b16 %v545
        %v588 = vunpack.c.h.b16 %v545
        %v589 = vunpack.c.l.b16 %v546
        %v590 = vunpack.c.h.b16 %v546
        %v591 = vunpack.c.l.b16 %v547
        %v592 = vunpack.c.h.b16 %v547
        %v593 = vunpack.c.l.b16 %v548
        %v594 = vunpack.c.h.b16 %v548
        %v595 = vunpack.c.l.b16 %v549
        %v596 = vunpack.c.h.b16 %v549
        %v597 = vunpack.c.l.b16 %v550
        %v598 = vunpack.c.h.b16 %v550
        %v599 = vpack.c.b16 %v567, %v567
        %v600 = vpack.c.b16 %v568, %v568
        %v601 = vpack.c.b16 %v569, %v569
        %v602 = vpack.c.b16 %v570, %v570
        %v603 = vpack.c.b16 %v571, %v571
        %v604 = vpack.c.b16 %v572, %v572
        %v605 = vpack.c.b16 %v573, %v573
        %v606 = vpack.c.b16 %v574, %v574
        %v607 = vpack.c.b16 %v575, %v575
        %v608 = vpack.c.b16 %v576, %v576
        %v609 = vpack.c.b16 %v577, %v577
        %v610 = vpack.c.b16 %v578, %v578
        %v611 = vpack.c.b16 %v579, %v579
        %v612 = vpack.c.b16 %v580, %v580
        %v613 = vpack.c.b16 %v581, %v581
        %v614 = vpack.c.b16 %v582, %v582
        %v615 = vpack.c.b16 %v583, %v583
        %v616 = vpack.c.b16 %v584, %v584
        %v617 = vpack.c.b16 %v585, %v585
        %v618 = vpack.c.b16 %v586, %v586
        %v619 = vpack.c.b16 %v587, %v587
        %v620 = vpack.c.b16 %v588, %v588
        %v621 = vpack.c.b16 %v589, %v589
        %v622 = vpack.c.b16 %v590, %v590
        %v623 = vpack.c.b16 %v591, %v591
        %v624 = vpack.c.b16 %v592, %v592
        %v625 = vpack.c.b16 %v593, %v593
        %v626 = vpack.c.b16 %v594, %v594
        %v627 = vpack.c.b16 %v595, %v595
        %v628 = vpack.c.b16 %v596, %v596
        %v629 = vpack.c.b16 %v597, %v597
        %v630 = vpack.c.b16 %v598, %v598
        %663 = vst [vmem:[%s179] sm:$0xf] %v599
        %664 = vst [vmem:[%s179 + $0x4] sm:$0xf] %v600
        %665 = vst [vmem:[%s179 + $0x8] sm:$0xf] %v601
        %666 = vst [vmem:[%s179 + $0xc] sm:$0xf] %v602
        %667 = vst [vmem:[%s179 + $0x10] sm:$0xf] %v603
        %668 = vst [vmem:[%s179 + $0x14] sm:$0xf] %v604
        %669 = vst [vmem:[%s179 + $0x18] sm:$0xf] %v605
        %670 = vst [vmem:[%s179 + $0x1c] sm:$0xf] %v606
        %671 = vst [vmem:[%s179 + $0x20] sm:$0xf] %v607
        %672 = vst [vmem:[%s179 + $0x24] sm:$0xf] %v608
        %673 = vst [vmem:[%s179 + $0x28] sm:$0xf] %v609
        %674 = vst [vmem:[%s179 + $0x2c] sm:$0xf] %v610
        %675 = vst [vmem:[%s179 + $0x30] sm:$0xf] %v611
        %676 = vst [vmem:[%s179 + $0x34] sm:$0xf] %v612
        %677 = vst [vmem:[%s179 + $0x38] sm:$0xf] %v613
        %678 = vst [vmem:[%s179 + $0x3c] sm:$0xf] %v614
        %679 = vst [vmem:[%s179 + $0x40] sm:$0xf] %v615
        %680 = vst [vmem:[%s179 + $0x44] sm:$0xf] %v616
        %681 = vst [vmem:[%s179 + $0x48] sm:$0xf] %v617
        %682 = vst [vmem:[%s179 + $0x4c] sm:$0xf] %v618
        %683 = vst [vmem:[%s179 + $0x50] sm:$0xf] %v619
        %684 = vst [vmem:[%s179 + $0x54] sm:$0xf] %v620
        %685 = vst [vmem:[%s179 + $0x58] sm:$0xf] %v621
        %686 = vst [vmem:[%s179 + $0x5c] sm:$0xf] %v622
        %687 = vst [vmem:[%s179 + $0x60] sm:$0xf] %v623
        %688 = vst [vmem:[%s179 + $0x64] sm:$0xf] %v624
        %689 = vst [vmem:[%s179 + $0x68] sm:$0xf] %v625
        %690 = vst [vmem:[%s179 + $0x6c] sm:$0xf] %v626
        %691 = vst [vmem:[%s179 + $0x70] sm:$0xf] %v627
        %692 = vst [vmem:[%s179 + $0x74] sm:$0xf] %v628
        %693 = vst [vmem:[%s179 + $0x78] sm:$0xf] %v629
        %694 = vst [vmem:[%s179 + $0x7c] sm:$0xf] %v630
        %s695 = smul.u32 32, %s17
        %p696 = scmp.lt.s32.totalorder %s695, 127
        %s697 = scalar_select %p696, %s695, 127
        %s698 = smul.addr %s697, 4
        %s699 = scalar_lea.vmem %s2, %s698
        // Predicated region
        $region37: #{_gcn_forward_padded.3} parent=27 // pred_check
          %p700 = pneg %p82
        $region38: #{_gcn_forward_padded.3} parent=27 // pred_check_branch
          %702 = sbr.rel (%p700) target = $region40
        $region39: #{_gcn_forward_padded.3} parent=27 // pred_region
          %s703 = smul.u32 32, %s17
        $region40: #{_gcn_forward_padded.3} parent=27 // pred_fallthru
          _
      $region28: #{_gcn_forward_padded.3} parent=5 // pred_fallthru
        _
      %p704 = scmp.le.s32.totalorder 2, %s12
      // Predicated region
      $region41: #{_gcn_forward_padded.3} parent=5 // pred_check
        %p705 = pneg %p704
      $region42: #{_gcn_forward_padded.3} parent=5 // pred_check_branch
        %707 = sbr.rel (%p705) target = $region44
      $region43: #{_gcn_forward_padded.3} parent=5 // pred_region
        %s708 = ssub.s32 %s12, 2
        // Predicated region
        $region45: #{_gcn_forward_padded.3} parent=43 // pred_check
          %p709 = pneg %p88
        $region46: #{_gcn_forward_padded.3} parent=43 // pred_check_branch
          %711 = sbr.rel (%p709) target = $region48
        $region47: #{_gcn_forward_padded.3} parent=43 // pred_region
          %s712 = smul.u32 32, %s18
          %p713 = scmp.lt.s32.totalorder %s712, 127
          %s714 = scalar_select %p713, %s712, 127
          %s715 = smul.addr %s714, 4
          %s716 = scalar_lea.vmem %s2, %s715
        $region48: #{_gcn_forward_padded.3} parent=43 // pred_fallthru
          _
      $region44: #{_gcn_forward_padded.3} parent=5 // pred_fallthru
        _
    $region6: #{_gcn_forward_padded.3} parent=1 // loop_footer
      %s16 = sadd.s32 1, %s12
    $region7: #{_gcn_forward_padded.3} parent=1 // loop_footer_branch
      %11 = sbr.rel target = $region3
    $region8: #{_gcn_forward_padded.3} parent=1 // loop_exit
      _
    %717 = vsyncpa [#allocation3], 1
    %s718 = scalar_lea.sflag [#allocation3], 1
    %719 = vsyncpa %s718, 1
    %720 = vsyncpa [#allocation5], 1

// kernel: _gcn_forward_padded.5
$region0: #{_gcn_forward_padded.5}
  #allocation0 [shape = 'u32[]', space=smem, size = 0x4, offset = 0x4, fixed_abs, tag = 'smem constant byte address 0x4 - core index']
  #allocation1 [shape = 'u32[144,128]{1,0:T(1,128)}', space=vmem, size = 0x12000, scoped, tag = 'internal scratch']
  #allocation2 [shape = 'f32[256,128]{1,0:T(8,128)}', space=vmem, size = 0x20000, scoped, tag = 'scratch operand']
  #allocation3 [shape = 's32[1]{0}', space=sflag, size = 0x4, scoped, tag = 'scoped memory for _gcn_forward_padded.5']
  #allocation4 [shape = 'u8[512]{0}', space=smem, size = 0x200, scoped, tag = 'prefetched SMEM operand 0']
  #allocation5 [shape = 'u8[512]{0}', space=smem, size = 0x200, scoped, tag = 'prefetched SMEM operand 1']
  %s0 = inlined_call_operand.vmem [shape: s32[16], index: 0, kind: input, shape index: {}]
  %s1 = inlined_call_operand.vmem [shape: s32[4], index: 1, kind: input, shape index: {}]
  %s2 = inlined_call_operand.vmem [shape: bf16[1024,1024], index: 2, kind: input, shape index: {}]
  %s3 = inlined_call_operand.vmem [shape: bf16[1024,128], index: 3, kind: input, shape index: {}]
  %s4 = inlined_call_operand.vmem [shape: bf16[1,128], index: 4, kind: input, shape index: {}]
  %s5 = inlined_call_operand.hbm [shape: f32[1024,128], index: 5, kind: output, shape index: {}]
  %s6 = sld [smem:[#allocation0]]
  $region95: #{_gcn_forward_padded.5} parent=0
    _
  %s8 = ssub.s32 1, %s6
  %s9 = scalar_select 0, %s8, %s6
  %s10 = sshll.u32 %s0, 4
  %s11 = int_to_ptr.vmem [resolvable:$true] %s10
  %13 = dma.vmem_to_smem %s11, 16, [#allocation4], [#allocation3]
  %s14 = sshll.u32 %s1, 4
  %s15 = int_to_ptr.vmem [resolvable:$true] %s14
  %17 = dma.vmem_to_smem %s15, 16, [#allocation5], [#allocation3]
  %18 = dma.done [#allocation3], 32
  %19 = sfence
  $region1: #{_gcn_forward_padded.5} parent=0
    #allocation6 [shape = 'u8[262144]{0}', space=vmem, size = 0x40000, scoped, tag = 'input window, operand 2']
    #allocation7 [shape = 'u8[262144]{0}', space=vmem, size = 0x40000, scoped, tag = 'output window, operand 0']
    #allocation8 [shape = 's32[2]{0}', space=sflag, size = 0x8, scoped, tag = 'scoped memory for _gcn_forward_padded.5']
    %20 = vsyncpa [#allocation8], 0
    %s21 = scalar_lea.sflag [#allocation8], 1
    %22 = vsyncpa %s21, 0
    loop: start=0, step=1, limit=18
    $region2: #{_gcn_forward_padded.5} parent=1 // loop_pre_header
      _
    $region3: #{_gcn_forward_padded.5} parent=1 // loop_header
      %s24 = sphi 0, %s28
      %p25 = scmp.ge.s32.totalorder %s24, 18
      %s31 = sphi 0, %s43
      %s32 = sphi 0, %s39
      %s33 = sphi 0, %s31
      %s34 = sphi 0, %s32
      %s35 = sphi 0, %s33
      %s36 = sphi 0, %s34
      %s54 = sphi 0, %s56
      %s57 = sphi 0, %s54
      %s58 = sphi 0, %s57
      %s74 = sphi 0, %s58
      %s86 = sphi 0, %s88
      %s89 = sphi 0, %s86
      %s90 = sphi 0, %s89
      %s106 = sphi 0, %s90
      %s110 = sphi 0, %s110
      %s112 = sphi 0, %s110
      %s113 = sphi 0, %s112
      %s127 = sphi 0, %s113
      %s133 = sphi 0, %s135
      %s136 = sphi 0, %s133
      %s137 = sphi 0, %s136
      %s153 = sphi 0, %s137
    $region4: #{_gcn_forward_padded.5} parent=1 // loop_header_branch
      %27 = sbr.rel (%p25) target = $region8
    $region5: #{_gcn_forward_padded.5} parent=1 // loop_body
      %s29 = ssub.s32 %s24, 1
      %s30 = ssub.s32 %s24, 2
      %s37 = sadd.s32 1, %s32
      %p38 = scmp.ge.s32.totalorder %s37, 4
      %s39 = scalar_select %p38, 0, %s37
      %s40 = sadd.s32 1, %s31
      %s41 = scalar_select %p38, %s40, %s31
      %p42 = scmp.ge.s32.totalorder %s41, 4
      %s43 = scalar_select %p42, 0, %s41
      %s44 = smul.u32 %s31, 4
      %s45 = sadd.s32 %s44, %s32
      %s46 = sld [smem:[#allocation4 + %s45]]
      %s47 = smul.u32 %s43, 4
      %s48 = sadd.s32 %s47, %s39
      %s49 = sld [smem:[#allocation4 + %s48]]
      %s50 = ssub.s32 %s31, %s43
      %s51 = ssub.s32 %s46, %s49
      %s52 = sor.u32 %s50, %s51
      %p53 = scmp.eq.s32.totalorder %s52, 0
      %s55 = sadd.s32 %s54, 1
      %s56 = scalar_select %p53, %s54, %s55
      %p59 = pneg %p53
      %p60 = scmp.eq.s32.totalorder %s24, 15
      %p61 = por %p59, %p60
      %p62 = scmp.ne.s32.totalorder %s54, %s57
      %p63 = scmp.eq.s32.totalorder %s24, 0
      %p64 = por %p62, %p63
      %p65 = scmp.ne.s32.totalorder %s54, %s57
      %p66 = scmp.eq.s32.totalorder %s29, 15
      %p67 = por %p65, %p66
      %p68 = scmp.ne.s32.totalorder %s57, %s58
      %p69 = scmp.eq.s32.totalorder %s29, 0
      %p70 = por %p68, %p69
      %p71 = scmp.ne.s32.totalorder %s57, %s58
      %p72 = scmp.eq.s32.totalorder %s30, 15
      %p73 = por %p71, %p72
      %p75 = scmp.ne.s32.totalorder %s58, %s74
      %p76 = scmp.eq.s32.totalorder %s30, 0
      %p77 = por %p75, %p76
      %s78 = smul.u32 %s31, 4
      %s79 = sadd.s32 %s78, %s32
      %s80 = sld [smem:[#allocation4 + %s79]]
      %s81 = smul.u32 %s43, 4
      %s82 = sadd.s32 %s81, %s39
      %s83 = sld [smem:[#allocation4 + %s82]]
      %s84 = ssub.s32 %s80, %s83
      %p85 = scmp.eq.s32.totalorder %s84, 0
      %s87 = sadd.s32 %s86, 1
      %s88 = scalar_select %p85, %s86, %s87
      %p91 = pneg %p85
      %p92 = scmp.eq.s32.totalorder %s24, 15
      %p93 = por %p91, %p92
      %p94 = scmp.ne.s32.totalorder %s86, %s89
      %p95 = scmp.eq.s32.totalorder %s24, 0
      %p96 = por %p94, %p95
      %p97 = scmp.ne.s32.totalorder %s86, %s89
      %p98 = scmp.eq.s32.totalorder %s29, 15
      %p99 = por %p97, %p98
      %p100 = scmp.ne.s32.totalorder %s89, %s90
      %p101 = scmp.eq.s32.totalorder %s29, 0
      %p102 = por %p100, %p101
      %p103 = scmp.ne.s32.totalorder %s89, %s90
      %p104 = scmp.eq.s32.totalorder %s30, 15
      %p105 = por %p103, %p104
      %p107 = scmp.ne.s32.totalorder %s90, %s106
      %p108 = scmp.eq.s32.totalorder %s30, 0
      %p109 = por %p107, %p108
      %s111 = sadd.s32 %s110, 1
      %p114 = scmp.eq.s32.totalorder %s24, 15
      %p115 = scmp.ne.s32.totalorder %s110, %s112
      %p116 = scmp.eq.s32.totalorder %s24, 0
      %p117 = por %p115, %p116
      %p118 = scmp.ne.s32.totalorder %s110, %s112
      %p119 = scmp.eq.s32.totalorder %s29, 15
      %p120 = por %p118, %p119
      %p121 = scmp.ne.s32.totalorder %s112, %s113
      %p122 = scmp.eq.s32.totalorder %s29, 0
      %p123 = por %p121, %p122
      %p124 = scmp.ne.s32.totalorder %s112, %s113
      %p125 = scmp.eq.s32.totalorder %s30, 15
      %p126 = por %p124, %p125
      %p128 = scmp.ne.s32.totalorder %s113, %s127
      %p129 = scmp.eq.s32.totalorder %s30, 0
      %p130 = por %p128, %p129
      %s131 = ssub.s32 %s31, %s43
      %p132 = scmp.eq.s32.totalorder %s131, 0
      %s134 = sadd.s32 %s133, 1
      %s135 = scalar_select %p132, %s133, %s134
      %p138 = pneg %p132
      %p139 = scmp.eq.s32.totalorder %s24, 15
      %p140 = por %p138, %p139
      %p141 = scmp.ne.s32.totalorder %s133, %s136
      %p142 = scmp.eq.s32.totalorder %s24, 0
      %p143 = por %p141, %p142
      %p144 = scmp.ne.s32.totalorder %s133, %s136
      %p145 = scmp.eq.s32.totalorder %s29, 15
      %p146 = por %p144, %p145
      %p147 = scmp.ne.s32.totalorder %s136, %s137
      %p148 = scmp.eq.s32.totalorder %s29, 0
      %p149 = por %p147, %p148
      %p150 = scmp.ne.s32.totalorder %s136, %s137
      %p151 = scmp.eq.s32.totalorder %s30, 15
      %p152 = por %p150, %p151
      %p154 = scmp.ne.s32.totalorder %s137, %s153
      %p155 = scmp.eq.s32.totalorder %s30, 0
      %p156 = por %p154, %p155
      %p157 = scmp.le.s32.totalorder 1, %s24
      %p158 = scmp.lt.s32.totalorder %s24, 17
      %p159 = pnand %p157, %p158
      %p160 = pneg %p159
      // Predicated region
      $region9: #{_gcn_forward_padded.5} parent=5 // pred_check
        _
      $region10: #{_gcn_forward_padded.5} parent=5 // pred_check_branch
        %162 = sbr.rel (%p159) target = $region12
      $region11: #{_gcn_forward_padded.5} parent=5 // pred_region
        %s163 = ssub.s32 %s24, 1
        // Predicated region
        $region13: #{_gcn_forward_padded.5} parent=11 // pred_check
          %p164 = pneg %p123
        $region14: #{_gcn_forward_padded.5} parent=11 // pred_check_branch
          %166 = sbr.rel (%p164) target = $region16
        $region15: #{_gcn_forward_padded.5} parent=11 // pred_region
          _
        $region16: #{_gcn_forward_padded.5} parent=11 // pred_fallthru
          _
      $region12: #{_gcn_forward_padded.5} parent=5 // pred_fallthru
        _
      %p167 = scmp.lt.s32.totalorder %s24, 16
      // Predicated region
      $region17: #{_gcn_forward_padded.5} parent=5 // pred_check
        %p168 = pneg %p167
      $region18: #{_gcn_forward_padded.5} parent=5 // pred_check_branch
        %170 = sbr.rel (%p168) target = $region20
      $region19: #{_gcn_forward_padded.5} parent=5 // pred_region
        // Predicated region
        $region21: #{_gcn_forward_padded.5} parent=19 // pred_check
          %p171 = pneg %p64
        $region22: #{_gcn_forward_padded.5} parent=19 // pred_check_branch
          %173 = sbr.rel (%p171) target = $region24
        $region23: #{_gcn_forward_padded.5} parent=19 // pred_region
          %s174 = sand.u32 %s54, 1
          %s175 = sand.u32 %s54, 1
          %s176 = smul.addr %s175, 256
          %s177 = scalar_lea.vmem [#allocation6], %s176
          %s178 = smul.u32 %s31, 4
          %s179 = sadd.s32 %s178, %s32
          %s180 = sld [smem:[#allocation4 + %s179]]
          %s181 = smul.u32 32, %s31
          %s182 = smul.u32 2, %s180
          %s183 = smul.addr %s181, 8
          %s184 = sadd.s32 %s182, %s183
          %s185 = smul.addr %s184, 4
          %s186 = scalar_lea.vmem %s2, %s185
          // Predicated region
          $region25: #{_gcn_forward_padded.5} parent=23 // pred_check
            _
          $region26: #{_gcn_forward_padded.5} parent=23 // pred_check_branch
            %188 = sbr.rel (0) target = $region28
          $region27: #{_gcn_forward_padded.5} parent=23 // pred_region
            // Predicated region
            $region29: #{_gcn_forward_padded.5} parent=27 // pred_check
              _
            $region30: #{_gcn_forward_padded.5} parent=27 // pred_check_branch
              %190 = sbr.rel (0) target = $region32
            $region31: #{_gcn_forward_padded.5} parent=27 // pred_region
              // Predicated region
              $region44: #{_gcn_forward_padded.5} parent=31 // pred_check
                _
              $region45: #{_gcn_forward_padded.5} parent=31 // pred_check_branch
                %267 = sbr.rel (0) target = $region47
              $region46: #{_gcn_forward_padded.5} parent=31 // pred_region
                loop: start=0, step=1, limit=1
                $region48: #{_gcn_forward_padded.5} parent=46 // loop_pre_header
                  _
                $region49: #{_gcn_forward_padded.5} parent=46 // loop_header
                  %s269 = sphi 0, %s273
                  %p270 = scmp.ge.s32.totalorder %s269, 1
                  %s274 = sphi %s186, %s186
                  %s275 = sphi %s177, %s177
                $region50: #{_gcn_forward_padded.5} parent=46 // loop_header_branch
                  %272 = sbr.rel (%p270) target = $region54
                $region51: #{_gcn_forward_padded.5} parent=46 // loop_body
                  %v276 = vld [vmem:[%s274] sm:$0xff]
                  %277 = vst [vmem:[%s275] sm:$0xff] %v276
                  %v278 = vld [vmem:[%s274 + $0x20] sm:$0xff]
                  %279 = vst [vmem:[%s275 + $0x8] sm:$0xff] %v278
                  %v280 = vld [vmem:[%s274 + $0x40] sm:$0xff]
                  %281 = vst [vmem:[%s275 + $0x10] sm:$0xff] %v280
                  %v282 = vld [vmem:[%s274 + $0x60] sm:$0xff]
                  %283 = vst [vmem:[%s275 + $0x18] sm:$0xff] %v282
                  %v284 = vld [vmem:[%s274 + $0x80] sm:$0xff]
                  %285 = vst [vmem:[%s275 + $0x20] sm:$0xff] %v284
                  %v286 = vld [vmem:[%s274 + $0xa0] sm:$0xff]
                  %287 = vst [vmem:[%s275 + $0x28] sm:$0xff] %v286
                  %v288 = vld [vmem:[%s274 + $0xc0] sm:$0xff]
                  %289 = vst [vmem:[%s275 + $0x30] sm:$0xff] %v288
                  %v290 = vld [vmem:[%s274 + $0xe0] sm:$0xff]
                  %291 = vst [vmem:[%s275 + $0x38] sm:$0xff] %v290
                  %v292 = vld [vmem:[%s274 + $0x100] sm:$0xff]
                  %293 = vst [vmem:[%s275 + $0x40] sm:$0xff] %v292
                  %v294 = vld [vmem:[%s274 + $0x120] sm:$0xff]
                  %295 = vst [vmem:[%s275 + $0x48] sm:$0xff] %v294
                  %v296 = vld [vmem:[%s274 + $0x140] sm:$0xff]
                  %297 = vst [vmem:[%s275 + $0x50] sm:$0xff] %v296
                  %v298 = vld [vmem:[%s274 + $0x160] sm:$0xff]
                  %299 = vst [vmem:[%s275 + $0x58] sm:$0xff] %v298
                  %v300 = vld [vmem:[%s274 + $0x180] sm:$0xff]
                  %301 = vst [vmem:[%s275 + $0x60] sm:$0xff] %v300
                  %v302 = vld [vmem:[%s274 + $0x1a0] sm:$0xff]
                  %303 = vst [vmem:[%s275 + $0x68] sm:$0xff] %v302
                  %v304 = vld [vmem:[%s274 + $0x1c0] sm:$0xff]
                  %305 = vst [vmem:[%s275 + $0x70] sm:$0xff] %v304
                  %v306 = vld [vmem:[%s274 + $0x1e0] sm:$0xff]
                  %307 = vst [vmem:[%s275 + $0x78] sm:$0xff] %v306
                  %v308 = vld [vmem:[%s274 + $0x200] sm:$0xff]
                  %309 = vst [vmem:[%s275 + $0x80] sm:$0xff] %v308
                  %v310 = vld [vmem:[%s274 + $0x220] sm:$0xff]
                  %311 = vst [vmem:[%s275 + $0x88] sm:$0xff] %v310
                  %v312 = vld [vmem:[%s274 + $0x240] sm:$0xff]
                  %313 = vst [vmem:[%s275 + $0x90] sm:$0xff] %v312
                  %v314 = vld [vmem:[%s274 + $0x260] sm:$0xff]
                  %315 = vst [vmem:[%s275 + $0x98] sm:$0xff] %v314
                  %v316 = vld [vmem:[%s274 + $0x280] sm:$0xff]
                  %317 = vst [vmem:[%s275 + $0xa0] sm:$0xff] %v316
                  %v318 = vld [vmem:[%s274 + $0x2a0] sm:$0xff]
                  %319 = vst [vmem:[%s275 + $0xa8] sm:$0xff] %v318
                  %v320 = vld [vmem:[%s274 + $0x2c0] sm:$0xff]
                  %321 = vst [vmem:[%s275 + $0xb0] sm:$0xff] %v320
                  %v322 = vld [vmem:[%s274 + $0x2e0] sm:$0xff]
                  %323 = vst [vmem:[%s275 + $0xb8] sm:$0xff] %v322
                  %v324 = vld [vmem:[%s274 + $0x300] sm:$0xff]
                  %325 = vst [vmem:[%s275 + $0xc0] sm:$0xff] %v324
                  %v326 = vld [vmem:[%s274 + $0x320] sm:$0xff]
                  %327 = vst [vmem:[%s275 + $0xc8] sm:$0xff] %v326
                  %v328 = vld [vmem:[%s274 + $0x340] sm:$0xff]
                  %329 = vst [vmem:[%s275 + $0xd0] sm:$0xff] %v328
                  %v330 = vld [vmem:[%s274 + $0x360] sm:$0xff]
                  %331 = vst [vmem:[%s275 + $0xd8] sm:$0xff] %v330
                  %v332 = vld [vmem:[%s274 + $0x380] sm:$0xff]
                  %333 = vst [vmem:[%s275 + $0xe0] sm:$0xff] %v332
                  %v334 = vld [vmem:[%s274 + $0x3a0] sm:$0xff]
                  %335 = vst [vmem:[%s275 + $0xe8] sm:$0xff] %v334
                  %v336 = vld [vmem:[%s274 + $0x3c0] sm:$0xff]
                  %337 = vst [vmem:[%s275 + $0xf0] sm:$0xff] %v336
                  %v338 = vld [vmem:[%s274 + $0x3e0] sm:$0xff]
                  %339 = vst [vmem:[%s275 + $0xf8] sm:$0xff] %v338
                $region52: #{_gcn_forward_padded.5} parent=46 // loop_footer
                  %s273 = sadd.s32 1, %s269
                $region53: #{_gcn_forward_padded.5} parent=46 // loop_footer_branch
                  %268 = sbr.rel target = $region49
                $region54: #{_gcn_forward_padded.5} parent=46 // loop_exit
                  _
              $region47: #{_gcn_forward_padded.5} parent=31 // pred_fallthru
                _
              // Predicated region
              $region55: #{_gcn_forward_padded.5} parent=31 // pred_check
                _
              $region56: #{_gcn_forward_padded.5} parent=31 // pred_check_branch
                %341 = sbr.rel target = $region58
              $region57: #{_gcn_forward_padded.5} parent=31 // pred_region
                _
              $region58: #{_gcn_forward_padded.5} parent=31 // pred_fallthru
                _
            $region32: #{_gcn_forward_padded.5} parent=27 // pred_fallthru
              _
            // Predicated region
            $region33: #{_gcn_forward_padded.5} parent=27 // pred_check
              _
            $region34: #{_gcn_forward_padded.5} parent=27 // pred_check_branch
              %192 = sbr.rel target = $region36
            $region35: #{_gcn_forward_padded.5} parent=27 // pred_region
              loop: start=0, step=1, limit=1
              $region37: #{_gcn_forward_padded.5} parent=35 // loop_pre_header
                _
              $region38: #{_gcn_forward_padded.5} parent=35 // loop_header
                %s195 = sphi 0, %s199
                %p196 = scmp.ge.s32.totalorder %s195, 1
                %s200 = sphi %s186, %s186
                %s201 = sphi %s177, %s177
              $region39: #{_gcn_forward_padded.5} parent=35 // loop_header_branch
                %198 = sbr.rel (%p196) target = $region43
              $region40: #{_gcn_forward_padded.5} parent=35 // loop_body
                %v202 = vld [vmem:[%s200] sm:$0xff]
                %203 = vst [vmem:[%s201] sm:$0xff] %v202
                %v204 = vld [vmem:[%s200 + $0x20] sm:$0xff]
                %205 = vst [vmem:[%s201 + $0x8] sm:$0xff] %v204
                %v206 = vld [vmem:[%s200 + $0x40] sm:$0xff]
                %207 = vst [vmem:[%s201 + $0x10] sm:$0xff] %v206
                %v208 = vld [vmem:[%s200 + $0x60] sm:$0xff]
                %209 = vst [vmem:[%s201 + $0x18] sm:$0xff] %v208
                %v210 = vld [vmem:[%s200 + $0x80] sm:$0xff]
                %211 = vst [vmem:[%s201 + $0x20] sm:$0xff] %v210
                %v212 = vld [vmem:[%s200 + $0xa0] sm:$0xff]
                %213 = vst [vmem:[%s201 + $0x28] sm:$0xff] %v212
                %v214 = vld [vmem:[%s200 + $0xc0] sm:$0xff]
                %215 = vst [vmem:[%s201 + $0x30] sm:$0xff] %v214
                %v216 = vld [vmem:[%s200 + $0xe0] sm:$0xff]
                %217 = vst [vmem:[%s201 + $0x38] sm:$0xff] %v216
                %v218 = vld [vmem:[%s200 + $0x100] sm:$0xff]
                %219 = vst [vmem:[%s201 + $0x40] sm:$0xff] %v218
                %v220 = vld [vmem:[%s200 + $0x120] sm:$0xff]
                %221 = vst [vmem:[%s201 + $0x48] sm:$0xff] %v220
                %v222 = vld [vmem:[%s200 + $0x140] sm:$0xff]
                %223 = vst [vmem:[%s201 + $0x50] sm:$0xff] %v222
                %v224 = vld [vmem:[%s200 + $0x160] sm:$0xff]
                %225 = vst [vmem:[%s201 + $0x58] sm:$0xff] %v224
                %v226 = vld [vmem:[%s200 + $0x180] sm:$0xff]
                %227 = vst [vmem:[%s201 + $0x60] sm:$0xff] %v226
                %v228 = vld [vmem:[%s200 + $0x1a0] sm:$0xff]
                %229 = vst [vmem:[%s201 + $0x68] sm:$0xff] %v228
                %v230 = vld [vmem:[%s200 + $0x1c0] sm:$0xff]
                %231 = vst [vmem:[%s201 + $0x70] sm:$0xff] %v230
                %v232 = vld [vmem:[%s200 + $0x1e0] sm:$0xff]
                %233 = vst [vmem:[%s201 + $0x78] sm:$0xff] %v232
                %v234 = vld [vmem:[%s200 + $0x200] sm:$0xff]
                %235 = vst [vmem:[%s201 + $0x80] sm:$0xff] %v234
                %v236 = vld [vmem:[%s200 + $0x220] sm:$0xff]
                %237 = vst [vmem:[%s201 + $0x88] sm:$0xff] %v236
                %v238 = vld [vmem:[%s200 + $0x240] sm:$0xff]
                %239 = vst [vmem:[%s201 + $0x90] sm:$0xff] %v238
                %v240 = vld [vmem:[%s200 + $0x260] sm:$0xff]
                %241 = vst [vmem:[%s201 + $0x98] sm:$0xff] %v240
                %v242 = vld [vmem:[%s200 + $0x280] sm:$0xff]
                %243 = vst [vmem:[%s201 + $0xa0] sm:$0xff] %v242
                %v244 = vld [vmem:[%s200 + $0x2a0] sm:$0xff]
                %245 = vst [vmem:[%s201 + $0xa8] sm:$0xff] %v244
                %v246 = vld [vmem:[%s200 + $0x2c0] sm:$0xff]
                %247 = vst [vmem:[%s201 + $0xb0] sm:$0xff] %v246
                %v248 = vld [vmem:[%s200 + $0x2e0] sm:$0xff]
                %249 = vst [vmem:[%s201 + $0xb8] sm:$0xff] %v248
                %v250 = vld [vmem:[%s200 + $0x300] sm:$0xff]
                %251 = vst [vmem:[%s201 + $0xc0] sm:$0xff] %v250
                %v252 = vld [vmem:[%s200 + $0x320] sm:$0xff]
                %253 = vst [vmem:[%s201 + $0xc8] sm:$0xff] %v252
                %v254 = vld [vmem:[%s200 + $0x340] sm:$0xff]
                %255 = vst [vmem:[%s201 + $0xd0] sm:$0xff] %v254
                %v256 = vld [vmem:[%s200 + $0x360] sm:$0xff]
                %257 = vst [vmem:[%s201 + $0xd8] sm:$0xff] %v256
                %v258 = vld [vmem:[%s200 + $0x380] sm:$0xff]
                %259 = vst [vmem:[%s201 + $0xe0] sm:$0xff] %v258
                %v260 = vld [vmem:[%s200 + $0x3a0] sm:$0xff]
                %261 = vst [vmem:[%s201 + $0xe8] sm:$0xff] %v260
                %v262 = vld [vmem:[%s200 + $0x3c0] sm:$0xff]
                %263 = vst [vmem:[%s201 + $0xf0] sm:$0xff] %v262
                %v264 = vld [vmem:[%s200 + $0x3e0] sm:$0xff]
                %265 = vst [vmem:[%s201 + $0xf8] sm:$0xff] %v264
              $region41: #{_gcn_forward_padded.5} parent=35 // loop_footer
                %s199 = sadd.s32 1, %s195
              $region42: #{_gcn_forward_padded.5} parent=35 // loop_footer_branch
                %194 = sbr.rel target = $region38
              $region43: #{_gcn_forward_padded.5} parent=35 // loop_exit
                _
            $region36: #{_gcn_forward_padded.5} parent=27 // pred_fallthru
              _
          $region28: #{_gcn_forward_padded.5} parent=23 // pred_fallthru
            _
          %342 = vnop
        $region24: #{_gcn_forward_padded.5} parent=19 // pred_fallthru
          _
        // Predicated region
        $region59: #{_gcn_forward_padded.5} parent=19 // pred_check
          %p343 = pneg %p96
        $region60: #{_gcn_forward_padded.5} parent=19 // pred_check_branch
          %345 = sbr.rel (%p343) target = $region62
        $region61: #{_gcn_forward_padded.5} parent=19 // pred_region
          %s346 = smul.u32 %s31, 4
          %s347 = sadd.s32 %s346, %s32
          %s348 = sld [smem:[#allocation4 + %s347]]
          %s349 = smul.u32 32, %s348
          %p350 = scmp.lt.s32.totalorder %s349, 127
          %s351 = scalar_select %p350, %s349, 127
          %s352 = smul.addr %s351, 4
          %s353 = scalar_lea.vmem %s3, %s352
          %s354 = smul.u32 %s31, 4
          %s355 = sadd.s32 %s354, %s32
          %s356 = sld [smem:[#allocation4 + %s355]]
          %s357 = smul.u32 32, %s356
        $region62: #{_gcn_forward_padded.5} parent=19 // pred_fallthru
          _
      $region20: #{_gcn_forward_padded.5} parent=5 // pred_fallthru
        _
      %p358 = scmp.le.s32.totalorder 1, %s24
      %p359 = scmp.lt.s32.totalorder %s24, 17
      %p360 = pnand %p358, %p359
      %p361 = pneg %p360
      // Predicated region
      $region63: #{_gcn_forward_padded.5} parent=5 // pred_check
        _
      $region64: #{_gcn_forward_padded.5} parent=5 // pred_check_branch
        %363 = sbr.rel (%p360) target = $region66
      $region65: #{_gcn_forward_padded.5} parent=5 // pred_region
        %s364 = ssub.s32 %s24, 1
        %s365 = sand.u32 %s57, 1
        %s366 = sand.u32 %s57, 1
        %s367 = smul.addr %s366, 256
        %s368 = scalar_lea.vmem [#allocation6], %s367
        // Predicated region
        $region67: #{_gcn_forward_padded.5} parent=65 // pred_check
          %p369 = pneg %p70
        $region68: #{_gcn_forward_padded.5} parent=65 // pred_check_branch
          %371 = sbr.rel (%p369) target = $region70
        $region69: #{_gcn_forward_padded.5} parent=65 // pred_region
          _
        $region70: #{_gcn_forward_padded.5} parent=65 // pred_fallthru
          _
        %s372 = sand.u32 %s57, 1
        %s373 = sand.u32 %s57, 1
        %s374 = smul.addr %s373, 256
        %s375 = scalar_lea.vmem [#allocation6], %s374
        %p376 = pneg %p70
        %p377 = pneg %p67
        %s378 = smul.u32 %s33, 4
        %s379 = sadd.s32 %s378, %s34
        %s380 = sld [smem:[#allocation4 + %s379]]
        %s381 = smul.u32 32, %s380
        %p382 = scmp.lt.s32.totalorder %s381, 127
        %s383 = scalar_select %p382, %s381, 127
        %s384 = smul.addr %s383, 4
        %s385 = scalar_lea.vmem %s3, %s384
        %p386 = pneg %p102
        %p387 = pneg %p99
        %p388 = pneg %p123
        %p389 = pneg %p120
        %p390 = pneg %p149
        %p391 = pneg %p146
        %s392 = sand.u32 %s136, 1
        %s393 = scalar_lea.sflag [#allocation8], %s392
        %s394 = sand.u32 %s136, 1
        %s395 = smul.addr %s394, 256
        %s396 = scalar_lea.vmem [#allocation7], %s395
        %s397 = smul.u32 %s33, 4
        %s398 = sadd.s32 %s397, %s34
        %s399 = sld [smem:[#allocation4 + %s398]]
        %s400 = smul.u32 32, %s33
        %s401 = smul.u32 2, %s399
        %s402 = smul.u32 %s33, 4
        %s403 = sadd.s32 %s402, %s34
        %s404 = sld [smem:[#allocation4 + %s403]]
        %s405 = smul.u32 32, %s404
        %p406 = scmp.lt.s32.totalorder %s405, 127
        %s407 = scalar_select %p406, %s405, 127
        %s408 = smul.addr %s407, 4
        %s409 = scalar_lea.vmem %s3, %s408
        %s410 = smul.u32 %s33, 4
        %s411 = sadd.s32 %s410, %s34
        %s412 = sld [smem:[#allocation4 + %s411]]
        %s413 = smul.u32 32, %s412
        %s414 = smul.u32 32, %s33
        %p416 = scmp.eq.s32.totalorder %s34, 0
        // Predicated region
        $region71: #{_gcn_forward_padded.5} parent=65 // pred_check
          %p417 = pneg %p416
        $region72: #{_gcn_forward_padded.5} parent=65 // pred_check_branch
          %419 = sbr.rel (%p417) target = $region74
        $region73: #{_gcn_forward_padded.5} parent=65 // pred_region
          %v420 = vld [vmem:[%s4] sm:$0x1]
          %v421 = vunpack.c.l.bf16 %v420
          %v422 = vlaneseq
          %v423 = vshrl.u32 %v422, 7
          %v424 = vsub.s32 0, %v423
          %v425 = vrot.slane %v421, %v424
          %v426 = vadd.f32 %v425, 0.0
          %427 = vst [vmem:[#allocation2] sm:$0xff] %v426
          %428 = vst [vmem:[#allocation2 + $0x8] sm:$0xff] %v426
          %429 = vst [vmem:[#allocation2 + $0x10] sm:$0xff] %v426
          %430 = vst [vmem:[#allocation2 + $0x18] sm:$0xff] %v426
          %431 = vst [vmem:[#allocation2 + $0x20] sm:$0xff] %v426
          %432 = vst [vmem:[#allocation2 + $0x28] sm:$0xff] %v426
          %433 = vst [vmem:[#allocation2 + $0x30] sm:$0xff] %v426
          %434 = vst [vmem:[#allocation2 + $0x38] sm:$0xff] %v426
          %435 = vst [vmem:[#allocation2 + $0x40] sm:$0xff] %v426
          %436 = vst [vmem:[#allocation2 + $0x48] sm:$0xff] %v426
          %437 = vst [vmem:[#allocation2 + $0x50] sm:$0xff] %v426
          %438 = vst [vmem:[#allocation2 + $0x58] sm:$0xff] %v426
          %439 = vst [vmem:[#allocation2 + $0x60] sm:$0xff] %v426
          %440 = vst [vmem:[#allocation2 + $0x68] sm:$0xff] %v426
          %441 = vst [vmem:[#allocation2 + $0x70] sm:$0xff] %v426
          %442 = vst [vmem:[#allocation2 + $0x78] sm:$0xff] %v426
          %443 = vst [vmem:[#allocation2 + $0x80] sm:$0xff] %v426
          %444 = vst [vmem:[#allocation2 + $0x88] sm:$0xff] %v426
          %445 = vst [vmem:[#allocation2 + $0x90] sm:$0xff] %v426
          %446 = vst [vmem:[#allocation2 + $0x98] sm:$0xff] %v426
          %447 = vst [vmem:[#allocation2 + $0xa0] sm:$0xff] %v426
          %448 = vst [vmem:[#allocation2 + $0xa8] sm:$0xff] %v426
          %449 = vst [vmem:[#allocation2 + $0xb0] sm:$0xff] %v426
          %450 = vst [vmem:[#allocation2 + $0xb8] sm:$0xff] %v426
          %451 = vst [vmem:[#allocation2 + $0xc0] sm:$0xff] %v426
          %452 = vst [vmem:[#allocation2 + $0xc8] sm:$0xff] %v426
          %453 = vst [vmem:[#allocation2 + $0xd0] sm:$0xff] %v426
          %454 = vst [vmem:[#allocation2 + $0xd8] sm:$0xff] %v426
          %455 = vst [vmem:[#allocation2 + $0xe0] sm:$0xff] %v426
          %456 = vst [vmem:[#allocation2 + $0xe8] sm:$0xff] %v426
          %457 = vst [vmem:[#allocation2 + $0xf0] sm:$0xff] %v426
          %458 = vst [vmem:[#allocation2 + $0xf8] sm:$0xff] %v426
        $region74: #{_gcn_forward_padded.5} parent=65 // pred_fallthru
          _
        %s459 = sld [smem:[#allocation5 + %s33]]
        %p460 = scmp.lt.s32.totalorder %s34, %s459
        // Predicated region
        $region75: #{_gcn_forward_padded.5} parent=65 // pred_check
          %p461 = pneg %p460
        $region76: #{_gcn_forward_padded.5} parent=65 // pred_check_branch
          %463 = sbr.rel (%p461) target = $region78
        $region77: #{_gcn_forward_padded.5} parent=65 // pred_region
          %v464 = vld [vmem:[#allocation2] sm:$0xff]
          %v465 = vld [vmem:[#allocation2 + $0x8] sm:$0xff]
          %v466 = vld [vmem:[#allocation2 + $0x10] sm:$0xff]
          %v467 = vld [vmem:[#allocation2 + $0x18] sm:$0xff]
          %v468 = vld [vmem:[#allocation2 + $0x20] sm:$0xff]
          %v469 = vld [vmem:[#allocation2 + $0x28] sm:$0xff]
          %v470 = vld [vmem:[#allocation2 + $0x30] sm:$0xff]
          %v471 = vld [vmem:[#allocation2 + $0x38] sm:$0xff]
          %v472 = vld [vmem:[#allocation2 + $0x40] sm:$0xff]
          %v473 = vld [vmem:[#allocation2 + $0x48] sm:$0xff]
          %v474 = vld [vmem:[#allocation2 + $0x50] sm:$0xff]
          %v475 = vld [vmem:[#allocation2 + $0x58] sm:$0xff]
          %v476 = vld [vmem:[#allocation2 + $0x60] sm:$0xff]
          %v477 = vld [vmem:[#allocation2 + $0x68] sm:$0xff]
          %v478 = vld [vmem:[#allocation2 + $0x70] sm:$0xff]
          %v479 = vld [vmem:[#allocation2 + $0x78] sm:$0xff]
          %v480 = vld [vmem:[#allocation2 + $0x80] sm:$0xff]
          %v481 = vld [vmem:[#allocation2 + $0x88] sm:$0xff]
          %v482 = vld [vmem:[#allocation2 + $0x90] sm:$0xff]
          %v483 = vld [vmem:[#allocation2 + $0x98] sm:$0xff]
          %v484 = vld [vmem:[#allocation2 + $0xa0] sm:$0xff]
          %v485 = vld [vmem:[#allocation2 + $0xa8] sm:$0xff]
          %v486 = vld [vmem:[#allocation2 + $0xb0] sm:$0xff]
          %v487 = vld [vmem:[#allocation2 + $0xb8] sm:$0xff]
          %v488 = vld [vmem:[#allocation2 + $0xc0] sm:$0xff]
          %v489 = vld [vmem:[#allocation2 + $0xc8] sm:$0xff]
          %v490 = vld [vmem:[#allocation2 + $0xd0] sm:$0xff]
          %v491 = vld [vmem:[#allocation2 + $0xd8] sm:$0xff]
          %v492 = vld [vmem:[#allocation2 + $0xe0] sm:$0xff]
          %v493 = vld [vmem:[#allocation2 + $0xe8] sm:$0xff]
          %v494 = vld [vmem:[#allocation2 + $0xf0] sm:$0xff]
          %v495 = vld [vmem:[#allocation2 + $0xf8] sm:$0xff]
          %v496 = vld [vmem:[%s368] sm:$0xff]
          %v497 = vld [vmem:[%s368 + $0x8] sm:$0xff]
          %v498 = vld [vmem:[%s368 + $0x10] sm:$0xff]
          %v499 = vld [vmem:[%s368 + $0x18] sm:$0xff]
          %v500 = vld [vmem:[%s368 + $0x20] sm:$0xff]
          %v501 = vld [vmem:[%s368 + $0x28] sm:$0xff]
          %v502 = vld [vmem:[%s368 + $0x30] sm:$0xff]
          %v503 = vld [vmem:[%s368 + $0x38] sm:$0xff]
          %v504 = vld [vmem:[%s368 + $0x40] sm:$0xff]
          %v505 = vld [vmem:[%s368 + $0x48] sm:$0xff]
          %v506 = vld [vmem:[%s368 + $0x50] sm:$0xff]
          %v507 = vld [vmem:[%s368 + $0x58] sm:$0xff]
          %v508 = vld [vmem:[%s368 + $0x60] sm:$0xff]
          %v509 = vld [vmem:[%s368 + $0x68] sm:$0xff]
          %v510 = vld [vmem:[%s368 + $0x70] sm:$0xff]
          %v511 = vld [vmem:[%s368 + $0x78] sm:$0xff]
          %v512 = vld [vmem:[%s368 + $0x80] sm:$0xff]
          %v513 = vld [vmem:[%s368 + $0x88] sm:$0xff]
          %v514 = vld [vmem:[%s368 + $0x90] sm:$0xff]
          %v515 = vld [vmem:[%s368 + $0x98] sm:$0xff]
          %v516 = vld [vmem:[%s368 + $0xa0] sm:$0xff]
          %v517 = vld [vmem:[%s368 + $0xa8] sm:$0xff]
          %v518 = vld [vmem:[%s368 + $0xb0] sm:$0xff]
          %v519 = vld [vmem:[%s368 + $0xb8] sm:$0xff]
          %v520 = vld [vmem:[%s368 + $0xc0] sm:$0xff]
          %v521 = vld [vmem:[%s368 + $0xc8] sm:$0xff]
          %v522 = vld [vmem:[%s368 + $0xd0] sm:$0xff]
          %v523 = vld [vmem:[%s368 + $0xd8] sm:$0xff]
          %v524 = vld [vmem:[%s368 + $0xe0] sm:$0xff]
          %v525 = vld [vmem:[%s368 + $0xe8] sm:$0xff]
          %v526 = vld [vmem:[%s368 + $0xf0] sm:$0xff]
          %v527 = vld [vmem:[%s368 + $0xf8] sm:$0xff]
          %v528 = vld [vmem:[%s409] sm:$0xf]
          %v529 = vld [vmem:[%s409 + $0x4] sm:$0xf]
          %v530 = vld [vmem:[%s409 + $0x8] sm:$0xf]
          %v531 = vld [vmem:[%s409 + $0xc] sm:$0xf]
          %v532 = vld [vmem:[%s409 + $0x10] sm:$0xf]
          %v533 = vld [vmem:[%s409 + $0x14] sm:$0xf]
          %v534 = vld [vmem:[%s409 + $0x18] sm:$0xf]
          %v535 = vld [vmem:[%s409 + $0x1c] sm:$0xf]
          %v536 = vld [vmem:[%s409 + $0x20] sm:$0xf]
          %v537 = vld [vmem:[%s409 + $0x24] sm:$0xf]
          %v538 = vld [vmem:[%s409 + $0x28] sm:$0xf]
          %v539 = vld [vmem:[%s409 + $0x2c] sm:$0xf]
          %v540 = vld [vmem:[%s409 + $0x30] sm:$0xf]
          %v541 = vld [vmem:[%s409 + $0x34] sm:$0xf]
          %v542 = vld [vmem:[%s409 + $0x38] sm:$0xf]
          %v543 = vld [vmem:[%s409 + $0x3c] sm:$0xf]
          %v544 = vld [vmem:[%s409 + $0x40] sm:$0xf]
          %v545 = vld [vmem:[%s409 + $0x44] sm:$0xf]
          %v546 = vld [vmem:[%s409 + $0x48] sm:$0xf]
          %v547 = vld [vmem:[%s409 + $0x4c] sm:$0xf]
          %v548 = vld [vmem:[%s409 + $0x50] sm:$0xf]
          %v549 = vld [vmem:[%s409 + $0x54] sm:$0xf]
          %v550 = vld [vmem:[%s409 + $0x58] sm:$0xf]
          %v551 = vld [vmem:[%s409 + $0x5c] sm:$0xf]
          %v552 = vld [vmem:[%s409 + $0x60] sm:$0xf]
          %v553 = vld [vmem:[%s409 + $0x64] sm:$0xf]
          %v554 = vld [vmem:[%s409 + $0x68] sm:$0xf]
          %v555 = vld [vmem:[%s409 + $0x6c] sm:$0xf]
          %v556 = vld [vmem:[%s409 + $0x70] sm:$0xf]
          %v557 = vld [vmem:[%s409 + $0x74] sm:$0xf]
          %v558 = vld [vmem:[%s409 + $0x78] sm:$0xf]
          %v559 = vld [vmem:[%s409 + $0x7c] sm:$0xf]
          %v592 = vunpack.c.l.b16 %v496
          %v593 = vunpack.c.h.b16 %v496
          %v594 = vunpack.c.l.b16 %v497
          %v595 = vunpack.c.h.b16 %v497
          %v596 = vunpack.c.l.b16 %v498
          %v597 = vunpack.c.h.b16 %v498
          %v598 = vunpack.c.l.b16 %v499
          %v599 = vunpack.c.h.b16 %v499
          %v600 = vunpack.c.l.b16 %v500
          %v601 = vunpack.c.h.b16 %v500
          %v602 = vunpack.c.l.b16 %v501
          %v603 = vunpack.c.h.b16 %v501
          %v604 = vunpack.c.l.b16 %v502
          %v605 = vunpack.c.h.b16 %v502
          %v606 = vunpack.c.l.b16 %v503
          %v607 = vunpack.c.h.b16 %v503
          %v608 = vunpack.c.l.b16 %v504
          %v609 = vunpack.c.h.b16 %v504
          %v610 = vunpack.c.l.b16 %v505
          %v611 = vunpack.c.h.b16 %v505
          %v612 = vunpack.c.l.b16 %v506
          %v613 = vunpack.c.h.b16 %v506
          %v614 = vunpack.c.l.b16 %v507
          %v615 = vunpack.c.h.b16 %v507
          %v616 = vunpack.c.l.b16 %v508
          %v617 = vunpack.c.h.b16 %v508
          %v618 = vunpack.c.l.b16 %v509
          %v619 = vunpack.c.h.b16 %v509
          %v620 = vunpack.c.l.b16 %v510
          %v621 = vunpack.c.h.b16 %v510
          %v622 = vunpack.c.l.b16 %v511
          %v623 = vunpack.c.h.b16 %v511
          %v624 = vunpack.c.l.b16 %v512
          %v625 = vunpack.c.h.b16 %v512
          %v626 = vunpack.c.l.b16 %v513
          %v627 = vunpack.c.h.b16 %v513
          %v628 = vunpack.c.l.b16 %v514
          %v629 = vunpack.c.h.b16 %v514
          %v630 = vunpack.c.l.b16 %v515
          %v631 = vunpack.c.h.b16 %v515
          %v632 = vunpack.c.l.b16 %v516
          %v633 = vunpack.c.h.b16 %v516
          %v634 = vunpack.c.l.b16 %v517
          %v635 = vunpack.c.h.b16 %v517
          %v636 = vunpack.c.l.b16 %v518
          %v637 = vunpack.c.h.b16 %v518
          %v638 = vunpack.c.l.b16 %v519
          %v639 = vunpack.c.h.b16 %v519
          %v640 = vunpack.c.l.b16 %v520
          %v641 = vunpack.c.h.b16 %v520
          %v642 = vunpack.c.l.b16 %v521
          %v643 = vunpack.c.h.b16 %v521
          %v644 = vunpack.c.l.b16 %v522
          %v645 = vunpack.c.h.b16 %v522
          %v646 = vunpack.c.l.b16 %v523
          %v647 = vunpack.c.h.b16 %v523
          %v648 = vunpack.c.l.b16 %v524
          %v649 = vunpack.c.h.b16 %v524
          %v650 = vunpack.c.l.b16 %v525
          %v651 = vunpack.c.h.b16 %v525
          %v652 = vunpack.c.l.b16 %v526
          %v653 = vunpack.c.h.b16 %v526
          %v654 = vunpack.c.l.b16 %v527
          %v655 = vunpack.c.h.b16 %v527
          %v656 = vpack.c.b16 %v594, %v592
          %v657 = vpack.c.b16 %v595, %v593
          %v658 = vpack.c.b16 %v598, %v596
          %v659 = vpack.c.b16 %v599, %v597
          %v660 = vpack.c.b16 %v602, %v600
          %v661 = vpack.c.b16 %v603, %v601
          %v662 = vpack.c.b16 %v606, %v604
          %v663 = vpack.c.b16 %v607, %v605
          %v664 = vpack.c.b16 %v610, %v608
          %v665 = vpack.c.b16 %v611, %v609
          %v666 = vpack.c.b16 %v614, %v612
          %v667 = vpack.c.b16 %v615, %v613
          %v668 = vpack.c.b16 %v618, %v616
          %v669 = vpack.c.b16 %v619, %v617
          %v670 = vpack.c.b16 %v622, %v620
          %v671 = vpack.c.b16 %v623, %v621
          %v672 = vpack.c.b16 %v626, %v624
          %v673 = vpack.c.b16 %v627, %v625
          %v674 = vpack.c.b16 %v630, %v628
          %v675 = vpack.c.b16 %v631, %v629
          %v676 = vpack.c.b16 %v634, %v632
          %v677 = vpack.c.b16 %v635, %v633
          %v678 = vpack.c.b16 %v638, %v636
          %v679 = vpack.c.b16 %v639, %v637
          %v680 = vpack.c.b16 %v642, %v640
          %v681 = vpack.c.b16 %v643, %v641
          %v682 = vpack.c.b16 %v646, %v644
          %v683 = vpack.c.b16 %v647, %v645
          %v684 = vpack.c.b16 %v650, %v648
          %v685 = vpack.c.b16 %v651, %v649
          %v686 = vpack.c.b16 %v654, %v652
          %v687 = vpack.c.b16 %v655, %v653
          %v752 = vunpack.c.l.b16 %v528
          %v753 = vunpack.c.l.b16 %v529
          %v754 = vunpack.c.l.b16 %v530
          %v755 = vunpack.c.l.b16 %v531
          %v756 = vunpack.c.l.b16 %v532
          %v757 = vunpack.c.l.b16 %v533
          %v758 = vunpack.c.l.b16 %v534
          %v759 = vunpack.c.l.b16 %v535
          %v760 = vunpack.c.l.b16 %v536
          %v761 = vunpack.c.l.b16 %v537
          %v762 = vunpack.c.l.b16 %v538
          %v763 = vunpack.c.l.b16 %v539
          %v764 = vunpack.c.l.b16 %v540
          %v765 = vunpack.c.l.b16 %v541
          %v766 = vunpack.c.l.b16 %v542
          %v767 = vunpack.c.l.b16 %v543
          %v768 = vunpack.c.l.b16 %v544
          %v769 = vunpack.c.l.b16 %v545
          %v770 = vunpack.c.l.b16 %v546
          %v771 = vunpack.c.l.b16 %v547
          %v772 = vunpack.c.l.b16 %v548
          %v773 = vunpack.c.l.b16 %v549
          %v774 = vunpack.c.l.b16 %v550
          %v775 = vunpack.c.l.b16 %v551
          %v776 = vunpack.c.l.b16 %v552
          %v777 = vunpack.c.l.b16 %v553
          %v778 = vunpack.c.l.b16 %v554
          %v779 = vunpack.c.l.b16 %v555
          %v780 = vunpack.c.l.b16 %v556
          %v781 = vunpack.c.l.b16 %v557
          %v782 = vunpack.c.l.b16 %v558
          %v783 = vunpack.c.l.b16 %v559
          %v784 = vpack.c.b16 %v753, %v752
          %v785 = vpack.c.b16 %v755, %v754
          %v786 = vpack.c.b16 %v757, %v756
          %v787 = vpack.c.b16 %v759, %v758
          %v788 = vpack.c.b16 %v761, %v760
          %v789 = vpack.c.b16 %v763, %v762
          %v790 = vpack.c.b16 %v765, %v764
          %v791 = vpack.c.b16 %v767, %v766
          %v792 = vpack.c.b16 %v769, %v768
          %v793 = vpack.c.b16 %v771, %v770
          %v794 = vpack.c.b16 %v773, %v772
          %v795 = vpack.c.b16 %v775, %v774
          %v796 = vpack.c.b16 %v777, %v776
          %v797 = vpack.c.b16 %v779, %v778
          %v798 = vpack.c.b16 %v781, %v780
          %v799 = vpack.c.b16 %v783, %v782
          %816 = vmatprep.subr.bf16.mxu0 0
          %817 = vmatpush1.bf16.msra.mxu0 %v784
          %818 = vmatprep.subr.bf16.mxu0 0
          %819 = vmatpush1.bf16.msra.mxu0 %v785
          %820 = vmatprep.subr.bf16.mxu0 0
          %821 = vmatpush1.bf16.msra.mxu0 %v786
          %822 = vmatprep.subr.bf16.mxu0 0
          %823 = vmatpush1.bf16.msra.mxu0 %v787
          %824 = vmatprep.subr.bf16.mxu0 0
          %825 = vmatpush1.bf16.msra.mxu0 %v788
          %826 = vmatprep.subr.bf16.mxu0 0
          %827 = vmatpush1.bf16.msra.mxu0 %v789
          %828 = vmatprep.subr.bf16.mxu0 0
          %829 = vmatpush1.bf16.msra.mxu0 %v790
          %830 = vmatprep.subr.bf16.mxu0 0
          %831 = vmatpush1.bf16.msra.mxu0 %v791
          %832 = vmatprep.subr.bf16.mxu0 0
          %833 = vmatpush1.bf16.msra.mxu0 %v792
          %834 = vmatprep.subr.bf16.mxu0 0
          %835 = vmatpush1.bf16.msra.mxu0 %v793
          %836 = vmatprep.subr.bf16.mxu0 0
          %837 = vmatpush1.bf16.msra.mxu0 %v794
          %838 = vmatprep.subr.bf16.mxu0 0
          %839 = vmatpush1.bf16.msra.mxu0 %v795
          %840 = vmatprep.subr.bf16.mxu0 0
          %841 = vmatpush1.bf16.msra.mxu0 %v796
          %842 = vmatprep.subr.bf16.mxu0 0
          %843 = vmatpush1.bf16.msra.mxu0 %v797
          %844 = vmatprep.subr.bf16.mxu0 0
          %845 = vmatpush1.bf16.msra.mxu0 %v798
          %846 = vmatprep.subr.bf16.mxu0 0
          %847 = vmatpush1.bf16.msra.mxu0 %v799
          %848 = vmatprep.mubr.bf16.mxu0 %v657
          %849 = vmatmul.mubr.bf16.gmra.mrb[0].mxu0 %v656
          %v850 = vpop.f32.mrb[0].mxu0
          %v851 = vadd.f32 0.0, %v850
          %v852 = vpop.f32.mrb[0].mxu0
          %v853 = vpop.f32.mrb[0].mxu0
          %v854 = vadd.f32 0.0, %v853
          %v855 = vpop.f32.mrb[0].mxu0
          %856 = vmatprep.mubr.bf16.mxu0 %v659
          %857 = vmatmul.mubr.bf16.gmra.mrb[0].mxu0 %v658
          %v858 = vpop.f32.mrb[0].mxu0
          %v859 = vadd.f32 0.0, %v858
          %v860 = vpop.f32.mrb[0].mxu0
          %v861 = vpop.f32.mrb[0].mxu0
          %v862 = vadd.f32 0.0, %v861
          %v863 = vpop.f32.mrb[0].mxu0
          %864 = vmatprep.mubr.bf16.mxu0 %v661
          %865 = vmatmul.mubr.bf16.gmra.mrb[0].mxu0 %v660
          %v866 = vpop.f32.mrb[0].mxu0
          %v867 = vadd.f32 0.0, %v866
          %v868 = vpop.f32.mrb[0].mxu0
          %v869 = vpop.f32.mrb[0].mxu0
          %v870 = vadd.f32 0.0, %v869
          %v871 = vpop.f32.mrb[0].mxu0
          %872 = vmatprep.mubr.bf16.mxu0 %v663
          %873 = vmatmul.mubr.bf16.gmra.mrb[0].mxu0 %v662
          %v874 = vpop.f32.mrb[0].mxu0
          %v875 = vadd.f32 0.0, %v874
          %v876 = vpop.f32.mrb[0].mxu0
          %v877 = vpop.f32.mrb[0].mxu0
          %v878 = vadd.f32 0.0, %v877
          %v879 = vpop.f32.mrb[0].mxu0
          %880 = vmatprep.mubr.bf16.mxu0 %v665
          %881 = vmatmul.mubr.bf16.gmra.mrb[0].mxu0 %v664
          %v882 = vpop.f32.mrb[0].mxu0
          %v883 = vadd.f32 0.0, %v882
          %v884 = vpop.f32.mrb[0].mxu0
          %v885 = vpop.f32.mrb[0].mxu0
          %v886 = vadd.f32 0.0, %v885
          %v887 = vpop.f32.mrb[0].mxu0
          %888 = vmatprep.mubr.bf16.mxu0 %v667
          %889 = vmatmul.mubr.bf16.gmra.mrb[0].mxu0 %v666
          %v890 = vpop.f32.mrb[0].mxu0
          %v891 = vadd.f32 0.0, %v890
          %v892 = vpop.f32.mrb[0].mxu0
          %v893 = vpop.f32.mrb[0].mxu0
          %v894 = vadd.f32 0.0, %v893
          %v895 = vpop.f32.mrb[0].mxu0
          %896 = vmatprep.mubr.bf16.mxu0 %v669
          %897 = vmatmul.mubr.bf16.gmra.mrb[0].mxu0 %v668
          %v898 = vpop.f32.mrb[0].mxu0
          %v899 = vadd.f32 0.0, %v898
          %v900 = vpop.f32.mrb[0].mxu0
          %v901 = vpop.f32.mrb[0].mxu0
          %v902 = vadd.f32 0.0, %v901
          %v903 = vpop.f32.mrb[0].mxu0
          %904 = vmatprep.mubr.bf16.mxu0 %v671
          %905 = vmatmul.mubr.bf16.gmra.mrb[0].mxu0 %v670
          %v906 = vpop.f32.mrb[0].mxu0
          %v907 = vadd.f32 0.0, %v906
          %v908 = vpop.f32.mrb[0].mxu0
          %v909 = vpop.f32.mrb[0].mxu0
          %v910 = vadd.f32 0.0, %v909
          %v911 = vpop.f32.mrb[0].mxu0
          %912 = vmatprep.mubr.bf16.mxu0 %v673
          %913 = vmatmul.mubr.bf16.gmra.mrb[0].mxu0 %v672
          %v914 = vpop.f32.mrb[0].mxu0
          %v915 = vadd.f32 0.0, %v914
          %v916 = vpop.f32.mrb[0].mxu0
          %v917 = vpop.f32.mrb[0].mxu0
          %v918 = vadd.f32 0.0, %v917
          %v919 = vpop.f32.mrb[0].mxu0
          %920 = vmatprep.mubr.bf16.mxu0 %v675
          %921 = vmatmul.mubr.bf16.gmra.mrb[0].mxu0 %v674
          %v922 = vpop.f32.mrb[0].mxu0
          %v923 = vadd.f32 0.0, %v922
          %v924 = vpop.f32.mrb[0].mxu0
          %v925 = vpop.f32.mrb[0].mxu0
          %v926 = vadd.f32 0.0, %v925
          %v927 = vpop.f32.mrb[0].mxu0
          %928 = vmatprep.mubr.bf16.mxu0 %v677
          %929 = vmatmul.mubr.bf16.gmra.mrb[0].mxu0 %v676
          %v930 = vpop.f32.mrb[0].mxu0
          %v931 = vadd.f32 0.0, %v930
          %v932 = vpop.f32.mrb[0].mxu0
          %v933 = vpop.f32.mrb[0].mxu0
          %v934 = vadd.f32 0.0, %v933
          %v935 = vpop.f32.mrb[0].mxu0
          %936 = vmatprep.mubr.bf16.mxu0 %v679
          %937 = vmatmul.mubr.bf16.gmra.mrb[0].mxu0 %v678
          %v938 = vpop.f32.mrb[0].mxu0
          %v939 = vadd.f32 0.0, %v938
          %v940 = vpop.f32.mrb[0].mxu0
          %v941 = vpop.f32.mrb[0].mxu0
          %v942 = vadd.f32 0.0, %v941
          %v943 = vpop.f32.mrb[0].mxu0
          %944 = vmatprep.mubr.bf16.mxu0 %v681
          %945 = vmatmul.mubr.bf16.gmra.mrb[0].mxu0 %v680
          %v946 = vpop.f32.mrb[0].mxu0
          %v947 = vadd.f32 0.0, %v946
          %v948 = vpop.f32.mrb[0].mxu0
          %v949 = vpop.f32.mrb[0].mxu0
          %v950 = vadd.f32 0.0, %v949
          %v951 = vpop.f32.mrb[0].mxu0
          %952 = vmatprep.mubr.bf16.mxu0 %v683
          %953 = vmatmul.mubr.bf16.gmra.mrb[0].mxu0 %v682
          %v954 = vpop.f32.mrb[0].mxu0
          %v955 = vadd.f32 0.0, %v954
          %v956 = vpop.f32.mrb[0].mxu0
          %v957 = vpop.f32.mrb[0].mxu0
          %v958 = vadd.f32 0.0, %v957
          %v959 = vpop.f32.mrb[0].mxu0
          %960 = vmatprep.mubr.bf16.mxu0 %v685
          %961 = vmatmul.mubr.bf16.gmra.mrb[0].mxu0 %v684
          %v962 = vpop.f32.mrb[0].mxu0
          %v963 = vadd.f32 0.0, %v962
          %v964 = vpop.f32.mrb[0].mxu0
          %v965 = vpop.f32.mrb[0].mxu0
          %v966 = vadd.f32 0.0, %v965
          %v967 = vpop.f32.mrb[0].mxu0
          %968 = vmatprep.mubr.bf16.mxu0 %v687
          %969 = vmatmul.mubr.bf16.gmra.mrb[0].mxu0 %v686
          %v970 = vpop.f32.mrb[0].mxu0
          %v971 = vadd.f32 0.0, %v970
          %v972 = vpop.f32.mrb[0].mxu0
          %v973 = vpop.f32.mrb[0].mxu0
          %v974 = vadd.f32 0.0, %v973
          %v975 = vpop.f32.mrb[0].mxu0
          %976 = vdwg.mxu0
          %v977 = vadd.f32 %v464, %v851
          %v978 = vadd.f32 %v465, %v854
          %v979 = vadd.f32 %v466, %v859
          %v980 = vadd.f32 %v467, %v862
          %v981 = vadd.f32 %v468, %v867
          %v982 = vadd.f32 %v469, %v870
          %v983 = vadd.f32 %v470, %v875
          %v984 = vadd.f32 %v471, %v878
          %v985 = vadd.f32 %v472, %v883
          %v986 = vadd.f32 %v473, %v886
          %v987 = vadd.f32 %v474, %v891
          %v988 = vadd.f32 %v475, %v894
          %v989 = vadd.f32 %v476, %v899
          %v990 = vadd.f32 %v477, %v902
          %v991 = vadd.f32 %v478, %v907
          %v992 = vadd.f32 %v479, %v910
          %v993 = vadd.f32 %v480, %v915
          %v994 = vadd.f32 %v481, %v918
          %v995 = vadd.f32 %v482, %v923
          %v996 = vadd.f32 %v483, %v926
          %v997 = vadd.f32 %v484, %v931
          %v998 = vadd.f32 %v485, %v934
          %v999 = vadd.f32 %v486, %v939
          %v1000 = vadd.f32 %v487, %v942
          %v1001 = vadd.f32 %v488, %v947
          %v1002 = vadd.f32 %v489, %v950
          %v1003 = vadd.f32 %v490, %v955
          %v1004 = vadd.f32 %v491, %v958
          %v1005 = vadd.f32 %v492, %v963
          %v1006 = vadd.f32 %v493, %v966
          %v1007 = vadd.f32 %v494, %v971
          %v1008 = vadd.f32 %v495, %v974
          %1009 = vst [vmem:[#allocation2] sm:$0xff] %v977
          %1010 = vst [vmem:[#allocation2 + $0x8] sm:$0xff] %v978
          %1011 = vst [vmem:[#allocation2 + $0x10] sm:$0xff] %v979
          %1012 = vst [vmem:[#allocation2 + $0x18] sm:$0xff] %v980
          %1013 = vst [vmem:[#allocation2 + $0x20] sm:$0xff] %v981
          %1014 = vst [vmem:[#allocation2 + $0x28] sm:$0xff] %v982
          %1015 = vst [vmem:[#allocation2 + $0x30] sm:$0xff] %v983
          %1016 = vst [vmem:[#allocation2 + $0x38] sm:$0xff] %v984
          %1017 = vst [vmem:[#allocation2 + $0x40] sm:$0xff] %v985
          %1018 = vst [vmem:[#allocation2 + $0x48] sm:$0xff] %v986
          %1019 = vst [vmem:[#allocation2 + $0x50] sm:$0xff] %v987
          %1020 = vst [vmem:[#allocation2 + $0x58] sm:$0xff] %v988
          %1021 = vst [vmem:[#allocation2 + $0x60] sm:$0xff] %v989
          %1022 = vst [vmem:[#allocation2 + $0x68] sm:$0xff] %v990
          %1023 = vst [vmem:[#allocation2 + $0x70] sm:$0xff] %v991
          %1024 = vst [vmem:[#allocation2 + $0x78] sm:$0xff] %v992
          %1025 = vst [vmem:[#allocation2 + $0x80] sm:$0xff] %v993
          %1026 = vst [vmem:[#allocation2 + $0x88] sm:$0xff] %v994
          %1027 = vst [vmem:[#allocation2 + $0x90] sm:$0xff] %v995
          %1028 = vst [vmem:[#allocation2 + $0x98] sm:$0xff] %v996
          %1029 = vst [vmem:[#allocation2 + $0xa0] sm:$0xff] %v997
          %1030 = vst [vmem:[#allocation2 + $0xa8] sm:$0xff] %v998
          %1031 = vst [vmem:[#allocation2 + $0xb0] sm:$0xff] %v999
          %1032 = vst [vmem:[#allocation2 + $0xb8] sm:$0xff] %v1000
          %1033 = vst [vmem:[#allocation2 + $0xc0] sm:$0xff] %v1001
          %1034 = vst [vmem:[#allocation2 + $0xc8] sm:$0xff] %v1002
          %1035 = vst [vmem:[#allocation2 + $0xd0] sm:$0xff] %v1003
          %1036 = vst [vmem:[#allocation2 + $0xd8] sm:$0xff] %v1004
          %1037 = vst [vmem:[#allocation2 + $0xe0] sm:$0xff] %v1005
          %1038 = vst [vmem:[#allocation2 + $0xe8] sm:$0xff] %v1006
          %1039 = vst [vmem:[#allocation2 + $0xf0] sm:$0xff] %v1007
          %1040 = vst [vmem:[#allocation2 + $0xf8] sm:$0xff] %v1008
        $region78: #{_gcn_forward_padded.5} parent=65 // pred_fallthru
          _
        %p1041 = scmp.eq.s32.totalorder %s34, 3
        // Predicated region
        $region79: #{_gcn_forward_padded.5} parent=65 // pred_check
          %p1042 = pneg %p1041
        $region80: #{_gcn_forward_padded.5} parent=65 // pred_check_branch
          %1044 = sbr.rel (%p1042) target = $region82
        $region81: #{_gcn_forward_padded.5} parent=65 // pred_region
          %v1045 = vld [vmem:[#allocation2] sm:$0xff]
          %v1046 = vld [vmem:[#allocation2 + $0x8] sm:$0xff]
          %v1047 = vld [vmem:[#allocation2 + $0x10] sm:$0xff]
          %v1048 = vld [vmem:[#allocation2 + $0x18] sm:$0xff]
          %v1049 = vld [vmem:[#allocation2 + $0x20] sm:$0xff]
          %v1050 = vld [vmem:[#allocation2 + $0x28] sm:$0xff]
          %v1051 = vld [vmem:[#allocation2 + $0x30] sm:$0xff]
          %v1052 = vld [vmem:[#allocation2 + $0x38] sm:$0xff]
          %v1053 = vld [vmem:[#allocation2 + $0x40] sm:$0xff]
          %v1054 = vld [vmem:[#allocation2 + $0x48] sm:$0xff]
          %v1055 = vld [vmem:[#allocation2 + $0x50] sm:$0xff]
          %v1056 = vld [vmem:[#allocation2 + $0x58] sm:$0xff]
          %v1057 = vld [vmem:[#allocation2 + $0x60] sm:$0xff]
          %v1058 = vld [vmem:[#allocation2 + $0x68] sm:$0xff]
          %v1059 = vld [vmem:[#allocation2 + $0x70] sm:$0xff]
          %v1060 = vld [vmem:[#allocation2 + $0x78] sm:$0xff]
          %v1061 = vld [vmem:[#allocation2 + $0x80] sm:$0xff]
          %v1062 = vld [vmem:[#allocation2 + $0x88] sm:$0xff]
          %v1063 = vld [vmem:[#allocation2 + $0x90] sm:$0xff]
          %v1064 = vld [vmem:[#allocation2 + $0x98] sm:$0xff]
          %v1065 = vld [vmem:[#allocation2 + $0xa0] sm:$0xff]
          %v1066 = vld [vmem:[#allocation2 + $0xa8] sm:$0xff]
          %v1067 = vld [vmem:[#allocation2 + $0xb0] sm:$0xff]
          %v1068 = vld [vmem:[#allocation2 + $0xb8] sm:$0xff]
          %v1069 = vld [vmem:[#allocation2 + $0xc0] sm:$0xff]
          %v1070 = vld [vmem:[#allocation2 + $0xc8] sm:$0xff]
          %v1071 = vld [vmem:[#allocation2 + $0xd0] sm:$0xff]
          %v1072 = vld [vmem:[#allocation2 + $0xd8] sm:$0xff]
          %v1073 = vld [vmem:[#allocation2 + $0xe0] sm:$0xff]
          %v1074 = vld [vmem:[#allocation2 + $0xe8] sm:$0xff]
          %v1075 = vld [vmem:[#allocation2 + $0xf0] sm:$0xff]
          %v1076 = vld [vmem:[#allocation2 + $0xf8] sm:$0xff]
          %v1077 = vlaneseq
          %v1078 = vand.u32 %v1077, 127
          %vm1079 = vcmp.lt.s32.totalorder %v1078, 7
          %v1080 = vsel %vm1079, %v1045, -1e+30
          %v1081 = vsel %vm1079, %v1046, -1e+30
          %v1082 = vsel %vm1079, %v1047, -1e+30
          %v1083 = vsel %vm1079, %v1048, -1e+30
          %v1084 = vsel %vm1079, %v1049, -1e+30
          %v1085 = vsel %vm1079, %v1050, -1e+30
          %v1086 = vsel %vm1079, %v1051, -1e+30
          %v1087 = vsel %vm1079, %v1052, -1e+30
          %v1088 = vsel %vm1079, %v1053, -1e+30
          %v1089 = vsel %vm1079, %v1054, -1e+30
          %v1090 = vsel %vm1079, %v1055, -1e+30
          %v1091 = vsel %vm1079, %v1056, -1e+30
          %v1092 = vsel %vm1079, %v1057, -1e+30
          %v1093 = vsel %vm1079, %v1058, -1e+30
          %v1094 = vsel %vm1079, %v1059, -1e+30
          %v1095 = vsel %vm1079, %v1060, -1e+30
          %v1096 = vsel %vm1079, %v1061, -1e+30
          %v1097 = vsel %vm1079, %v1062, -1e+30
          %v1098 = vsel %vm1079, %v1063, -1e+30
          %v1099 = vsel %vm1079, %v1064, -1e+30
          %v1100 = vsel %vm1079, %v1065, -1e+30
          %v1101 = vsel %vm1079, %v1066, -1e+30
          %v1102 = vsel %vm1079, %v1067, -1e+30
          %v1103 = vsel %vm1079, %v1068, -1e+30
          %v1104 = vsel %vm1079, %v1069, -1e+30
          %v1105 = vsel %vm1079, %v1070, -1e+30
          %v1106 = vsel %vm1079, %v1071, -1e+30
          %v1107 = vsel %vm1079, %v1072, -1e+30
          %v1108 = vsel %vm1079, %v1073, -1e+30
          %v1109 = vsel %vm1079, %v1074, -1e+30
          %v1110 = vsel %vm1079, %v1075, -1e+30
          %v1111 = vsel %vm1079, %v1076, -1e+30
          %1112 = vmax.xlane.f32.xlu0 %v1080
          %v1113 = vpop.xlane.xlu0 %1112
          %1114 = vmax.xlane.f32.xlu0 %v1081
          %v1115 = vpop.xlane.xlu0 %1114
          %1116 = vmax.xlane.f32.xlu0 %v1082
          %v1117 = vpop.xlane.xlu0 %1116
          %1118 = vmax.xlane.f32.xlu0 %v1083
          %v1119 = vpop.xlane.xlu0 %1118
          %1120 = vmax.xlane.f32.xlu0 %v1084
          %v1121 = vpop.xlane.xlu0 %1120
          %1122 = vmax.xlane.f32.xlu0 %v1085
          %v1123 = vpop.xlane.xlu0 %1122
          %1124 = vmax.xlane.f32.xlu0 %v1086
          %v1125 = vpop.xlane.xlu0 %1124
          %1126 = vmax.xlane.f32.xlu0 %v1087
          %v1127 = vpop.xlane.xlu0 %1126
          %1128 = vmax.xlane.f32.xlu0 %v1088
          %v1129 = vpop.xlane.xlu0 %1128
          %1130 = vmax.xlane.f32.xlu0 %v1089
          %v1131 = vpop.xlane.xlu0 %1130
          %1132 = vmax.xlane.f32.xlu0 %v1090
          %v1133 = vpop.xlane.xlu0 %1132
          %1134 = vmax.xlane.f32.xlu0 %v1091
          %v1135 = vpop.xlane.xlu0 %1134
          %1136 = vmax.xlane.f32.xlu0 %v1092
          %v1137 = vpop.xlane.xlu0 %1136
          %1138 = vmax.xlane.f32.xlu0 %v1093
          %v1139 = vpop.xlane.xlu0 %1138
          %1140 = vmax.xlane.f32.xlu0 %v1094
          %v1141 = vpop.xlane.xlu0 %1140
          %1142 = vmax.xlane.f32.xlu0 %v1095
          %v1143 = vpop.xlane.xlu0 %1142
          %1144 = vmax.xlane.f32.xlu0 %v1096
          %v1145 = vpop.xlane.xlu0 %1144
          %1146 = vmax.xlane.f32.xlu0 %v1097
          %v1147 = vpop.xlane.xlu0 %1146
          %1148 = vmax.xlane.f32.xlu0 %v1098
          %v1149 = vpop.xlane.xlu0 %1148
          %1150 = vmax.xlane.f32.xlu0 %v1099
          %v1151 = vpop.xlane.xlu0 %1150
          %1152 = vmax.xlane.f32.xlu0 %v1100
          %v1153 = vpop.xlane.xlu0 %1152
          %1154 = vmax.xlane.f32.xlu0 %v1101
          %v1155 = vpop.xlane.xlu0 %1154
          %1156 = vmax.xlane.f32.xlu0 %v1102
          %v1157 = vpop.xlane.xlu0 %1156
          %1158 = vmax.xlane.f32.xlu0 %v1103
          %v1159 = vpop.xlane.xlu0 %1158
          %1160 = vmax.xlane.f32.xlu0 %v1104
          %v1161 = vpop.xlane.xlu0 %1160
          %1162 = vmax.xlane.f32.xlu0 %v1105
          %v1163 = vpop.xlane.xlu0 %1162
          %1164 = vmax.xlane.f32.xlu0 %v1106
          %v1165 = vpop.xlane.xlu0 %1164
          %1166 = vmax.xlane.f32.xlu0 %v1107
          %v1167 = vpop.xlane.xlu0 %1166
          %1168 = vmax.xlane.f32.xlu0 %v1108
          %v1169 = vpop.xlane.xlu0 %1168
          %1170 = vmax.xlane.f32.xlu0 %v1109
          %v1171 = vpop.xlane.xlu0 %1170
          %1172 = vmax.xlane.f32.xlu0 %v1110
          %v1173 = vpop.xlane.xlu0 %1172
          %1174 = vmax.xlane.f32.xlu0 %v1111
          %v1175 = vpop.xlane.xlu0 %1174
          %v1176 = vsub.f32 %v1080, %v1113
          %v1177 = vsub.f32 %v1081, %v1115
          %v1178 = vsub.f32 %v1082, %v1117
          %v1179 = vsub.f32 %v1083, %v1119
          %v1180 = vsub.f32 %v1084, %v1121
          %v1181 = vsub.f32 %v1085, %v1123
          %v1182 = vsub.f32 %v1086, %v1125
          %v1183 = vsub.f32 %v1087, %v1127
          %v1184 = vsub.f32 %v1088, %v1129
          %v1185 = vsub.f32 %v1089, %v1131
          %v1186 = vsub.f32 %v1090, %v1133
          %v1187 = vsub.f32 %v1091, %v1135
          %v1188 = vsub.f32 %v1092, %v1137
          %v1189 = vsub.f32 %v1093, %v1139
          %v1190 = vsub.f32 %v1094, %v1141
          %v1191 = vsub.f32 %v1095, %v1143
          %v1192 = vsub.f32 %v1096, %v1145
          %v1193 = vsub.f32 %v1097, %v1147
          %v1194 = vsub.f32 %v1098, %v1149
          %v1195 = vsub.f32 %v1099, %v1151
          %v1196 = vsub.f32 %v1100, %v1153
          %v1197 = vsub.f32 %v1101, %v1155
          %v1198 = vsub.f32 %v1102, %v1157
          %v1199 = vsub.f32 %v1103, %v1159
          %v1200 = vsub.f32 %v1104, %v1161
          %v1201 = vsub.f32 %v1105, %v1163
          %v1202 = vsub.f32 %v1106, %v1165
          %v1203 = vsub.f32 %v1107, %v1167
          %v1204 = vsub.f32 %v1108, %v1169
          %v1205 = vsub.f32 %v1109, %v1171
          %v1206 = vsub.f32 %v1110, %v1173
          %v1207 = vsub.f32 %v1111, %v1175
          %v1208 = vmul.f32 %v1176, 1.442695
          %v1209 = vpow.pop %v1208
          %v1210 = vmul.f32 %v1177, 1.442695
          %v1211 = vpow.pop %v1210
          %v1212 = vmul.f32 %v1178, 1.442695
          %v1213 = vpow.pop %v1212
          %v1214 = vmul.f32 %v1179, 1.442695
          %v1215 = vpow.pop %v1214
          %v1216 = vmul.f32 %v1180, 1.442695
          %v1217 = vpow.pop %v1216
          %v1218 = vmul.f32 %v1181, 1.442695
          %v1219 = vpow.pop %v1218
          %v1220 = vmul.f32 %v1182, 1.442695
          %v1221 = vpow.pop %v1220
          %v1222 = vmul.f32 %v1183, 1.442695
          %v1223 = vpow.pop %v1222
          %v1224 = vmul.f32 %v1184, 1.442695
          %v1225 = vpow.pop %v1224
          %v1226 = vmul.f32 %v1185, 1.442695
          %v1227 = vpow.pop %v1226
          %v1228 = vmul.f32 %v1186, 1.442695
          %v1229 = vpow.pop %v1228
          %v1230 = vmul.f32 %v1187, 1.442695
          %v1231 = vpow.pop %v1230
          %v1232 = vmul.f32 %v1188, 1.442695
          %v1233 = vpow.pop %v1232
          %v1234 = vmul.f32 %v1189, 1.442695
          %v1235 = vpow.pop %v1234
          %v1236 = vmul.f32 %v1190, 1.442695
          %v1237 = vpow.pop %v1236
          %v1238 = vmul.f32 %v1191, 1.442695
          %v1239 = vpow.pop %v1238
          %v1240 = vmul.f32 %v1192, 1.442695
          %v1241 = vpow.pop %v1240
          %v1242 = vmul.f32 %v1193, 1.442695
          %v1243 = vpow.pop %v1242
          %v1244 = vmul.f32 %v1194, 1.442695
          %v1245 = vpow.pop %v1244
          %v1246 = vmul.f32 %v1195, 1.442695
          %v1247 = vpow.pop %v1246
          %v1248 = vmul.f32 %v1196, 1.442695
          %v1249 = vpow.pop %v1248
          %v1250 = vmul.f32 %v1197, 1.442695
          %v1251 = vpow.pop %v1250
          %v1252 = vmul.f32 %v1198, 1.442695
          %v1253 = vpow.pop %v1252
          %v1254 = vmul.f32 %v1199, 1.442695
          %v1255 = vpow.pop %v1254
          %v1256 = vmul.f32 %v1200, 1.442695
          %v1257 = vpow.pop %v1256
          %v1258 = vmul.f32 %v1201, 1.442695
          %v1259 = vpow.pop %v1258
          %v1260 = vmul.f32 %v1202, 1.442695
          %v1261 = vpow.pop %v1260
          %v1262 = vmul.f32 %v1203, 1.442695
          %v1263 = vpow.pop %v1262
          %v1264 = vmul.f32 %v1204, 1.442695
          %v1265 = vpow.pop %v1264
          %v1266 = vmul.f32 %v1205, 1.442695
          %v1267 = vpow.pop %v1266
          %v1268 = vmul.f32 %v1206, 1.442695
          %v1269 = vpow.pop %v1268
          %v1270 = vmul.f32 %v1207, 1.442695
          %v1271 = vpow.pop %v1270
          %1272 = vadd.xlane.f32.xlu0 %v1209
          %v1273 = vpop.xlane.xlu0 %1272
          %1274 = vadd.xlane.f32.xlu0 %v1211
          %v1275 = vpop.xlane.xlu0 %1274
          %1276 = vadd.xlane.f32.xlu0 %v1213
          %v1277 = vpop.xlane.xlu0 %1276
          %1278 = vadd.xlane.f32.xlu0 %v1215
          %v1279 = vpop.xlane.xlu0 %1278
          %1280 = vadd.xlane.f32.xlu0 %v1217
          %v1281 = vpop.xlane.xlu0 %1280
          %1282 = vadd.xlane.f32.xlu0 %v1219
          %v1283 = vpop.xlane.xlu0 %1282
          %1284 = vadd.xlane.f32.xlu0 %v1221
          %v1285 = vpop.xlane.xlu0 %1284
          %1286 = vadd.xlane.f32.xlu0 %v1223
          %v1287 = vpop.xlane.xlu0 %1286
          %1288 = vadd.xlane.f32.xlu0 %v1225
          %v1289 = vpop.xlane.xlu0 %1288
          %1290 = vadd.xlane.f32.xlu0 %v1227
          %v1291 = vpop.xlane.xlu0 %1290
          %1292 = vadd.xlane.f32.xlu0 %v1229
          %v1293 = vpop.xlane.xlu0 %1292
          %1294 = vadd.xlane.f32.xlu0 %v1231
          %v1295 = vpop.xlane.xlu0 %1294
          %1296 = vadd.xlane.f32.xlu0 %v1233
          %v1297 = vpop.xlane.xlu0 %1296
          %1298 = vadd.xlane.f32.xlu0 %v1235
          %v1299 = vpop.xlane.xlu0 %1298
          %1300 = vadd.xlane.f32.xlu0 %v1237
          %v1301 = vpop.xlane.xlu0 %1300
          %1302 = vadd.xlane.f32.xlu0 %v1239
          %v1303 = vpop.xlane.xlu0 %1302
          %1304 = vadd.xlane.f32.xlu0 %v1241
          %v1305 = vpop.xlane.xlu0 %1304
          %1306 = vadd.xlane.f32.xlu0 %v1243
          %v1307 = vpop.xlane.xlu0 %1306
          %1308 = vadd.xlane.f32.xlu0 %v1245
          %v1309 = vpop.xlane.xlu0 %1308
          %1310 = vadd.xlane.f32.xlu0 %v1247
          %v1311 = vpop.xlane.xlu0 %1310
          %1312 = vadd.xlane.f32.xlu0 %v1249
          %v1313 = vpop.xlane.xlu0 %1312
          %1314 = vadd.xlane.f32.xlu0 %v1251
          %v1315 = vpop.xlane.xlu0 %1314
          %1316 = vadd.xlane.f32.xlu0 %v1253
          %v1317 = vpop.xlane.xlu0 %1316
          %1318 = vadd.xlane.f32.xlu0 %v1255
          %v1319 = vpop.xlane.xlu0 %1318
          %1320 = vadd.xlane.f32.xlu0 %v1257
          %v1321 = vpop.xlane.xlu0 %1320
          %1322 = vadd.xlane.f32.xlu0 %v1259
          %v1323 = vpop.xlane.xlu0 %1322
          %1324 = vadd.xlane.f32.xlu0 %v1261
          %v1325 = vpop.xlane.xlu0 %1324
          %1326 = vadd.xlane.f32.xlu0 %v1263
          %v1327 = vpop.xlane.xlu0 %1326
          %1328 = vadd.xlane.f32.xlu0 %v1265
          %v1329 = vpop.xlane.xlu0 %1328
          %1330 = vadd.xlane.f32.xlu0 %v1267
          %v1331 = vpop.xlane.xlu0 %1330
          %1332 = vadd.xlane.f32.xlu0 %v1269
          %v1333 = vpop.xlane.xlu0 %1332
          %1334 = vadd.xlane.f32.xlu0 %v1271
          %v1335 = vpop.xlane.xlu0 %1334
          %v1336 = vlog2.pop %v1273
          %v1337 = vmul.f32 %v1336, 0.6931472
          %v1338 = vlog2.pop %v1275
          %v1339 = vmul.f32 %v1338, 0.6931472
          %v1340 = vlog2.pop %v1277
          %v1341 = vmul.f32 %v1340, 0.6931472
          %v1342 = vlog2.pop %v1279
          %v1343 = vmul.f32 %v1342, 0.6931472
          %v1344 = vlog2.pop %v1281
          %v1345 = vmul.f32 %v1344, 0.6931472
          %v1346 = vlog2.pop %v1283
          %v1347 = vmul.f32 %v1346, 0.6931472
          %v1348 = vlog2.pop %v1285
          %v1349 = vmul.f32 %v1348, 0.6931472
          %v1350 = vlog2.pop %v1287
          %v1351 = vmul.f32 %v1350, 0.6931472
          %v1352 = vlog2.pop %v1289
          %v1353 = vmul.f32 %v1352, 0.6931472
          %v1354 = vlog2.pop %v1291
          %v1355 = vmul.f32 %v1354, 0.6931472
          %v1356 = vlog2.pop %v1293
          %v1357 = vmul.f32 %v1356, 0.6931472
          %v1358 = vlog2.pop %v1295
          %v1359 = vmul.f32 %v1358, 0.6931472
          %v1360 = vlog2.pop %v1297
          %v1361 = vmul.f32 %v1360, 0.6931472
          %v1362 = vlog2.pop %v1299
          %v1363 = vmul.f32 %v1362, 0.6931472
          %v1364 = vlog2.pop %v1301
          %v1365 = vmul.f32 %v1364, 0.6931472
          %v1366 = vlog2.pop %v1303
          %v1367 = vmul.f32 %v1366, 0.6931472
          %v1368 = vlog2.pop %v1305
          %v1369 = vmul.f32 %v1368, 0.6931472
          %v1370 = vlog2.pop %v1307
          %v1371 = vmul.f32 %v1370, 0.6931472
          %v1372 = vlog2.pop %v1309
          %v1373 = vmul.f32 %v1372, 0.6931472
          %v1374 = vlog2.pop %v1311
          %v1375 = vmul.f32 %v1374, 0.6931472
          %v1376 = vlog2.pop %v1313
          %v1377 = vmul.f32 %v1376, 0.6931472
          %v1378 = vlog2.pop %v1315
          %v1379 = vmul.f32 %v1378, 0.6931472
          %v1380 = vlog2.pop %v1317
          %v1381 = vmul.f32 %v1380, 0.6931472
          %v1382 = vlog2.pop %v1319
          %v1383 = vmul.f32 %v1382, 0.6931472
          %v1384 = vlog2.pop %v1321
          %v1385 = vmul.f32 %v1384, 0.6931472
          %v1386 = vlog2.pop %v1323
          %v1387 = vmul.f32 %v1386, 0.6931472
          %v1388 = vlog2.pop %v1325
          %v1389 = vmul.f32 %v1388, 0.6931472
          %v1390 = vlog2.pop %v1327
          %v1391 = vmul.f32 %v1390, 0.6931472
          %v1392 = vlog2.pop %v1329
          %v1393 = vmul.f32 %v1392, 0.6931472
          %v1394 = vlog2.pop %v1331
          %v1395 = vmul.f32 %v1394, 0.6931472
          %v1396 = vlog2.pop %v1333
          %v1397 = vmul.f32 %v1396, 0.6931472
          %v1398 = vlog2.pop %v1335
          %v1399 = vmul.f32 %v1398, 0.6931472
          %v1400 = vsub.f32 %v1176, %v1337
          %v1401 = vsub.f32 %v1177, %v1339
          %v1402 = vsub.f32 %v1178, %v1341
          %v1403 = vsub.f32 %v1179, %v1343
          %v1404 = vsub.f32 %v1180, %v1345
          %v1405 = vsub.f32 %v1181, %v1347
          %v1406 = vsub.f32 %v1182, %v1349
          %v1407 = vsub.f32 %v1183, %v1351
          %v1408 = vsub.f32 %v1184, %v1353
          %v1409 = vsub.f32 %v1185, %v1355
          %v1410 = vsub.f32 %v1186, %v1357
          %v1411 = vsub.f32 %v1187, %v1359
          %v1412 = vsub.f32 %v1188, %v1361
          %v1413 = vsub.f32 %v1189, %v1363
          %v1414 = vsub.f32 %v1190, %v1365
          %v1415 = vsub.f32 %v1191, %v1367
          %v1416 = vsub.f32 %v1192, %v1369
          %v1417 = vsub.f32 %v1193, %v1371
          %v1418 = vsub.f32 %v1194, %v1373
          %v1419 = vsub.f32 %v1195, %v1375
          %v1420 = vsub.f32 %v1196, %v1377
          %v1421 = vsub.f32 %v1197, %v1379
          %v1422 = vsub.f32 %v1198, %v1381
          %v1423 = vsub.f32 %v1199, %v1383
          %v1424 = vsub.f32 %v1200, %v1385
          %v1425 = vsub.f32 %v1201, %v1387
          %v1426 = vsub.f32 %v1202, %v1389
          %v1427 = vsub.f32 %v1203, %v1391
          %v1428 = vsub.f32 %v1204, %v1393
          %v1429 = vsub.f32 %v1205, %v1395
          %v1430 = vsub.f32 %v1206, %v1397
          %v1431 = vsub.f32 %v1207, %v1399
          %1432 = vst [vmem:[%s396] sm:$0xff] %v1400
          %1433 = vst [vmem:[%s396 + $0x8] sm:$0xff] %v1401
          %1434 = vst [vmem:[%s396 + $0x10] sm:$0xff] %v1402
          %1435 = vst [vmem:[%s396 + $0x18] sm:$0xff] %v1403
          %1436 = vst [vmem:[%s396 + $0x20] sm:$0xff] %v1404
          %1437 = vst [vmem:[%s396 + $0x28] sm:$0xff] %v1405
          %1438 = vst [vmem:[%s396 + $0x30] sm:$0xff] %v1406
          %1439 = vst [vmem:[%s396 + $0x38] sm:$0xff] %v1407
          %1440 = vst [vmem:[%s396 + $0x40] sm:$0xff] %v1408
          %1441 = vst [vmem:[%s396 + $0x48] sm:$0xff] %v1409
          %1442 = vst [vmem:[%s396 + $0x50] sm:$0xff] %v1410
          %1443 = vst [vmem:[%s396 + $0x58] sm:$0xff] %v1411
          %1444 = vst [vmem:[%s396 + $0x60] sm:$0xff] %v1412
          %1445 = vst [vmem:[%s396 + $0x68] sm:$0xff] %v1413
          %1446 = vst [vmem:[%s396 + $0x70] sm:$0xff] %v1414
          %1447 = vst [vmem:[%s396 + $0x78] sm:$0xff] %v1415
          %1448 = vst [vmem:[%s396 + $0x80] sm:$0xff] %v1416
          %1449 = vst [vmem:[%s396 + $0x88] sm:$0xff] %v1417
          %1450 = vst [vmem:[%s396 + $0x90] sm:$0xff] %v1418
          %1451 = vst [vmem:[%s396 + $0x98] sm:$0xff] %v1419
          %1452 = vst [vmem:[%s396 + $0xa0] sm:$0xff] %v1420
          %1453 = vst [vmem:[%s396 + $0xa8] sm:$0xff] %v1421
          %1454 = vst [vmem:[%s396 + $0xb0] sm:$0xff] %v1422
          %1455 = vst [vmem:[%s396 + $0xb8] sm:$0xff] %v1423
          %1456 = vst [vmem:[%s396 + $0xc0] sm:$0xff] %v1424
          %1457 = vst [vmem:[%s396 + $0xc8] sm:$0xff] %v1425
          %1458 = vst [vmem:[%s396 + $0xd0] sm:$0xff] %v1426
          %1459 = vst [vmem:[%s396 + $0xd8] sm:$0xff] %v1427
          %1460 = vst [vmem:[%s396 + $0xe0] sm:$0xff] %v1428
          %1461 = vst [vmem:[%s396 + $0xe8] sm:$0xff] %v1429
          %1462 = vst [vmem:[%s396 + $0xf0] sm:$0xff] %v1430
          %1463 = vst [vmem:[%s396 + $0xf8] sm:$0xff] %v1431
        $region82: #{_gcn_forward_padded.5} parent=65 // pred_fallthru
          _
        %s1464 = sand.u32 %s136, 1
        %s1465 = scalar_lea.sflag [#allocation8], %s1464
        %s1466 = sand.u32 %s136, 1
        %s1467 = smul.addr %s1466, 256
        %s1468 = scalar_lea.vmem [#allocation7], %s1467
        // Predicated region
        $region83: #{_gcn_forward_padded.5} parent=65 // pred_check
          %p1469 = pneg %p146
        $region84: #{_gcn_forward_padded.5} parent=65 // pred_check_branch
          %1471 = sbr.rel (%p1469) target = $region86
        $region85: #{_gcn_forward_padded.5} parent=65 // pred_region
          %s1472 = smul.u32 32, %s33
          %s1474 = ssub.s32 4096, 4096
          %1475 = vsyncadd %s1465, %s1474
          %s1476 = smul.addr %s1472, 128
          %s1477 = scalar_lea.hbm %s5, %s1476
          %s1478 = sshll.u32 %s1468, 4
          %s1479 = int_to_ptr.vmem [resolvable:$true] %s1478
          %1484 = dma.vmem_to_hbm [thread:$0]  %s1479, 4096, %s1477, %s1465, 128, 128, 8
        $region86: #{_gcn_forward_padded.5} parent=65 // pred_fallthru
          _
      $region66: #{_gcn_forward_padded.5} parent=5 // pred_fallthru
        _
      %p1485 = scmp.le.s32.totalorder 2, %s24
      // Predicated region
      $region87: #{_gcn_forward_padded.5} parent=5 // pred_check
        %p1486 = pneg %p1485
      $region88: #{_gcn_forward_padded.5} parent=5 // pred_check_branch
        %1488 = sbr.rel (%p1486) target = $region90
      $region89: #{_gcn_forward_padded.5} parent=5 // pred_region
        %s1489 = ssub.s32 %s24, 2
        // Predicated region
        $region91: #{_gcn_forward_padded.5} parent=89 // pred_check
          %p1490 = pneg %p152
        $region92: #{_gcn_forward_padded.5} parent=89 // pred_check_branch
          %1492 = sbr.rel (%p1490) target = $region94
        $region93: #{_gcn_forward_padded.5} parent=89 // pred_region
          %s1493 = sand.u32 %s137, 1
          %s1494 = scalar_lea.sflag [#allocation8], %s1493
          %s1495 = sand.u32 %s137, 1
          %s1496 = smul.addr %s1495, 256
          %s1497 = scalar_lea.vmem [#allocation7], %s1496
          %1498 = dma.done %s1494, 4096
        $region94: #{_gcn_forward_padded.5} parent=89 // pred_fallthru
          _
      $region90: #{_gcn_forward_padded.5} parent=5 // pred_fallthru
        _
    $region6: #{_gcn_forward_padded.5} parent=1 // loop_footer
      %s28 = sadd.s32 1, %s24
    $region7: #{_gcn_forward_padded.5} parent=1 // loop_footer_branch
      %23 = sbr.rel target = $region3
    $region8: #{_gcn_forward_padded.5} parent=1 // loop_exit
      _
    %1499 = vsyncpa [#allocation8], 1
    %s1500 = scalar_lea.sflag [#allocation8], 1
    %1501 = vsyncpa %s1500, 1

// kernel: _gcn_forward_padded.4
$region0: #{_gcn_forward_padded.4}
  #allocation0 [shape = 'u32[]', space=smem, size = 0x4, offset = 0x4, fixed_abs, tag = 'smem constant byte address 0x4 - core index']
  #allocation1 [shape = 'u32[144,128]{1,0:T(1,128)}', space=vmem, size = 0x12000, scoped, tag = 'internal scratch']
  #allocation2 [shape = 'f32[256,128]{1,0:T(8,128)}', space=vmem, size = 0x20000, scoped, tag = 'scratch operand']
  #allocation3 [shape = 's32[1]{0}', space=sflag, size = 0x4, scoped, tag = 'scoped memory for _gcn_forward_padded.4']
  #allocation4 [shape = 'u8[512]{0}', space=smem, size = 0x200, scoped, tag = 'prefetched SMEM operand 0']
  #allocation5 [shape = 'u8[512]{0}', space=smem, size = 0x200, scoped, tag = 'prefetched SMEM operand 1']
  %s0 = inlined_call_operand.hbm [shape: s32[16], index: 0, kind: input, shape index: {}]
  %s1 = inlined_call_operand.hbm [shape: s32[4], index: 1, kind: input, shape index: {}]
  %s2 = inlined_call_operand.hbm [shape: bf16[1024,1024], index: 2, kind: input, shape index: {}]
  %s3 = inlined_call_operand.vmem [shape: bf16[1024,128], index: 3, kind: input, shape index: {}]
  %s4 = inlined_call_operand.hbm [shape: bf16[1,128], index: 4, kind: input, shape index: {}]
  %s5 = inlined_call_operand.hbm [shape: bf16[128,128], index: 5, kind: input, shape index: {}]
  %s6 = inlined_call_operand.vmem [shape: bf16[1024,128], index: 6, kind: output, shape index: {}]
  %s7 = sld [smem:[#allocation0]]
  $region73: #{_gcn_forward_padded.4} parent=0
    _
  %s9 = ssub.s32 1, %s7
  %s10 = scalar_select 0, %s9, %s7
  %12 = dma.hbm_to_smem %s0, 16, [#allocation4], [#allocation3]
  %14 = dma.hbm_to_smem %s1, 16, [#allocation5], [#allocation3]
  %15 = dma.done [#allocation3], 32
  %16 = sfence
  $region1: #{_gcn_forward_padded.4} parent=0
    #allocation6 [shape = 'u8[262144]{0}', space=vmem, size = 0x40000, scoped, tag = 'input window, operand 2']
    #allocation7 [shape = 's32[2]{0}', space=sflag, size = 0x8, scoped, tag = 'scoped memory for _gcn_forward_padded.4']
    #allocation8 [shape = 'u8[512]{0}', space=vmem, size = 0x400, scoped, tag = 'input window, operand 4, single buffered']
    #allocation9 [shape = 's32[1]{0}', space=sflag, size = 0x4, scoped, tag = 'scoped memory for _gcn_forward_padded.4']
    #allocation10 [shape = 'u8[32768]{0}', space=vmem, size = 0x8000, scoped, tag = 'input window, operand 5, single buffered']
    %17 = vsyncpa [#allocation7], 0
    %s18 = scalar_lea.sflag [#allocation7], 1
    %19 = vsyncpa %s18, 0
    %20 = vsyncpa [#allocation9], 0
    loop: start=0, step=1, limit=18
    $region2: #{_gcn_forward_padded.4} parent=1 // loop_pre_header
      _
    $region3: #{_gcn_forward_padded.4} parent=1 // loop_header
      %s22 = sphi 0, %s26
      %p23 = scmp.ge.s32.totalorder %s22, 18
      %s29 = sphi 0, %s41
      %s30 = sphi 0, %s37
      %s31 = sphi 0, %s29
      %s32 = sphi 0, %s30
      %s33 = sphi 0, %s31
      %s34 = sphi 0, %s32
      %s52 = sphi 0, %s54
      %s55 = sphi 0, %s52
      %s56 = sphi 0, %s55
      %s72 = sphi 0, %s56
      %s84 = sphi 0, %s86
      %s87 = sphi 0, %s84
      %s88 = sphi 0, %s87
      %s104 = sphi 0, %s88
      %s108 = sphi 0, %s108
      %s110 = sphi 0, %s108
      %s111 = sphi 0, %s110
      %s125 = sphi 0, %s111
      %s129 = sphi 0, %s129
      %s131 = sphi 0, %s129
      %s132 = sphi 0, %s131
      %s146 = sphi 0, %s132
      %s152 = sphi 0, %s154
      %s155 = sphi 0, %s152
      %s156 = sphi 0, %s155
      %s172 = sphi 0, %s156
    $region4: #{_gcn_forward_padded.4} parent=1 // loop_header_branch
      %25 = sbr.rel (%p23) target = $region8
    $region5: #{_gcn_forward_padded.4} parent=1 // loop_body
      %s27 = ssub.s32 %s22, 1
      %s28 = ssub.s32 %s22, 2
      %s35 = sadd.s32 1, %s30
      %p36 = scmp.ge.s32.totalorder %s35, 4
      %s37 = scalar_select %p36, 0, %s35
      %s38 = sadd.s32 1, %s29
      %s39 = scalar_select %p36, %s38, %s29
      %p40 = scmp.ge.s32.totalorder %s39, 4
      %s41 = scalar_select %p40, 0, %s39
      %s42 = smul.u32 %s29, 4
      %s43 = sadd.s32 %s42, %s30
      %s44 = sld [smem:[#allocation4 + %s43]]
      %s45 = smul.u32 %s41, 4
      %s46 = sadd.s32 %s45, %s37
      %s47 = sld [smem:[#allocation4 + %s46]]
      %s48 = ssub.s32 %s29, %s41
      %s49 = ssub.s32 %s44, %s47
      %s50 = sor.u32 %s48, %s49
      %p51 = scmp.eq.s32.totalorder %s50, 0
      %s53 = sadd.s32 %s52, 1
      %s54 = scalar_select %p51, %s52, %s53
      %p57 = pneg %p51
      %p58 = scmp.eq.s32.totalorder %s22, 15
      %p59 = por %p57, %p58
      %p60 = scmp.ne.s32.totalorder %s52, %s55
      %p61 = scmp.eq.s32.totalorder %s22, 0
      %p62 = por %p60, %p61
      %p63 = scmp.ne.s32.totalorder %s52, %s55
      %p64 = scmp.eq.s32.totalorder %s27, 15
      %p65 = por %p63, %p64
      %p66 = scmp.ne.s32.totalorder %s55, %s56
      %p67 = scmp.eq.s32.totalorder %s27, 0
      %p68 = por %p66, %p67
      %p69 = scmp.ne.s32.totalorder %s55, %s56
      %p70 = scmp.eq.s32.totalorder %s28, 15
      %p71 = por %p69, %p70
      %p73 = scmp.ne.s32.totalorder %s56, %s72
      %p74 = scmp.eq.s32.totalorder %s28, 0
      %p75 = por %p73, %p74
      %s76 = smul.u32 %s29, 4
      %s77 = sadd.s32 %s76, %s30
      %s78 = sld [smem:[#allocation4 + %s77]]
      %s79 = smul.u32 %s41, 4
      %s80 = sadd.s32 %s79, %s37
      %s81 = sld [smem:[#allocation4 + %s80]]
      %s82 = ssub.s32 %s78, %s81
      %p83 = scmp.eq.s32.totalorder %s82, 0
      %s85 = sadd.s32 %s84, 1
      %s86 = scalar_select %p83, %s84, %s85
      %p89 = pneg %p83
      %p90 = scmp.eq.s32.totalorder %s22, 15
      %p91 = por %p89, %p90
      %p92 = scmp.ne.s32.totalorder %s84, %s87
      %p93 = scmp.eq.s32.totalorder %s22, 0
      %p94 = por %p92, %p93
      %p95 = scmp.ne.s32.totalorder %s84, %s87
      %p96 = scmp.eq.s32.totalorder %s27, 15
      %p97 = por %p95, %p96
      %p98 = scmp.ne.s32.totalorder %s87, %s88
      %p99 = scmp.eq.s32.totalorder %s27, 0
      %p100 = por %p98, %p99
      %p101 = scmp.ne.s32.totalorder %s87, %s88
      %p102 = scmp.eq.s32.totalorder %s28, 15
      %p103 = por %p101, %p102
      %p105 = scmp.ne.s32.totalorder %s88, %s104
      %p106 = scmp.eq.s32.totalorder %s28, 0
      %p107 = por %p105, %p106
      %s109 = sadd.s32 %s108, 1
      %p112 = scmp.eq.s32.totalorder %s22, 15
      %p113 = scmp.ne.s32.totalorder %s108, %s110
      %p114 = scmp.eq.s32.totalorder %s22, 0
      %p115 = por %p113, %p114
      %p116 = scmp.ne.s32.totalorder %s108, %s110
      %p117 = scmp.eq.s32.totalorder %s27, 15
      %p118 = por %p116, %p117
      %p119 = scmp.ne.s32.totalorder %s110, %s111
      %p120 = scmp.eq.s32.totalorder %s27, 0
      %p121 = por %p119, %p120
      %p122 = scmp.ne.s32.totalorder %s110, %s111
      %p123 = scmp.eq.s32.totalorder %s28, 15
      %p124 = por %p122, %p123
      %p126 = scmp.ne.s32.totalorder %s111, %s125
      %p127 = scmp.eq.s32.totalorder %s28, 0
      %p128 = por %p126, %p127
      %s130 = sadd.s32 %s129, 1
      %p133 = scmp.eq.s32.totalorder %s22, 15
      %p134 = scmp.ne.s32.totalorder %s129, %s131
      %p135 = scmp.eq.s32.totalorder %s22, 0
      %p136 = por %p134, %p135
      %p137 = scmp.ne.s32.totalorder %s129, %s131
      %p138 = scmp.eq.s32.totalorder %s27, 15
      %p139 = por %p137, %p138
      %p140 = scmp.ne.s32.totalorder %s131, %s132
      %p141 = scmp.eq.s32.totalorder %s27, 0
      %p142 = por %p140, %p141
      %p143 = scmp.ne.s32.totalorder %s131, %s132
      %p144 = scmp.eq.s32.totalorder %s28, 15
      %p145 = por %p143, %p144
      %p147 = scmp.ne.s32.totalorder %s132, %s146
      %p148 = scmp.eq.s32.totalorder %s28, 0
      %p149 = por %p147, %p148
      %s150 = ssub.s32 %s29, %s41
      %p151 = scmp.eq.s32.totalorder %s150, 0
      %s153 = sadd.s32 %s152, 1
      %s154 = scalar_select %p151, %s152, %s153
      %p157 = pneg %p151
      %p158 = scmp.eq.s32.totalorder %s22, 15
      %p159 = por %p157, %p158
      %p160 = scmp.ne.s32.totalorder %s152, %s155
      %p161 = scmp.eq.s32.totalorder %s22, 0
      %p162 = por %p160, %p161
      %p163 = scmp.ne.s32.totalorder %s152, %s155
      %p164 = scmp.eq.s32.totalorder %s27, 15
      %p165 = por %p163, %p164
      %p166 = scmp.ne.s32.totalorder %s155, %s156
      %p167 = scmp.eq.s32.totalorder %s27, 0
      %p168 = por %p166, %p167
      %p169 = scmp.ne.s32.totalorder %s155, %s156
      %p170 = scmp.eq.s32.totalorder %s28, 15
      %p171 = por %p169, %p170
      %p173 = scmp.ne.s32.totalorder %s156, %s172
      %p174 = scmp.eq.s32.totalorder %s28, 0
      %p175 = por %p173, %p174
      %p176 = scmp.le.s32.totalorder 1, %s22
      %p177 = scmp.lt.s32.totalorder %s22, 17
      %p178 = pnand %p176, %p177
      %p179 = pneg %p178
      // Predicated region
      $region9: #{_gcn_forward_padded.4} parent=5 // pred_check
        _
      $region10: #{_gcn_forward_padded.4} parent=5 // pred_check_branch
        %181 = sbr.rel (%p178) target = $region12
      $region11: #{_gcn_forward_padded.4} parent=5 // pred_region
        %s182 = ssub.s32 %s22, 1
        // Predicated region
        $region13: #{_gcn_forward_padded.4} parent=11 // pred_check
          %p183 = pneg %p121
        $region14: #{_gcn_forward_padded.4} parent=11 // pred_check_branch
          %185 = sbr.rel (%p183) target = $region16
        $region15: #{_gcn_forward_padded.4} parent=11 // pred_region
          %s187 = ssub.s32 16, 16
          %188 = vsyncadd [#allocation9], %s187
          %s190 = sshll.u32 [#allocation8], 4
          %s191 = int_to_ptr.vmem [resolvable:$true] %s190
          %193 = dma.hbm_to_vmem [thread:$0]  %s4, 16, %s191, [#allocation9]
        $region16: #{_gcn_forward_padded.4} parent=11 // pred_fallthru
          _
        // Predicated region
        $region17: #{_gcn_forward_padded.4} parent=11 // pred_check
          %p194 = pneg %p142
        $region18: #{_gcn_forward_padded.4} parent=11 // pred_check_branch
          %196 = sbr.rel (%p194) target = $region20
        $region19: #{_gcn_forward_padded.4} parent=11 // pred_region
          %s198 = ssub.s32 1024, 1024
          %199 = vsyncadd [#allocation9], %s198
          %s200 = sshll.u32 [#allocation10], 4
          %s201 = int_to_ptr.vmem [resolvable:$true] %s200
          %206 = dma.hbm_to_vmem [thread:$0]  %s5, 1024, %s201, [#allocation9], 64, 64, 4
        $region20: #{_gcn_forward_padded.4} parent=11 // pred_fallthru
          _
      $region12: #{_gcn_forward_padded.4} parent=5 // pred_fallthru
        _
      %p207 = scmp.lt.s32.totalorder %s22, 16
      // Predicated region
      $region21: #{_gcn_forward_padded.4} parent=5 // pred_check
        %p208 = pneg %p207
      $region22: #{_gcn_forward_padded.4} parent=5 // pred_check_branch
        %210 = sbr.rel (%p208) target = $region24
      $region23: #{_gcn_forward_padded.4} parent=5 // pred_region
        // Predicated region
        $region25: #{_gcn_forward_padded.4} parent=23 // pred_check
          %p211 = pneg %p62
        $region26: #{_gcn_forward_padded.4} parent=23 // pred_check_branch
          %213 = sbr.rel (%p211) target = $region28
        $region27: #{_gcn_forward_padded.4} parent=23 // pred_region
          %s214 = sand.u32 %s52, 1
          %s215 = scalar_lea.sflag [#allocation7], %s214
          %s216 = sand.u32 %s52, 1
          %s217 = smul.addr %s216, 256
          %s218 = scalar_lea.vmem [#allocation6], %s217
          %s219 = smul.u32 %s29, 4
          %s220 = sadd.s32 %s219, %s30
          %s221 = sld [smem:[#allocation4 + %s220]]
          %s222 = smul.u32 32, %s29
          %s223 = smul.u32 2, %s221
          %s225 = ssub.s32 4096, 4096
          %226 = vsyncadd %s215, %s225
          %s227 = smul.addr %s222, 8
          %s228 = sadd.s32 %s223, %s227
          %s229 = smul.addr %s228, 64
          %s230 = scalar_lea.hbm %s2, %s229
          %s231 = sshll.u32 %s218, 4
          %s232 = int_to_ptr.vmem [resolvable:$true] %s231
          %237 = dma.hbm_to_vmem [thread:$0]  %s230, 4096, %s232, %s215, 512, 128, 8
        $region28: #{_gcn_forward_padded.4} parent=23 // pred_fallthru
          _
        // Predicated region
        $region29: #{_gcn_forward_padded.4} parent=23 // pred_check
          %p238 = pneg %p94
        $region30: #{_gcn_forward_padded.4} parent=23 // pred_check_branch
          %240 = sbr.rel (%p238) target = $region32
        $region31: #{_gcn_forward_padded.4} parent=23 // pred_region
          %s241 = smul.u32 %s29, 4
          %s242 = sadd.s32 %s241, %s30
          %s243 = sld [smem:[#allocation4 + %s242]]
          %s244 = smul.u32 32, %s243
          %p245 = scmp.lt.s32.totalorder %s244, 127
          %s246 = scalar_select %p245, %s244, 127
          %s247 = smul.addr %s246, 4
          %s248 = scalar_lea.vmem %s3, %s247
          %s249 = smul.u32 %s29, 4
          %s250 = sadd.s32 %s249, %s30
          %s251 = sld [smem:[#allocation4 + %s250]]
          %s252 = smul.u32 32, %s251
        $region32: #{_gcn_forward_padded.4} parent=23 // pred_fallthru
          _
      $region24: #{_gcn_forward_padded.4} parent=5 // pred_fallthru
        _
      %p253 = scmp.le.s32.totalorder 1, %s22
      %p254 = scmp.lt.s32.totalorder %s22, 17
      %p255 = pnand %p253, %p254
      %p256 = pneg %p255
      // Predicated region
      $region33: #{_gcn_forward_padded.4} parent=5 // pred_check
        _
      $region34: #{_gcn_forward_padded.4} parent=5 // pred_check_branch
        %258 = sbr.rel (%p255) target = $region36
      $region35: #{_gcn_forward_padded.4} parent=5 // pred_region
        %s259 = ssub.s32 %s22, 1
        %s260 = sand.u32 %s55, 1
        %s261 = scalar_lea.sflag [#allocation7], %s260
        %s262 = sand.u32 %s55, 1
        %s263 = smul.addr %s262, 256
        %s264 = scalar_lea.vmem [#allocation6], %s263
        // Predicated region
        $region37: #{_gcn_forward_padded.4} parent=35 // pred_check
          %p265 = pneg %p68
        $region38: #{_gcn_forward_padded.4} parent=35 // pred_check_branch
          %267 = sbr.rel (%p265) target = $region40
        $region39: #{_gcn_forward_padded.4} parent=35 // pred_region
          %268 = dma.done %s261, 4096
        $region40: #{_gcn_forward_padded.4} parent=35 // pred_fallthru
          _
        // Predicated region
        $region41: #{_gcn_forward_padded.4} parent=35 // pred_check
          %p269 = pneg %p121
        $region42: #{_gcn_forward_padded.4} parent=35 // pred_check_branch
          %271 = sbr.rel (%p269) target = $region44
        $region43: #{_gcn_forward_padded.4} parent=35 // pred_region
          %272 = dma.done [#allocation9], 16
        $region44: #{_gcn_forward_padded.4} parent=35 // pred_fallthru
          _
        // Predicated region
        $region45: #{_gcn_forward_padded.4} parent=35 // pred_check
          %p273 = pneg %p142
        $region46: #{_gcn_forward_padded.4} parent=35 // pred_check_branch
          %275 = sbr.rel (%p273) target = $region48
        $region47: #{_gcn_forward_padded.4} parent=35 // pred_region
          %276 = dma.done [#allocation9], 1024
        $region48: #{_gcn_forward_padded.4} parent=35 // pred_fallthru
          _
        %s277 = sand.u32 %s55, 1
        %s278 = scalar_lea.sflag [#allocation7], %s277
        %s279 = sand.u32 %s55, 1
        %s280 = smul.addr %s279, 256
        %s281 = scalar_lea.vmem [#allocation6], %s280
        %p282 = pneg %p68
        %p283 = pneg %p65
        %s284 = smul.u32 %s31, 4
        %s285 = sadd.s32 %s284, %s32
        %s286 = sld [smem:[#allocation4 + %s285]]
        %s287 = smul.u32 32, %s286
        %p288 = scmp.lt.s32.totalorder %s287, 127
        %s289 = scalar_select %p288, %s287, 127
        %s290 = smul.addr %s289, 4
        %s291 = scalar_lea.vmem %s3, %s290
        %p292 = pneg %p100
        %p293 = pneg %p97
        %p294 = pneg %p121
        %p295 = pneg %p118
        %p296 = pneg %p142
        %p297 = pneg %p139
        %p298 = pneg %p168
        %p299 = pneg %p165
        %s300 = smul.u32 32, %s31
        %p301 = scmp.lt.s32.totalorder %s300, 127
        %s302 = scalar_select %p301, %s300, 127
        %s303 = smul.addr %s302, 4
        %s304 = scalar_lea.vmem %s6, %s303
        %s305 = smul.u32 %s31, 4
        %s306 = sadd.s32 %s305, %s32
        %s307 = sld [smem:[#allocation4 + %s306]]
        %s308 = smul.u32 32, %s31
        %s309 = smul.u32 2, %s307
        %s310 = smul.u32 %s31, 4
        %s311 = sadd.s32 %s310, %s32
        %s312 = sld [smem:[#allocation4 + %s311]]
        %s313 = smul.u32 32, %s312
        %p314 = scmp.lt.s32.totalorder %s313, 127
        %s315 = scalar_select %p314, %s313, 127
        %s316 = smul.addr %s315, 4
        %s317 = scalar_lea.vmem %s3, %s316
        %s318 = smul.u32 %s31, 4
        %s319 = sadd.s32 %s318, %s32
        %s320 = sld [smem:[#allocation4 + %s319]]
        %s321 = smul.u32 32, %s320
        %s322 = smul.u32 32, %s31
        %p323 = scmp.lt.s32.totalorder %s322, 127
        %s324 = scalar_select %p323, %s322, 127
        %s325 = smul.addr %s324, 4
        %s326 = scalar_lea.vmem %s6, %s325
        %s327 = smul.u32 32, %s31
        %p329 = scmp.eq.s32.totalorder %s32, 0
        // Predicated region
        $region49: #{_gcn_forward_padded.4} parent=35 // pred_check
          %p330 = pneg %p329
        $region50: #{_gcn_forward_padded.4} parent=35 // pred_check_branch
          %332 = sbr.rel (%p330) target = $region52
        $region51: #{_gcn_forward_padded.4} parent=35 // pred_region
          %v333 = vld [vmem:[#allocation8] sm:$0x1]
          %v334 = vunpack.c.l.bf16 %v333
          %v335 = vlaneseq
          %v336 = vshrl.u32 %v335, 7
          %v337 = vsub.s32 0, %v336
          %v338 = vrot.slane %v334, %v337
          %v339 = vadd.f32 %v338, 0.0
          %340 = vst [vmem:[#allocation2] sm:$0xff] %v339
          %341 = vst [vmem:[#allocation2 + $0x8] sm:$0xff] %v339
          %342 = vst [vmem:[#allocation2 + $0x10] sm:$0xff] %v339
          %343 = vst [vmem:[#allocation2 + $0x18] sm:$0xff] %v339
          %344 = vst [vmem:[#allocation2 + $0x20] sm:$0xff] %v339
          %345 = vst [vmem:[#allocation2 + $0x28] sm:$0xff] %v339
          %346 = vst [vmem:[#allocation2 + $0x30] sm:$0xff] %v339
          %347 = vst [vmem:[#allocation2 + $0x38] sm:$0xff] %v339
          %348 = vst [vmem:[#allocation2 + $0x40] sm:$0xff] %v339
          %349 = vst [vmem:[#allocation2 + $0x48] sm:$0xff] %v339
          %350 = vst [vmem:[#allocation2 + $0x50] sm:$0xff] %v339
          %351 = vst [vmem:[#allocation2 + $0x58] sm:$0xff] %v339
          %352 = vst [vmem:[#allocation2 + $0x60] sm:$0xff] %v339
          %353 = vst [vmem:[#allocation2 + $0x68] sm:$0xff] %v339
          %354 = vst [vmem:[#allocation2 + $0x70] sm:$0xff] %v339
          %355 = vst [vmem:[#allocation2 + $0x78] sm:$0xff] %v339
          %356 = vst [vmem:[#allocation2 + $0x80] sm:$0xff] %v339
          %357 = vst [vmem:[#allocation2 + $0x88] sm:$0xff] %v339
          %358 = vst [vmem:[#allocation2 + $0x90] sm:$0xff] %v339
          %359 = vst [vmem:[#allocation2 + $0x98] sm:$0xff] %v339
          %360 = vst [vmem:[#allocation2 + $0xa0] sm:$0xff] %v339
          %361 = vst [vmem:[#allocation2 + $0xa8] sm:$0xff] %v339
          %362 = vst [vmem:[#allocation2 + $0xb0] sm:$0xff] %v339
          %363 = vst [vmem:[#allocation2 + $0xb8] sm:$0xff] %v339
          %364 = vst [vmem:[#allocation2 + $0xc0] sm:$0xff] %v339
          %365 = vst [vmem:[#allocation2 + $0xc8] sm:$0xff] %v339
          %366 = vst [vmem:[#allocation2 + $0xd0] sm:$0xff] %v339
          %367 = vst [vmem:[#allocation2 + $0xd8] sm:$0xff] %v339
          %368 = vst [vmem:[#allocation2 + $0xe0] sm:$0xff] %v339
          %369 = vst [vmem:[#allocation2 + $0xe8] sm:$0xff] %v339
          %370 = vst [vmem:[#allocation2 + $0xf0] sm:$0xff] %v339
          %371 = vst [vmem:[#allocation2 + $0xf8] sm:$0xff] %v339
        $region52: #{_gcn_forward_padded.4} parent=35 // pred_fallthru
          _
        %s372 = sld [smem:[#allocation5 + %s31]]
        %p373 = scmp.lt.s32.totalorder %s32, %s372
        // Predicated region
        $region53: #{_gcn_forward_padded.4} parent=35 // pred_check
          %p374 = pneg %p373
        $region54: #{_gcn_forward_padded.4} parent=35 // pred_check_branch
          %376 = sbr.rel (%p374) target = $region56
        $region55: #{_gcn_forward_padded.4} parent=35 // pred_region
          %v377 = vld [vmem:[#allocation2] sm:$0xff]
          %v378 = vld [vmem:[#allocation2 + $0x8] sm:$0xff]
          %v379 = vld [vmem:[#allocation2 + $0x10] sm:$0xff]
          %v380 = vld [vmem:[#allocation2 + $0x18] sm:$0xff]
          %v381 = vld [vmem:[#allocation2 + $0x20] sm:$0xff]
          %v382 = vld [vmem:[#allocation2 + $0x28] sm:$0xff]
          %v383 = vld [vmem:[#allocation2 + $0x30] sm:$0xff]
          %v384 = vld [vmem:[#allocation2 + $0x38] sm:$0xff]
          %v385 = vld [vmem:[#allocation2 + $0x40] sm:$0xff]
          %v386 = vld [vmem:[#allocation2 + $0x48] sm:$0xff]
          %v387 = vld [vmem:[#allocation2 + $0x50] sm:$0xff]
          %v388 = vld [vmem:[#allocation2 + $0x58] sm:$0xff]
          %v389 = vld [vmem:[#allocation2 + $0x60] sm:$0xff]
          %v390 = vld [vmem:[#allocation2 + $0x68] sm:$0xff]
          %v391 = vld [vmem:[#allocation2 + $0x70] sm:$0xff]
          %v392 = vld [vmem:[#allocation2 + $0x78] sm:$0xff]
          %v393 = vld [vmem:[#allocation2 + $0x80] sm:$0xff]
          %v394 = vld [vmem:[#allocation2 + $0x88] sm:$0xff]
          %v395 = vld [vmem:[#allocation2 + $0x90] sm:$0xff]
          %v396 = vld [vmem:[#allocation2 + $0x98] sm:$0xff]
          %v397 = vld [vmem:[#allocation2 + $0xa0] sm:$0xff]
          %v398 = vld [vmem:[#allocation2 + $0xa8] sm:$0xff]
          %v399 = vld [vmem:[#allocation2 + $0xb0] sm:$0xff]
          %v400 = vld [vmem:[#allocation2 + $0xb8] sm:$0xff]
          %v401 = vld [vmem:[#allocation2 + $0xc0] sm:$0xff]
          %v402 = vld [vmem:[#allocation2 + $0xc8] sm:$0xff]
          %v403 = vld [vmem:[#allocation2 + $0xd0] sm:$0xff]
          %v404 = vld [vmem:[#allocation2 + $0xd8] sm:$0xff]
          %v405 = vld [vmem:[#allocation2 + $0xe0] sm:$0xff]
          %v406 = vld [vmem:[#allocation2 + $0xe8] sm:$0xff]
          %v407 = vld [vmem:[#allocation2 + $0xf0] sm:$0xff]
          %v408 = vld [vmem:[#allocation2 + $0xf8] sm:$0xff]
          %v409 = vld [vmem:[%s264] sm:$0xff]
          %v410 = vld [vmem:[%s264 + $0x8] sm:$0xff]
          %v411 = vld [vmem:[%s264 + $0x10] sm:$0xff]
          %v412 = vld [vmem:[%s264 + $0x18] sm:$0xff]
          %v413 = vld [vmem:[%s264 + $0x20] sm:$0xff]
          %v414 = vld [vmem:[%s264 + $0x28] sm:$0xff]
          %v415 = vld [vmem:[%s264 + $0x30] sm:$0xff]
          %v416 = vld [vmem:[%s264 + $0x38] sm:$0xff]
          %v417 = vld [vmem:[%s264 + $0x40] sm:$0xff]
          %v418 = vld [vmem:[%s264 + $0x48] sm:$0xff]
          %v419 = vld [vmem:[%s264 + $0x50] sm:$0xff]
          %v420 = vld [vmem:[%s264 + $0x58] sm:$0xff]
          %v421 = vld [vmem:[%s264 + $0x60] sm:$0xff]
          %v422 = vld [vmem:[%s264 + $0x68] sm:$0xff]
          %v423 = vld [vmem:[%s264 + $0x70] sm:$0xff]
          %v424 = vld [vmem:[%s264 + $0x78] sm:$0xff]
          %v425 = vld [vmem:[%s264 + $0x80] sm:$0xff]
          %v426 = vld [vmem:[%s264 + $0x88] sm:$0xff]
          %v427 = vld [vmem:[%s264 + $0x90] sm:$0xff]
          %v428 = vld [vmem:[%s264 + $0x98] sm:$0xff]
          %v429 = vld [vmem:[%s264 + $0xa0] sm:$0xff]
          %v430 = vld [vmem:[%s264 + $0xa8] sm:$0xff]
          %v431 = vld [vmem:[%s264 + $0xb0] sm:$0xff]
          %v432 = vld [vmem:[%s264 + $0xb8] sm:$0xff]
          %v433 = vld [vmem:[%s264 + $0xc0] sm:$0xff]
          %v434 = vld [vmem:[%s264 + $0xc8] sm:$0xff]
          %v435 = vld [vmem:[%s264 + $0xd0] sm:$0xff]
          %v436 = vld [vmem:[%s264 + $0xd8] sm:$0xff]
          %v437 = vld [vmem:[%s264 + $0xe0] sm:$0xff]
          %v438 = vld [vmem:[%s264 + $0xe8] sm:$0xff]
          %v439 = vld [vmem:[%s264 + $0xf0] sm:$0xff]
          %v440 = vld [vmem:[%s264 + $0xf8] sm:$0xff]
          %v441 = vld [vmem:[%s317] sm:$0xf]
          %v442 = vld [vmem:[%s317 + $0x4] sm:$0xf]
          %v443 = vld [vmem:[%s317 + $0x8] sm:$0xf]
          %v444 = vld [vmem:[%s317 + $0xc] sm:$0xf]
          %v445 = vld [vmem:[%s317 + $0x10] sm:$0xf]
          %v446 = vld [vmem:[%s317 + $0x14] sm:$0xf]
          %v447 = vld [vmem:[%s317 + $0x18] sm:$0xf]
          %v448 = vld [vmem:[%s317 + $0x1c] sm:$0xf]
          %v449 = vld [vmem:[%s317 + $0x20] sm:$0xf]
          %v450 = vld [vmem:[%s317 + $0x24] sm:$0xf]
          %v451 = vld [vmem:[%s317 + $0x28] sm:$0xf]
          %v452 = vld [vmem:[%s317 + $0x2c] sm:$0xf]
          %v453 = vld [vmem:[%s317 + $0x30] sm:$0xf]
          %v454 = vld [vmem:[%s317 + $0x34] sm:$0xf]
          %v455 = vld [vmem:[%s317 + $0x38] sm:$0xf]
          %v456 = vld [vmem:[%s317 + $0x3c] sm:$0xf]
          %v457 = vld [vmem:[%s317 + $0x40] sm:$0xf]
          %v458 = vld [vmem:[%s317 + $0x44] sm:$0xf]
          %v459 = vld [vmem:[%s317 + $0x48] sm:$0xf]
          %v460 = vld [vmem:[%s317 + $0x4c] sm:$0xf]
          %v461 = vld [vmem:[%s317 + $0x50] sm:$0xf]
          %v462 = vld [vmem:[%s317 + $0x54] sm:$0xf]
          %v463 = vld [vmem:[%s317 + $0x58] sm:$0xf]
          %v464 = vld [vmem:[%s317 + $0x5c] sm:$0xf]
          %v465 = vld [vmem:[%s317 + $0x60] sm:$0xf]
          %v466 = vld [vmem:[%s317 + $0x64] sm:$0xf]
          %v467 = vld [vmem:[%s317 + $0x68] sm:$0xf]
          %v468 = vld [vmem:[%s317 + $0x6c] sm:$0xf]
          %v469 = vld [vmem:[%s317 + $0x70] sm:$0xf]
          %v470 = vld [vmem:[%s317 + $0x74] sm:$0xf]
          %v471 = vld [vmem:[%s317 + $0x78] sm:$0xf]
          %v472 = vld [vmem:[%s317 + $0x7c] sm:$0xf]
          %v505 = vunpack.c.l.b16 %v409
          %v506 = vunpack.c.h.b16 %v409
          %v507 = vunpack.c.l.b16 %v410
          %v508 = vunpack.c.h.b16 %v410
          %v509 = vunpack.c.l.b16 %v411
          %v510 = vunpack.c.h.b16 %v411
          %v511 = vunpack.c.l.b16 %v412
          %v512 = vunpack.c.h.b16 %v412
          %v513 = vunpack.c.l.b16 %v413
          %v514 = vunpack.c.h.b16 %v413
          %v515 = vunpack.c.l.b16 %v414
          %v516 = vunpack.c.h.b16 %v414
          %v517 = vunpack.c.l.b16 %v415
          %v518 = vunpack.c.h.b16 %v415
          %v519 = vunpack.c.l.b16 %v416
          %v520 = vunpack.c.h.b16 %v416
          %v521 = vunpack.c.l.b16 %v417
          %v522 = vunpack.c.h.b16 %v417
          %v523 = vunpack.c.l.b16 %v418
          %v524 = vunpack.c.h.b16 %v418
          %v525 = vunpack.c.l.b16 %v419
          %v526 = vunpack.c.h.b16 %v419
          %v527 = vunpack.c.l.b16 %v420
          %v528 = vunpack.c.h.b16 %v420
          %v529 = vunpack.c.l.b16 %v421
          %v530 = vunpack.c.h.b16 %v421
          %v531 = vunpack.c.l.b16 %v422
          %v532 = vunpack.c.h.b16 %v422
          %v533 = vunpack.c.l.b16 %v423
          %v534 = vunpack.c.h.b16 %v423
          %v535 = vunpack.c.l.b16 %v424
          %v536 = vunpack.c.h.b16 %v424
          %v537 = vunpack.c.l.b16 %v425
          %v538 = vunpack.c.h.b16 %v425
          %v539 = vunpack.c.l.b16 %v426
          %v540 = vunpack.c.h.b16 %v426
          %v541 = vunpack.c.l.b16 %v427
          %v542 = vunpack.c.h.b16 %v427
          %v543 = vunpack.c.l.b16 %v428
          %v544 = vunpack.c.h.b16 %v428
          %v545 = vunpack.c.l.b16 %v429
          %v546 = vunpack.c.h.b16 %v429
          %v547 = vunpack.c.l.b16 %v430
          %v548 = vunpack.c.h.b16 %v430
          %v549 = vunpack.c.l.b16 %v431
          %v550 = vunpack.c.h.b16 %v431
          %v551 = vunpack.c.l.b16 %v432
          %v552 = vunpack.c.h.b16 %v432
          %v553 = vunpack.c.l.b16 %v433
          %v554 = vunpack.c.h.b16 %v433
          %v555 = vunpack.c.l.b16 %v434
          %v556 = vunpack.c.h.b16 %v434
          %v557 = vunpack.c.l.b16 %v435
          %v558 = vunpack.c.h.b16 %v435
          %v559 = vunpack.c.l.b16 %v436
          %v560 = vunpack.c.h.b16 %v436
          %v561 = vunpack.c.l.b16 %v437
          %v562 = vunpack.c.h.b16 %v437
          %v563 = vunpack.c.l.b16 %v438
          %v564 = vunpack.c.h.b16 %v438
          %v565 = vunpack.c.l.b16 %v439
          %v566 = vunpack.c.h.b16 %v439
          %v567 = vunpack.c.l.b16 %v440
          %v568 = vunpack.c.h.b16 %v440
          %v569 = vpack.c.b16 %v507, %v505
          %v570 = vpack.c.b16 %v508, %v506
          %v571 = vpack.c.b16 %v511, %v509
          %v572 = vpack.c.b16 %v512, %v510
          %v573 = vpack.c.b16 %v515, %v513
          %v574 = vpack.c.b16 %v516, %v514
          %v575 = vpack.c.b16 %v519, %v517
          %v576 = vpack.c.b16 %v520, %v518
          %v577 = vpack.c.b16 %v523, %v521
          %v578 = vpack.c.b16 %v524, %v522
          %v579 = vpack.c.b16 %v527, %v525
          %v580 = vpack.c.b16 %v528, %v526
          %v581 = vpack.c.b16 %v531, %v529
          %v582 = vpack.c.b16 %v532, %v530
          %v583 = vpack.c.b16 %v535, %v533
          %v584 = vpack.c.b16 %v536, %v534
          %v585 = vpack.c.b16 %v539, %v537
          %v586 = vpack.c.b16 %v540, %v538
          %v587 = vpack.c.b16 %v543, %v541
          %v588 = vpack.c.b16 %v544, %v542
          %v589 = vpack.c.b16 %v547, %v545
          %v590 = vpack.c.b16 %v548, %v546
          %v591 = vpack.c.b16 %v551, %v549
          %v592 = vpack.c.b16 %v552, %v550
          %v593 = vpack.c.b16 %v555, %v553
          %v594 = vpack.c.b16 %v556, %v554
          %v595 = vpack.c.b16 %v559, %v557
          %v596 = vpack.c.b16 %v560, %v558
          %v597 = vpack.c.b16 %v563, %v561
          %v598 = vpack.c.b16 %v564, %v562
          %v599 = vpack.c.b16 %v567, %v565
          %v600 = vpack.c.b16 %v568, %v566
          %v665 = vunpack.c.l.b16 %v441
          %v666 = vunpack.c.l.b16 %v442
          %v667 = vunpack.c.l.b16 %v443
          %v668 = vunpack.c.l.b16 %v444
          %v669 = vunpack.c.l.b16 %v445
          %v670 = vunpack.c.l.b16 %v446
          %v671 = vunpack.c.l.b16 %v447
          %v672 = vunpack.c.l.b16 %v448
          %v673 = vunpack.c.l.b16 %v449
          %v674 = vunpack.c.l.b16 %v450
          %v675 = vunpack.c.l.b16 %v451
          %v676 = vunpack.c.l.b16 %v452
          %v677 = vunpack.c.l.b16 %v453
          %v678 = vunpack.c.l.b16 %v454
          %v679 = vunpack.c.l.b16 %v455
          %v680 = vunpack.c.l.b16 %v456
          %v681 = vunpack.c.l.b16 %v457
          %v682 = vunpack.c.l.b16 %v458
          %v683 = vunpack.c.l.b16 %v459
          %v684 = vunpack.c.l.b16 %v460
          %v685 = vunpack.c.l.b16 %v461
          %v686 = vunpack.c.l.b16 %v462
          %v687 = vunpack.c.l.b16 %v463
          %v688 = vunpack.c.l.b16 %v464
          %v689 = vunpack.c.l.b16 %v465
          %v690 = vunpack.c.l.b16 %v466
          %v691 = vunpack.c.l.b16 %v467
          %v692 = vunpack.c.l.b16 %v468
          %v693 = vunpack.c.l.b16 %v469
          %v694 = vunpack.c.l.b16 %v470
          %v695 = vunpack.c.l.b16 %v471
          %v696 = vunpack.c.l.b16 %v472
          %v697 = vpack.c.b16 %v666, %v665
          %v698 = vpack.c.b16 %v668, %v667
          %v699 = vpack.c.b16 %v670, %v669
          %v700 = vpack.c.b16 %v672, %v671
          %v701 = vpack.c.b16 %v674, %v673
          %v702 = vpack.c.b16 %v676, %v675
          %v703 = vpack.c.b16 %v678, %v677
          %v704 = vpack.c.b16 %v680, %v679
          %v705 = vpack.c.b16 %v682, %v681
          %v706 = vpack.c.b16 %v684, %v683
          %v707 = vpack.c.b16 %v686, %v685
          %v708 = vpack.c.b16 %v688, %v687
          %v709 = vpack.c.b16 %v690, %v689
          %v710 = vpack.c.b16 %v692, %v691
          %v711 = vpack.c.b16 %v694, %v693
          %v712 = vpack.c.b16 %v696, %v695
          %729 = vmatprep.subr.bf16.mxu0 0
          %730 = vmatpush1.bf16.msra.mxu0 %v697
          %731 = vmatprep.subr.bf16.mxu0 0
          %732 = vmatpush1.bf16.msra.mxu0 %v698
          %733 = vmatprep.subr.bf16.mxu0 0
          %734 = vmatpush1.bf16.msra.mxu0 %v699
          %735 = vmatprep.subr.bf16.mxu0 0
          %736 = vmatpush1.bf16.msra.mxu0 %v700
          %737 = vmatprep.subr.bf16.mxu0 0
          %738 = vmatpush1.bf16.msra.mxu0 %v701
          %739 = vmatprep.subr.bf16.mxu0 0
          %740 = vmatpush1.bf16.msra.mxu0 %v702
          %741 = vmatprep.subr.bf16.mxu0 0
          %742 = vmatpush1.bf16.msra.mxu0 %v703
          %743 = vmatprep.subr.bf16.mxu0 0
          %744 = vmatpush1.bf16.msra.mxu0 %v704
          %745 = vmatprep.subr.bf16.mxu0 0
          %746 = vmatpush1.bf16.msra.mxu0 %v705
          %747 = vmatprep.subr.bf16.mxu0 0
          %748 = vmatpush1.bf16.msra.mxu0 %v706
          %749 = vmatprep.subr.bf16.mxu0 0
          %750 = vmatpush1.bf16.msra.mxu0 %v707
          %751 = vmatprep.subr.bf16.mxu0 0
          %752 = vmatpush1.bf16.msra.mxu0 %v708
          %753 = vmatprep.subr.bf16.mxu0 0
          %754 = vmatpush1.bf16.msra.mxu0 %v709
          %755 = vmatprep.subr.bf16.mxu0 0
          %756 = vmatpush1.bf16.msra.mxu0 %v710
          %757 = vmatprep.subr.bf16.mxu0 0
          %758 = vmatpush1.bf16.msra.mxu0 %v711
          %759 = vmatprep.subr.bf16.mxu0 0
          %760 = vmatpush1.bf16.msra.mxu0 %v712
          %761 = vmatprep.mubr.bf16.mxu0 %v570
          %762 = vmatmul.mubr.bf16.gmra.mrb[0].mxu0 %v569
          %v763 = vpop.f32.mrb[0].mxu0
          %v764 = vadd.f32 0.0, %v763
          %v765 = vpop.f32.mrb[0].mxu0
          %v766 = vpop.f32.mrb[0].mxu0
          %v767 = vadd.f32 0.0, %v766
          %v768 = vpop.f32.mrb[0].mxu0
          %769 = vmatprep.mubr.bf16.mxu0 %v572
          %770 = vmatmul.mubr.bf16.gmra.mrb[0].mxu0 %v571
          %v771 = vpop.f32.mrb[0].mxu0
          %v772 = vadd.f32 0.0, %v771
          %v773 = vpop.f32.mrb[0].mxu0
          %v774 = vpop.f32.mrb[0].mxu0
          %v775 = vadd.f32 0.0, %v774
          %v776 = vpop.f32.mrb[0].mxu0
          %777 = vmatprep.mubr.bf16.mxu0 %v574
          %778 = vmatmul.mubr.bf16.gmra.mrb[0].mxu0 %v573
          %v779 = vpop.f32.mrb[0].mxu0
          %v780 = vadd.f32 0.0, %v779
          %v781 = vpop.f32.mrb[0].mxu0
          %v782 = vpop.f32.mrb[0].mxu0
          %v783 = vadd.f32 0.0, %v782
          %v784 = vpop.f32.mrb[0].mxu0
          %785 = vmatprep.mubr.bf16.mxu0 %v576
          %786 = vmatmul.mubr.bf16.gmra.mrb[0].mxu0 %v575
          %v787 = vpop.f32.mrb[0].mxu0
          %v788 = vadd.f32 0.0, %v787
          %v789 = vpop.f32.mrb[0].mxu0
          %v790 = vpop.f32.mrb[0].mxu0
          %v791 = vadd.f32 0.0, %v790
          %v792 = vpop.f32.mrb[0].mxu0
          %793 = vmatprep.mubr.bf16.mxu0 %v578
          %794 = vmatmul.mubr.bf16.gmra.mrb[0].mxu0 %v577
          %v795 = vpop.f32.mrb[0].mxu0
          %v796 = vadd.f32 0.0, %v795
          %v797 = vpop.f32.mrb[0].mxu0
          %v798 = vpop.f32.mrb[0].mxu0
          %v799 = vadd.f32 0.0, %v798
          %v800 = vpop.f32.mrb[0].mxu0
          %801 = vmatprep.mubr.bf16.mxu0 %v580
          %802 = vmatmul.mubr.bf16.gmra.mrb[0].mxu0 %v579
          %v803 = vpop.f32.mrb[0].mxu0
          %v804 = vadd.f32 0.0, %v803
          %v805 = vpop.f32.mrb[0].mxu0
          %v806 = vpop.f32.mrb[0].mxu0
          %v807 = vadd.f32 0.0, %v806
          %v808 = vpop.f32.mrb[0].mxu0
          %809 = vmatprep.mubr.bf16.mxu0 %v582
          %810 = vmatmul.mubr.bf16.gmra.mrb[0].mxu0 %v581
          %v811 = vpop.f32.mrb[0].mxu0
          %v812 = vadd.f32 0.0, %v811
          %v813 = vpop.f32.mrb[0].mxu0
          %v814 = vpop.f32.mrb[0].mxu0
          %v815 = vadd.f32 0.0, %v814
          %v816 = vpop.f32.mrb[0].mxu0
          %817 = vmatprep.mubr.bf16.mxu0 %v584
          %818 = vmatmul.mubr.bf16.gmra.mrb[0].mxu0 %v583
          %v819 = vpop.f32.mrb[0].mxu0
          %v820 = vadd.f32 0.0, %v819
          %v821 = vpop.f32.mrb[0].mxu0
          %v822 = vpop.f32.mrb[0].mxu0
          %v823 = vadd.f32 0.0, %v822
          %v824 = vpop.f32.mrb[0].mxu0
          %825 = vmatprep.mubr.bf16.mxu0 %v586
          %826 = vmatmul.mubr.bf16.gmra.mrb[0].mxu0 %v585
          %v827 = vpop.f32.mrb[0].mxu0
          %v828 = vadd.f32 0.0, %v827
          %v829 = vpop.f32.mrb[0].mxu0
          %v830 = vpop.f32.mrb[0].mxu0
          %v831 = vadd.f32 0.0, %v830
          %v832 = vpop.f32.mrb[0].mxu0
          %833 = vmatprep.mubr.bf16.mxu0 %v588
          %834 = vmatmul.mubr.bf16.gmra.mrb[0].mxu0 %v587
          %v835 = vpop.f32.mrb[0].mxu0
          %v836 = vadd.f32 0.0, %v835
          %v837 = vpop.f32.mrb[0].mxu0
          %v838 = vpop.f32.mrb[0].mxu0
          %v839 = vadd.f32 0.0, %v838
          %v840 = vpop.f32.mrb[0].mxu0
          %841 = vmatprep.mubr.bf16.mxu0 %v590
          %842 = vmatmul.mubr.bf16.gmra.mrb[0].mxu0 %v589
          %v843 = vpop.f32.mrb[0].mxu0
          %v844 = vadd.f32 0.0, %v843
          %v845 = vpop.f32.mrb[0].mxu0
          %v846 = vpop.f32.mrb[0].mxu0
          %v847 = vadd.f32 0.0, %v846
          %v848 = vpop.f32.mrb[0].mxu0
          %849 = vmatprep.mubr.bf16.mxu0 %v592
          %850 = vmatmul.mubr.bf16.gmra.mrb[0].mxu0 %v591
          %v851 = vpop.f32.mrb[0].mxu0
          %v852 = vadd.f32 0.0, %v851
          %v853 = vpop.f32.mrb[0].mxu0
          %v854 = vpop.f32.mrb[0].mxu0
          %v855 = vadd.f32 0.0, %v854
          %v856 = vpop.f32.mrb[0].mxu0
          %857 = vmatprep.mubr.bf16.mxu0 %v594
          %858 = vmatmul.mubr.bf16.gmra.mrb[0].mxu0 %v593
          %v859 = vpop.f32.mrb[0].mxu0
          %v860 = vadd.f32 0.0, %v859
          %v861 = vpop.f32.mrb[0].mxu0
          %v862 = vpop.f32.mrb[0].mxu0
          %v863 = vadd.f32 0.0, %v862
          %v864 = vpop.f32.mrb[0].mxu0
          %865 = vmatprep.mubr.bf16.mxu0 %v596
          %866 = vmatmul.mubr.bf16.gmra.mrb[0].mxu0 %v595
          %v867 = vpop.f32.mrb[0].mxu0
          %v868 = vadd.f32 0.0, %v867
          %v869 = vpop.f32.mrb[0].mxu0
          %v870 = vpop.f32.mrb[0].mxu0
          %v871 = vadd.f32 0.0, %v870
          %v872 = vpop.f32.mrb[0].mxu0
          %873 = vmatprep.mubr.bf16.mxu0 %v598
          %874 = vmatmul.mubr.bf16.gmra.mrb[0].mxu0 %v597
          %v875 = vpop.f32.mrb[0].mxu0
          %v876 = vadd.f32 0.0, %v875
          %v877 = vpop.f32.mrb[0].mxu0
          %v878 = vpop.f32.mrb[0].mxu0
          %v879 = vadd.f32 0.0, %v878
          %v880 = vpop.f32.mrb[0].mxu0
          %881 = vmatprep.mubr.bf16.mxu0 %v600
          %882 = vmatmul.mubr.bf16.gmra.mrb[0].mxu0 %v599
          %v883 = vpop.f32.mrb[0].mxu0
          %v884 = vadd.f32 0.0, %v883
          %v885 = vpop.f32.mrb[0].mxu0
          %v886 = vpop.f32.mrb[0].mxu0
          %v887 = vadd.f32 0.0, %v886
          %v888 = vpop.f32.mrb[0].mxu0
          %889 = vdwg.mxu0
          %v890 = vadd.f32 %v377, %v764
          %v891 = vadd.f32 %v378, %v767
          %v892 = vadd.f32 %v379, %v772
          %v893 = vadd.f32 %v380, %v775
          %v894 = vadd.f32 %v381, %v780
          %v895 = vadd.f32 %v382, %v783
          %v896 = vadd.f32 %v383, %v788
          %v897 = vadd.f32 %v384, %v791
          %v898 = vadd.f32 %v385, %v796
          %v899 = vadd.f32 %v386, %v799
          %v900 = vadd.f32 %v387, %v804
          %v901 = vadd.f32 %v388, %v807
          %v902 = vadd.f32 %v389, %v812
          %v903 = vadd.f32 %v390, %v815
          %v904 = vadd.f32 %v391, %v820
          %v905 = vadd.f32 %v392, %v823
          %v906 = vadd.f32 %v393, %v828
          %v907 = vadd.f32 %v394, %v831
          %v908 = vadd.f32 %v395, %v836
          %v909 = vadd.f32 %v396, %v839
          %v910 = vadd.f32 %v397, %v844
          %v911 = vadd.f32 %v398, %v847
          %v912 = vadd.f32 %v399, %v852
          %v913 = vadd.f32 %v400, %v855
          %v914 = vadd.f32 %v401, %v860
          %v915 = vadd.f32 %v402, %v863
          %v916 = vadd.f32 %v403, %v868
          %v917 = vadd.f32 %v404, %v871
          %v918 = vadd.f32 %v405, %v876
          %v919 = vadd.f32 %v406, %v879
          %v920 = vadd.f32 %v407, %v884
          %v921 = vadd.f32 %v408, %v887
          %922 = vst [vmem:[#allocation2] sm:$0xff] %v890
          %923 = vst [vmem:[#allocation2 + $0x8] sm:$0xff] %v891
          %924 = vst [vmem:[#allocation2 + $0x10] sm:$0xff] %v892
          %925 = vst [vmem:[#allocation2 + $0x18] sm:$0xff] %v893
          %926 = vst [vmem:[#allocation2 + $0x20] sm:$0xff] %v894
          %927 = vst [vmem:[#allocation2 + $0x28] sm:$0xff] %v895
          %928 = vst [vmem:[#allocation2 + $0x30] sm:$0xff] %v896
          %929 = vst [vmem:[#allocation2 + $0x38] sm:$0xff] %v897
          %930 = vst [vmem:[#allocation2 + $0x40] sm:$0xff] %v898
          %931 = vst [vmem:[#allocation2 + $0x48] sm:$0xff] %v899
          %932 = vst [vmem:[#allocation2 + $0x50] sm:$0xff] %v900
          %933 = vst [vmem:[#allocation2 + $0x58] sm:$0xff] %v901
          %934 = vst [vmem:[#allocation2 + $0x60] sm:$0xff] %v902
          %935 = vst [vmem:[#allocation2 + $0x68] sm:$0xff] %v903
          %936 = vst [vmem:[#allocation2 + $0x70] sm:$0xff] %v904
          %937 = vst [vmem:[#allocation2 + $0x78] sm:$0xff] %v905
          %938 = vst [vmem:[#allocation2 + $0x80] sm:$0xff] %v906
          %939 = vst [vmem:[#allocation2 + $0x88] sm:$0xff] %v907
          %940 = vst [vmem:[#allocation2 + $0x90] sm:$0xff] %v908
          %941 = vst [vmem:[#allocation2 + $0x98] sm:$0xff] %v909
          %942 = vst [vmem:[#allocation2 + $0xa0] sm:$0xff] %v910
          %943 = vst [vmem:[#allocation2 + $0xa8] sm:$0xff] %v911
          %944 = vst [vmem:[#allocation2 + $0xb0] sm:$0xff] %v912
          %945 = vst [vmem:[#allocation2 + $0xb8] sm:$0xff] %v913
          %946 = vst [vmem:[#allocation2 + $0xc0] sm:$0xff] %v914
          %947 = vst [vmem:[#allocation2 + $0xc8] sm:$0xff] %v915
          %948 = vst [vmem:[#allocation2 + $0xd0] sm:$0xff] %v916
          %949 = vst [vmem:[#allocation2 + $0xd8] sm:$0xff] %v917
          %950 = vst [vmem:[#allocation2 + $0xe0] sm:$0xff] %v918
          %951 = vst [vmem:[#allocation2 + $0xe8] sm:$0xff] %v919
          %952 = vst [vmem:[#allocation2 + $0xf0] sm:$0xff] %v920
          %953 = vst [vmem:[#allocation2 + $0xf8] sm:$0xff] %v921
        $region56: #{_gcn_forward_padded.4} parent=35 // pred_fallthru
          _
        %p954 = scmp.eq.s32.totalorder %s32, 3
        // Predicated region
        $region57: #{_gcn_forward_padded.4} parent=35 // pred_check
          %p955 = pneg %p954
        $region58: #{_gcn_forward_padded.4} parent=35 // pred_check_branch
          %957 = sbr.rel (%p955) target = $region60
        $region59: #{_gcn_forward_padded.4} parent=35 // pred_region
          %v958 = vld [vmem:[#allocation2] sm:$0xff]
          %v959 = vld [vmem:[#allocation2 + $0x8] sm:$0xff]
          %v960 = vld [vmem:[#allocation2 + $0x10] sm:$0xff]
          %v961 = vld [vmem:[#allocation2 + $0x18] sm:$0xff]
          %v962 = vld [vmem:[#allocation2 + $0x20] sm:$0xff]
          %v963 = vld [vmem:[#allocation2 + $0x28] sm:$0xff]
          %v964 = vld [vmem:[#allocation2 + $0x30] sm:$0xff]
          %v965 = vld [vmem:[#allocation2 + $0x38] sm:$0xff]
          %v966 = vld [vmem:[#allocation2 + $0x40] sm:$0xff]
          %v967 = vld [vmem:[#allocation2 + $0x48] sm:$0xff]
          %v968 = vld [vmem:[#allocation2 + $0x50] sm:$0xff]
          %v969 = vld [vmem:[#allocation2 + $0x58] sm:$0xff]
          %v970 = vld [vmem:[#allocation2 + $0x60] sm:$0xff]
          %v971 = vld [vmem:[#allocation2 + $0x68] sm:$0xff]
          %v972 = vld [vmem:[#allocation2 + $0x70] sm:$0xff]
          %v973 = vld [vmem:[#allocation2 + $0x78] sm:$0xff]
          %v974 = vld [vmem:[#allocation2 + $0x80] sm:$0xff]
          %v975 = vld [vmem:[#allocation2 + $0x88] sm:$0xff]
          %v976 = vld [vmem:[#allocation2 + $0x90] sm:$0xff]
          %v977 = vld [vmem:[#allocation2 + $0x98] sm:$0xff]
          %v978 = vld [vmem:[#allocation2 + $0xa0] sm:$0xff]
          %v979 = vld [vmem:[#allocation2 + $0xa8] sm:$0xff]
          %v980 = vld [vmem:[#allocation2 + $0xb0] sm:$0xff]
          %v981 = vld [vmem:[#allocation2 + $0xb8] sm:$0xff]
          %v982 = vld [vmem:[#allocation2 + $0xc0] sm:$0xff]
          %v983 = vld [vmem:[#allocation2 + $0xc8] sm:$0xff]
          %v984 = vld [vmem:[#allocation2 + $0xd0] sm:$0xff]
          %v985 = vld [vmem:[#allocation2 + $0xd8] sm:$0xff]
          %v986 = vld [vmem:[#allocation2 + $0xe0] sm:$0xff]
          %v987 = vld [vmem:[#allocation2 + $0xe8] sm:$0xff]
          %v988 = vld [vmem:[#allocation2 + $0xf0] sm:$0xff]
          %v989 = vld [vmem:[#allocation2 + $0xf8] sm:$0xff]
          %v990 = vmax.f32 %v958, 0.0
          %v991 = vmax.f32 %v959, 0.0
          %v992 = vmax.f32 %v960, 0.0
          %v993 = vmax.f32 %v961, 0.0
          %v994 = vmax.f32 %v962, 0.0
          %v995 = vmax.f32 %v963, 0.0
          %v996 = vmax.f32 %v964, 0.0
          %v997 = vmax.f32 %v965, 0.0
          %v998 = vmax.f32 %v966, 0.0
          %v999 = vmax.f32 %v967, 0.0
          %v1000 = vmax.f32 %v968, 0.0
          %v1001 = vmax.f32 %v969, 0.0
          %v1002 = vmax.f32 %v970, 0.0
          %v1003 = vmax.f32 %v971, 0.0
          %v1004 = vmax.f32 %v972, 0.0
          %v1005 = vmax.f32 %v973, 0.0
          %v1006 = vmax.f32 %v974, 0.0
          %v1007 = vmax.f32 %v975, 0.0
          %v1008 = vmax.f32 %v976, 0.0
          %v1009 = vmax.f32 %v977, 0.0
          %v1010 = vmax.f32 %v978, 0.0
          %v1011 = vmax.f32 %v979, 0.0
          %v1012 = vmax.f32 %v980, 0.0
          %v1013 = vmax.f32 %v981, 0.0
          %v1014 = vmax.f32 %v982, 0.0
          %v1015 = vmax.f32 %v983, 0.0
          %v1016 = vmax.f32 %v984, 0.0
          %v1017 = vmax.f32 %v985, 0.0
          %v1018 = vmax.f32 %v986, 0.0
          %v1019 = vmax.f32 %v987, 0.0
          %v1020 = vmax.f32 %v988, 0.0
          %v1021 = vmax.f32 %v989, 0.0
          %v1022 = vpack.c.bf16 %v991, %v990
          %v1023 = vpack.c.bf16 %v993, %v992
          %v1024 = vpack.c.bf16 %v995, %v994
          %v1025 = vpack.c.bf16 %v997, %v996
          %v1026 = vpack.c.bf16 %v999, %v998
          %v1027 = vpack.c.bf16 %v1001, %v1000
          %v1028 = vpack.c.bf16 %v1003, %v1002
          %v1029 = vpack.c.bf16 %v1005, %v1004
          %v1030 = vpack.c.bf16 %v1007, %v1006
          %v1031 = vpack.c.bf16 %v1009, %v1008
          %v1032 = vpack.c.bf16 %v1011, %v1010
          %v1033 = vpack.c.bf16 %v1013, %v1012
          %v1034 = vpack.c.bf16 %v1015, %v1014
          %v1035 = vpack.c.bf16 %v1017, %v1016
          %v1036 = vpack.c.bf16 %v1019, %v1018
          %v1037 = vpack.c.bf16 %v1021, %v1020
          %v1038 = vld [vmem:[#allocation10] sm:$0xf]
          %v1039 = vld [vmem:[#allocation10 + $0x4] sm:$0xf]
          %v1040 = vld [vmem:[#allocation10 + $0x8] sm:$0xf]
          %v1041 = vld [vmem:[#allocation10 + $0xc] sm:$0xf]
          %v1042 = vld [vmem:[#allocation10 + $0x10] sm:$0xf]
          %v1043 = vld [vmem:[#allocation10 + $0x14] sm:$0xf]
          %v1044 = vld [vmem:[#allocation10 + $0x18] sm:$0xf]
          %v1045 = vld [vmem:[#allocation10 + $0x1c] sm:$0xf]
          %v1046 = vld [vmem:[#allocation10 + $0x20] sm:$0xf]
          %v1047 = vld [vmem:[#allocation10 + $0x24] sm:$0xf]
          %v1048 = vld [vmem:[#allocation10 + $0x28] sm:$0xf]
          %v1049 = vld [vmem:[#allocation10 + $0x2c] sm:$0xf]
          %v1050 = vld [vmem:[#allocation10 + $0x30] sm:$0xf]
          %v1051 = vld [vmem:[#allocation10 + $0x34] sm:$0xf]
          %v1052 = vld [vmem:[#allocation10 + $0x38] sm:$0xf]
          %v1053 = vld [vmem:[#allocation10 + $0x3c] sm:$0xf]
          %v1070 = vunpack.c.l.b16 %v1038
          %v1071 = vunpack.c.l.b16 %v1039
          %v1072 = vunpack.c.l.b16 %v1040
          %v1073 = vunpack.c.l.b16 %v1041
          %v1074 = vunpack.c.l.b16 %v1042
          %v1075 = vunpack.c.l.b16 %v1043
          %v1076 = vunpack.c.l.b16 %v1044
          %v1077 = vunpack.c.l.b16 %v1045
          %v1078 = vunpack.c.l.b16 %v1046
          %v1079 = vunpack.c.l.b16 %v1047
          %v1080 = vunpack.c.l.b16 %v1048
          %v1081 = vunpack.c.l.b16 %v1049
          %v1082 = vunpack.c.l.b16 %v1050
          %v1083 = vunpack.c.l.b16 %v1051
          %v1084 = vunpack.c.l.b16 %v1052
          %v1085 = vunpack.c.l.b16 %v1053
          %v1086 = vpack.c.b16 %v1071, %v1070
          %v1087 = vpack.c.b16 %v1073, %v1072
          %v1088 = vpack.c.b16 %v1075, %v1074
          %v1089 = vpack.c.b16 %v1077, %v1076
          %v1090 = vpack.c.b16 %v1079, %v1078
          %v1091 = vpack.c.b16 %v1081, %v1080
          %v1092 = vpack.c.b16 %v1083, %v1082
          %v1093 = vpack.c.b16 %v1085, %v1084
          %1102 = vmatprep.subr.bf16.mxu0 0
          %1103 = vmatpush1.bf16.msra.mxu0 %v1086
          %1104 = vmatprep.subr.bf16.mxu0 0
          %1105 = vmatpush1.bf16.msra.mxu0 %v1087
          %1106 = vmatprep.subr.bf16.mxu0 0
          %1107 = vmatpush1.bf16.msra.mxu0 %v1088
          %1108 = vmatprep.subr.bf16.mxu0 0
          %1109 = vmatpush1.bf16.msra.mxu0 %v1089
          %1110 = vmatprep.subr.bf16.mxu0 0
          %1111 = vmatpush1.bf16.msra.mxu0 %v1090
          %1112 = vmatprep.subr.bf16.mxu0 0
          %1113 = vmatpush1.bf16.msra.mxu0 %v1091
          %1114 = vmatprep.subr.bf16.mxu0 0
          %1115 = vmatpush1.bf16.msra.mxu0 %v1092
          %1116 = vmatprep.subr.bf16.mxu0 0
          %1117 = vmatpush1.bf16.msra.mxu0 %v1093
          %1118 = vmatprep.subr.bf16.mxu0 0
          %1119 = vmatpush1.bf16.msra.mxu0 0
          %1120 = vmatprep.subr.bf16.mxu0 0
          %1121 = vmatpush1.bf16.msra.mxu0 0
          %1122 = vmatprep.subr.bf16.mxu0 0
          %1123 = vmatpush1.bf16.msra.mxu0 0
          %1124 = vmatprep.subr.bf16.mxu0 0
          %1125 = vmatpush1.bf16.msra.mxu0 0
          %1126 = vmatprep.subr.bf16.mxu0 0
          %1127 = vmatpush1.bf16.msra.mxu0 0
          %1128 = vmatprep.subr.bf16.mxu0 0
          %1129 = vmatpush1.bf16.msra.mxu0 0
          %1130 = vmatprep.subr.bf16.mxu0 0
          %1131 = vmatpush1.bf16.msra.mxu0 0
          %1132 = vmatprep.subr.bf16.mxu0 0
          %1133 = vmatpush1.bf16.msra.mxu0 0
          %1134 = vmatprep.mubr.bf16.mxu0 0
          %1135 = vmatmul.mubr.bf16.gmra.mrb[0].mxu0 %v1022
          %v1136 = vpop.f32.mrb[0].mxu0
          %v1137 = vadd.f32 0.0, %v1136
          %v1138 = vpop.f32.mrb[0].mxu0
          %v1139 = vpop.f32.mrb[0].mxu0
          %v1140 = vadd.f32 0.0, %v1139
          %v1141 = vpop.f32.mrb[0].mxu0
          %1142 = vmatprep.mubr.bf16.mxu0 0
          %1143 = vmatmul.mubr.bf16.gmra.mrb[0].mxu0 %v1023
          %v1144 = vpop.f32.mrb[0].mxu0
          %v1145 = vadd.f32 0.0, %v1144
          %v1146 = vpop.f32.mrb[0].mxu0
          %v1147 = vpop.f32.mrb[0].mxu0
          %v1148 = vadd.f32 0.0, %v1147
          %v1149 = vpop.f32.mrb[0].mxu0
          %1150 = vmatprep.mubr.bf16.mxu0 0
          %1151 = vmatmul.mubr.bf16.gmra.mrb[0].mxu0 %v1024
          %v1152 = vpop.f32.mrb[0].mxu0
          %v1153 = vadd.f32 0.0, %v1152
          %v1154 = vpop.f32.mrb[0].mxu0
          %v1155 = vpop.f32.mrb[0].mxu0
          %v1156 = vadd.f32 0.0, %v1155
          %v1157 = vpop.f32.mrb[0].mxu0
          %1158 = vmatprep.mubr.bf16.mxu0 0
          %1159 = vmatmul.mubr.bf16.gmra.mrb[0].mxu0 %v1025
          %v1160 = vpop.f32.mrb[0].mxu0
          %v1161 = vadd.f32 0.0, %v1160
          %v1162 = vpop.f32.mrb[0].mxu0
          %v1163 = vpop.f32.mrb[0].mxu0
          %v1164 = vadd.f32 0.0, %v1163
          %v1165 = vpop.f32.mrb[0].mxu0
          %1166 = vmatprep.mubr.bf16.mxu0 0
          %1167 = vmatmul.mubr.bf16.gmra.mrb[0].mxu0 %v1026
          %v1168 = vpop.f32.mrb[0].mxu0
          %v1169 = vadd.f32 0.0, %v1168
          %v1170 = vpop.f32.mrb[0].mxu0
          %v1171 = vpop.f32.mrb[0].mxu0
          %v1172 = vadd.f32 0.0, %v1171
          %v1173 = vpop.f32.mrb[0].mxu0
          %1174 = vmatprep.mubr.bf16.mxu0 0
          %1175 = vmatmul.mubr.bf16.gmra.mrb[0].mxu0 %v1027
          %v1176 = vpop.f32.mrb[0].mxu0
          %v1177 = vadd.f32 0.0, %v1176
          %v1178 = vpop.f32.mrb[0].mxu0
          %v1179 = vpop.f32.mrb[0].mxu0
          %v1180 = vadd.f32 0.0, %v1179
          %v1181 = vpop.f32.mrb[0].mxu0
          %1182 = vmatprep.mubr.bf16.mxu0 0
          %1183 = vmatmul.mubr.bf16.gmra.mrb[0].mxu0 %v1028
          %v1184 = vpop.f32.mrb[0].mxu0
          %v1185 = vadd.f32 0.0, %v1184
          %v1186 = vpop.f32.mrb[0].mxu0
          %v1187 = vpop.f32.mrb[0].mxu0
          %v1188 = vadd.f32 0.0, %v1187
          %v1189 = vpop.f32.mrb[0].mxu0
          %1190 = vmatprep.mubr.bf16.mxu0 0
          %1191 = vmatmul.mubr.bf16.gmra.mrb[0].mxu0 %v1029
          %v1192 = vpop.f32.mrb[0].mxu0
          %v1193 = vadd.f32 0.0, %v1192
          %v1194 = vpop.f32.mrb[0].mxu0
          %v1195 = vpop.f32.mrb[0].mxu0
          %v1196 = vadd.f32 0.0, %v1195
          %v1197 = vpop.f32.mrb[0].mxu0
          %1198 = vmatprep.mubr.bf16.mxu0 0
          %1199 = vmatmul.mubr.bf16.gmra.mrb[0].mxu0 %v1030
          %v1200 = vpop.f32.mrb[0].mxu0
          %v1201 = vadd.f32 0.0, %v1200
          %v1202 = vpop.f32.mrb[0].mxu0
          %v1203 = vpop.f32.mrb[0].mxu0
          %v1204 = vadd.f32 0.0, %v1203
          %v1205 = vpop.f32.mrb[0].mxu0
          %1206 = vmatprep.mubr.bf16.mxu0 0
          %1207 = vmatmul.mubr.bf16.gmra.mrb[0].mxu0 %v1031
          %v1208 = vpop.f32.mrb[0].mxu0
          %v1209 = vadd.f32 0.0, %v1208
          %v1210 = vpop.f32.mrb[0].mxu0
          %v1211 = vpop.f32.mrb[0].mxu0
          %v1212 = vadd.f32 0.0, %v1211
          %v1213 = vpop.f32.mrb[0].mxu0
          %1214 = vmatprep.mubr.bf16.mxu0 0
          %1215 = vmatmul.mubr.bf16.gmra.mrb[0].mxu0 %v1032
          %v1216 = vpop.f32.mrb[0].mxu0
          %v1217 = vadd.f32 0.0, %v1216
          %v1218 = vpop.f32.mrb[0].mxu0
          %v1219 = vpop.f32.mrb[0].mxu0
          %v1220 = vadd.f32 0.0, %v1219
          %v1221 = vpop.f32.mrb[0].mxu0
          %1222 = vmatprep.mubr.bf16.mxu0 0
          %1223 = vmatmul.mubr.bf16.gmra.mrb[0].mxu0 %v1033
          %v1224 = vpop.f32.mrb[0].mxu0
          %v1225 = vadd.f32 0.0, %v1224
          %v1226 = vpop.f32.mrb[0].mxu0
          %v1227 = vpop.f32.mrb[0].mxu0
          %v1228 = vadd.f32 0.0, %v1227
          %v1229 = vpop.f32.mrb[0].mxu0
          %1230 = vmatprep.mubr.bf16.mxu0 0
          %1231 = vmatmul.mubr.bf16.gmra.mrb[0].mxu0 %v1034
          %v1232 = vpop.f32.mrb[0].mxu0
          %v1233 = vadd.f32 0.0, %v1232
          %v1234 = vpop.f32.mrb[0].mxu0
          %v1235 = vpop.f32.mrb[0].mxu0
          %v1236 = vadd.f32 0.0, %v1235
          %v1237 = vpop.f32.mrb[0].mxu0
          %1238 = vmatprep.mubr.bf16.mxu0 0
          %1239 = vmatmul.mubr.bf16.gmra.mrb[0].mxu0 %v1035
          %v1240 = vpop.f32.mrb[0].mxu0
          %v1241 = vadd.f32 0.0, %v1240
          %v1242 = vpop.f32.mrb[0].mxu0
          %v1243 = vpop.f32.mrb[0].mxu0
          %v1244 = vadd.f32 0.0, %v1243
          %v1245 = vpop.f32.mrb[0].mxu0
          %1246 = vmatprep.mubr.bf16.mxu0 0
          %1247 = vmatmul.mubr.bf16.gmra.mrb[0].mxu0 %v1036
          %v1248 = vpop.f32.mrb[0].mxu0
          %v1249 = vadd.f32 0.0, %v1248
          %v1250 = vpop.f32.mrb[0].mxu0
          %v1251 = vpop.f32.mrb[0].mxu0
          %v1252 = vadd.f32 0.0, %v1251
          %v1253 = vpop.f32.mrb[0].mxu0
          %1254 = vmatprep.mubr.bf16.mxu0 0
          %1255 = vmatmul.mubr.bf16.gmra.mrb[0].mxu0 %v1037
          %v1256 = vpop.f32.mrb[0].mxu0
          %v1257 = vadd.f32 0.0, %v1256
          %v1258 = vpop.f32.mrb[0].mxu0
          %v1259 = vpop.f32.mrb[0].mxu0
          %v1260 = vadd.f32 0.0, %v1259
          %v1261 = vpop.f32.mrb[0].mxu0
          %1262 = vdwg.mxu0
          %v1263 = vpack.c.bf16 %v1140, %v1137
          %v1264 = vpack.c.bf16 %v1148, %v1145
          %v1265 = vpack.c.bf16 %v1156, %v1153
          %v1266 = vpack.c.bf16 %v1164, %v1161
          %v1267 = vpack.c.bf16 %v1172, %v1169
          %v1268 = vpack.c.bf16 %v1180, %v1177
          %v1269 = vpack.c.bf16 %v1188, %v1185
          %v1270 = vpack.c.bf16 %v1196, %v1193
          %v1271 = vpack.c.bf16 %v1204, %v1201
          %v1272 = vpack.c.bf16 %v1212, %v1209
          %v1273 = vpack.c.bf16 %v1220, %v1217
          %v1274 = vpack.c.bf16 %v1228, %v1225
          %v1275 = vpack.c.bf16 %v1236, %v1233
          %v1276 = vpack.c.bf16 %v1244, %v1241
          %v1277 = vpack.c.bf16 %v1252, %v1249
          %v1278 = vpack.c.bf16 %v1260, %v1257
          %v1295 = vunpack.c.l.b16 %v1263
          %v1296 = vunpack.c.h.b16 %v1263
          %v1297 = vunpack.c.l.b16 %v1264
          %v1298 = vunpack.c.h.b16 %v1264
          %v1299 = vunpack.c.l.b16 %v1265
          %v1300 = vunpack.c.h.b16 %v1265
          %v1301 = vunpack.c.l.b16 %v1266
          %v1302 = vunpack.c.h.b16 %v1266
          %v1303 = vunpack.c.l.b16 %v1267
          %v1304 = vunpack.c.h.b16 %v1267
          %v1305 = vunpack.c.l.b16 %v1268
          %v1306 = vunpack.c.h.b16 %v1268
          %v1307 = vunpack.c.l.b16 %v1269
          %v1308 = vunpack.c.h.b16 %v1269
          %v1309 = vunpack.c.l.b16 %v1270
          %v1310 = vunpack.c.h.b16 %v1270
          %v1311 = vunpack.c.l.b16 %v1271
          %v1312 = vunpack.c.h.b16 %v1271
          %v1313 = vunpack.c.l.b16 %v1272
          %v1314 = vunpack.c.h.b16 %v1272
          %v1315 = vunpack.c.l.b16 %v1273
          %v1316 = vunpack.c.h.b16 %v1273
          %v1317 = vunpack.c.l.b16 %v1274
          %v1318 = vunpack.c.h.b16 %v1274
          %v1319 = vunpack.c.l.b16 %v1275
          %v1320 = vunpack.c.h.b16 %v1275
          %v1321 = vunpack.c.l.b16 %v1276
          %v1322 = vunpack.c.h.b16 %v1276
          %v1323 = vunpack.c.l.b16 %v1277
          %v1324 = vunpack.c.h.b16 %v1277
          %v1325 = vunpack.c.l.b16 %v1278
          %v1326 = vunpack.c.h.b16 %v1278
          %v1327 = vpack.c.b16 %v1295, %v1295
          %v1328 = vpack.c.b16 %v1296, %v1296
          %v1329 = vpack.c.b16 %v1297, %v1297
          %v1330 = vpack.c.b16 %v1298, %v1298
          %v1331 = vpack.c.b16 %v1299, %v1299
          %v1332 = vpack.c.b16 %v1300, %v1300
          %v1333 = vpack.c.b16 %v1301, %v1301
          %v1334 = vpack.c.b16 %v1302, %v1302
          %v1335 = vpack.c.b16 %v1303, %v1303
          %v1336 = vpack.c.b16 %v1304, %v1304
          %v1337 = vpack.c.b16 %v1305, %v1305
          %v1338 = vpack.c.b16 %v1306, %v1306
          %v1339 = vpack.c.b16 %v1307, %v1307
          %v1340 = vpack.c.b16 %v1308, %v1308
          %v1341 = vpack.c.b16 %v1309, %v1309
          %v1342 = vpack.c.b16 %v1310, %v1310
          %v1343 = vpack.c.b16 %v1311, %v1311
          %v1344 = vpack.c.b16 %v1312, %v1312
          %v1345 = vpack.c.b16 %v1313, %v1313
          %v1346 = vpack.c.b16 %v1314, %v1314
          %v1347 = vpack.c.b16 %v1315, %v1315
          %v1348 = vpack.c.b16 %v1316, %v1316
          %v1349 = vpack.c.b16 %v1317, %v1317
          %v1350 = vpack.c.b16 %v1318, %v1318
          %v1351 = vpack.c.b16 %v1319, %v1319
          %v1352 = vpack.c.b16 %v1320, %v1320
          %v1353 = vpack.c.b16 %v1321, %v1321
          %v1354 = vpack.c.b16 %v1322, %v1322
          %v1355 = vpack.c.b16 %v1323, %v1323
          %v1356 = vpack.c.b16 %v1324, %v1324
          %v1357 = vpack.c.b16 %v1325, %v1325
          %v1358 = vpack.c.b16 %v1326, %v1326
          %1391 = vst [vmem:[%s326] sm:$0xf] %v1327
          %1392 = vst [vmem:[%s326 + $0x4] sm:$0xf] %v1328
          %1393 = vst [vmem:[%s326 + $0x8] sm:$0xf] %v1329
          %1394 = vst [vmem:[%s326 + $0xc] sm:$0xf] %v1330
          %1395 = vst [vmem:[%s326 + $0x10] sm:$0xf] %v1331
          %1396 = vst [vmem:[%s326 + $0x14] sm:$0xf] %v1332
          %1397 = vst [vmem:[%s326 + $0x18] sm:$0xf] %v1333
          %1398 = vst [vmem:[%s326 + $0x1c] sm:$0xf] %v1334
          %1399 = vst [vmem:[%s326 + $0x20] sm:$0xf] %v1335
          %1400 = vst [vmem:[%s326 + $0x24] sm:$0xf] %v1336
          %1401 = vst [vmem:[%s326 + $0x28] sm:$0xf] %v1337
          %1402 = vst [vmem:[%s326 + $0x2c] sm:$0xf] %v1338
          %1403 = vst [vmem:[%s326 + $0x30] sm:$0xf] %v1339
          %1404 = vst [vmem:[%s326 + $0x34] sm:$0xf] %v1340
          %1405 = vst [vmem:[%s326 + $0x38] sm:$0xf] %v1341
          %1406 = vst [vmem:[%s326 + $0x3c] sm:$0xf] %v1342
          %1407 = vst [vmem:[%s326 + $0x40] sm:$0xf] %v1343
          %1408 = vst [vmem:[%s326 + $0x44] sm:$0xf] %v1344
          %1409 = vst [vmem:[%s326 + $0x48] sm:$0xf] %v1345
          %1410 = vst [vmem:[%s326 + $0x4c] sm:$0xf] %v1346
          %1411 = vst [vmem:[%s326 + $0x50] sm:$0xf] %v1347
          %1412 = vst [vmem:[%s326 + $0x54] sm:$0xf] %v1348
          %1413 = vst [vmem:[%s326 + $0x58] sm:$0xf] %v1349
          %1414 = vst [vmem:[%s326 + $0x5c] sm:$0xf] %v1350
          %1415 = vst [vmem:[%s326 + $0x60] sm:$0xf] %v1351
          %1416 = vst [vmem:[%s326 + $0x64] sm:$0xf] %v1352
          %1417 = vst [vmem:[%s326 + $0x68] sm:$0xf] %v1353
          %1418 = vst [vmem:[%s326 + $0x6c] sm:$0xf] %v1354
          %1419 = vst [vmem:[%s326 + $0x70] sm:$0xf] %v1355
          %1420 = vst [vmem:[%s326 + $0x74] sm:$0xf] %v1356
          %1421 = vst [vmem:[%s326 + $0x78] sm:$0xf] %v1357
          %1422 = vst [vmem:[%s326 + $0x7c] sm:$0xf] %v1358
        $region60: #{_gcn_forward_padded.4} parent=35 // pred_fallthru
          _
        %s1423 = smul.u32 32, %s31
        %p1424 = scmp.lt.s32.totalorder %s1423, 127
        %s1425 = scalar_select %p1424, %s1423, 127
        %s1426 = smul.addr %s1425, 4
        %s1427 = scalar_lea.vmem %s6, %s1426
        // Predicated region
        $region61: #{_gcn_forward_padded.4} parent=35 // pred_check
          %p1428 = pneg %p165
        $region62: #{_gcn_forward_padded.4} parent=35 // pred_check_branch
          %1430 = sbr.rel (%p1428) target = $region64
        $region63: #{_gcn_forward_padded.4} parent=35 // pred_region
          %s1431 = smul.u32 32, %s31
        $region64: #{_gcn_forward_padded.4} parent=35 // pred_fallthru
          _
      $region36: #{_gcn_forward_padded.4} parent=5 // pred_fallthru
        _
      %p1432 = scmp.le.s32.totalorder 2, %s22
      // Predicated region
      $region65: #{_gcn_forward_padded.4} parent=5 // pred_check
        %p1433 = pneg %p1432
      $region66: #{_gcn_forward_padded.4} parent=5 // pred_check_branch
        %1435 = sbr.rel (%p1433) target = $region68
      $region67: #{_gcn_forward_padded.4} parent=5 // pred_region
        %s1436 = ssub.s32 %s22, 2
        // Predicated region
        $region69: #{_gcn_forward_padded.4} parent=67 // pred_check
          %p1437 = pneg %p171
        $region70: #{_gcn_forward_padded.4} parent=67 // pred_check_branch
          %1439 = sbr.rel (%p1437) target = $region72
        $region71: #{_gcn_forward_padded.4} parent=67 // pred_region
          %s1440 = smul.u32 32, %s33
          %p1441 = scmp.lt.s32.totalorder %s1440, 127
          %s1442 = scalar_select %p1441, %s1440, 127
          %s1443 = smul.addr %s1442, 4
          %s1444 = scalar_lea.vmem %s6, %s1443
        $region72: #{_gcn_forward_padded.4} parent=67 // pred_fallthru
          _
      $region68: #{_gcn_forward_padded.4} parent=5 // pred_fallthru
        _
    $region6: #{_gcn_forward_padded.4} parent=1 // loop_footer
      %s26 = sadd.s32 1, %s22
    $region7: #{_gcn_forward_padded.4} parent=1 // loop_footer_branch
      %21 = sbr.rel target = $region3
    $region8: #{_gcn_forward_padded.4} parent=1 // loop_exit
      _
    %1445 = vsyncpa [#allocation7], 1
    %s1446 = scalar_lea.sflag [#allocation7], 1
    %1447 = vsyncpa %s1446, 1
    %1448 = vsyncpa [#allocation9], 1

</llo_original>
